<compile_context>
chip_gen: v5e
topology: v5e:2x2
jax: 0.10.0
libtpu: 0.0.40
codegen_flags: <defaults>
</compile_context>

<pallas_src>
import jax
import jax.numpy as jnp
from jax.experimental import pallas as pl
from jax.experimental.pallas import tpu as pltpu

# ---- hyper-parameters implied by the module (trial.suggest_* picks) ----------
BATCH = 2
SEQ = 8
INPUT_DIM = 16
HIDDEN = 64          # trial.suggest_int('hidden_dim', 40, 80, step=4)  -> 64
LAYERS = 2           # trial.suggest_int('recurrent_layers', 1, 3)      -> 2
OUTPUT_DIM = 4
SCALE = 1.0 / (HIDDEN ** 0.5)

_VMEM = pl.BlockSpec(memory_space=pltpu.MemorySpace.VMEM)


def _pad8(n):
    return ((n + 7) // 8) * 8


def _layout(num_layers=LAYERS, hidden=HIDDEN, input_dim=INPUT_DIM,
            output_dim=OUTPUT_DIM):
    """Row offsets of every weight block inside the two packed slabs."""
    H = hidden
    # LSTM slab: width 8H; per layer [W_ih (Din rows) ; W_hh (H rows) ; bias (8 rows)]
    lstm_offs, row = [], 0
    for l in range(num_layers):
        din = H // 2 if l == 0 else 2 * H
        lstm_offs.append({'din': din, 'wih': row,
                          'whh': row + _pad8(din),
                          'b': row + _pad8(din) + _pad8(H)})
        row += _pad8(din) + _pad8(H) + 8
    # misc slab: width 2H
    misc_offs, r = {}, 0

    def _sec(name, rows):
        nonlocal r
        misc_offs[name] = r
        r += _pad8(rows)

    _sec('w_emb', input_dim)
    _sec('b_emb', 1)
    _sec('w1', 2 * H)
    _sec('b1', 1)
    _sec('w2', 1)
    _sec('wlab_a', 2 * H)
    _sec('wlab_b', 2 * H)
    _sec('blab', 1)
    return {'lstm_offs': lstm_offs, 'lstm_rows': row,
            'misc_offs': misc_offs, 'misc_rows': r}


# ------------------------------ fused kernel -----------------------------------
def _make_fused_kernel(num_layers, seq, bpad, hidden, input_dim, output_dim):
    S, Bp, H = seq, bpad, hidden
    H2, H3, H4, H8 = 2 * H, 3 * H, 4 * H, 8 * H
    Hh = H // 2
    lay = _layout(num_layers, hidden, input_dim, output_dim)
    mo = lay['misc_offs']
    lo = lay['lstm_offs']

    def kernel(x_ref, lstm_ref, misc_ref, out_ref, xp_ref):
        # ---- input embedding: tanh(x @ W + b)
        # TODO(synk): dropout is implemented as eval-mode identity (no RNG mask).
        w_emb = misc_ref[mo['w_emb']:mo['w_emb'] + input_dim, 0:Hh]
        b_emb = misc_ref[mo['b_emb']:mo['b_emb'] + 1, 0:Hh]
        act = jnp.tanh(
            jnp.dot(x_ref[...], w_emb, preferred_element_type=jnp.float32)
            + b_emb)                                           # (S*Bp, H//2)

        # ---- bidirectional multi-layer LSTM (zero initial state)
        for l in range(num_layers):
            o = lo[l]
            din = o['din']
            wih = lstm_ref[o['wih']:o['wih'] + din, :]         # (Din, 8H)
            bias = lstm_ref[o['b']:o['b'] + 1, :]              # (1, 8H)
            # Hoisted input projection: whole sequence, both directions, all gates
            # (one matmul, outside the recurrent dependency chain).
            xp_ref[...] = (
                jnp.dot(act, wih, preferred_element_type=jnp.float32) + bias)

            hs = jnp.zeros((2 * Bp, H), jnp.float32)           # [fwd rows | rev rows]
            cs = jnp.zeros((2 * Bp, H), jnp.float32)
            hs_list = []
            for k in range(S):          # unrolled: fwd consumes t=k, rev t=S-1-k
                rk = S - 1 - k
                x_f = xp_ref[k * Bp:(k + 1) * Bp, 0:H4]        # (Bp, 4H)
                x_r = xp_ref[rk * Bp:(rk + 1) * Bp, H4:H8]     # (Bp, 4H)
                xk = jnp.concatenate([x_f, x_r], axis=0)       # (2Bp, 4H)
                if k == 0:
                    pre = xk                                    # h == c == 0 exactly
                else:
                    rec = jnp.dot(hs, lstm_ref[o['whh']:o['whh'] + H, :],
                                  preferred_element_type=jnp.float32)  # (2Bp, 8H)
                    pre = xk + jnp.concatenate(
                        [rec[0:Bp, 0:H4], rec[Bp:2 * Bp, H4:H8]], axis=0)
                # gate order [i, f, o, g]; g pre-activations pre-scaled x2 so that
                # tanh(z) == 2*sigmoid(2z) - 1 -> one sigmoid stream for all gates.
                s = jax.nn.sigmoid(pre)                         # (2Bp, 4H)
                cs = s[:, H:H2] * cs + s[:, 0:H] * (2.0 * s[:, H3:H4] - 1.0)
                hs = s[:, H2:H3] * jnp.tanh(cs)
                hs_list.append(hs)

            # layer output (register-resident): y[t] = [h_fwd[t] | h_rev[t]]
            y_f = jnp.concatenate([hs_list[t][0:Bp] for t in range(S)], axis=0)
            y_r = jnp.concatenate(
                [hs_list[S - 1 - t][Bp:2 * Bp] for t in range(S)], axis=0)
            act = jnp.concatenate([y_f, y_r], axis=1)           # (S*Bp, 2H)

        # ---- additive self-attention pooling + label head
        w1 = misc_ref[mo['w1']:mo['w1'] + H2, :]
        b1 = misc_ref[mo['b1']:mo['b1'] + 1, :]
        hmid = jnp.maximum(
            jnp.dot(act, w1, preferred_element_type=jnp.float32) + b1, 0.0)
        w2row = misc_ref[mo['w2']:mo['w2'] + 1, :]              # 1/sqrt(H) pre-folded
        # scores laid out (Bp, S): batch on sublanes, seq on lanes.
        # (attention bias b2 is dropped: softmax is shift-invariant.)
        e_cols = [jnp.sum(hmid[t * Bp:(t + 1) * Bp, :] * w2row,
                          axis=1, keepdims=True) for t in range(S)]
        e_bs = jnp.concatenate(e_cols, axis=1)                  # (Bp, S)
        m = jnp.max(e_bs, axis=1, keepdims=True)
        pexp = jnp.exp(e_bs - m)
        attn = pexp * pl.reciprocal(jnp.sum(pexp, axis=1, keepdims=True),
                                    approx=True)                # (Bp, S)

        f1 = jnp.zeros((Bp, H2), jnp.float32)
        f2 = jnp.zeros((Bp, H2), jnp.float32)
        for t in range(S):
            blk = act[t * Bp:(t + 1) * Bp, :]                   # (Bp, 2H) aligned tile
            f1 = f1 + attn[:, t:t + 1] * blk
            f2 = f2 + blk
        wlab_a = misc_ref[mo['wlab_a']:mo['wlab_a'] + H2, 0:output_dim]
        wlab_b = misc_ref[mo['wlab_b']:mo['wlab_b'] + H2, 0:output_dim]
        blab = misc_ref[mo['blab']:mo['blab'] + 1, 0:output_dim]
        out_ref[...] = (
            jnp.dot(f1, wlab_a, preferred_element_type=jnp.float32)
            + jnp.dot(f2, wlab_b, preferred_element_type=jnp.float32) + blab)

    return kernel


def build_forward(num_layers=LAYERS, seq=SEQ, batch=BATCH, hidden=HIDDEN,
                  input_dim=INPUT_DIM, output_dim=OUTPUT_DIM):
    bpad = max(8, _pad8(batch))                 # one f32 sublane tile
    assert batch <= bpad
    kernel = _make_fused_kernel(num_layers, seq, bpad, hidden, input_dim, output_dim)

    fused = pl.pallas_call(
        kernel,
        out_shape=jax.ShapeDtypeStruct((bpad, output_dim), jnp.float32),
        in_specs=[_VMEM, _VMEM, _VMEM],
        out_specs=_VMEM,
        scratch_shapes=[pltpu.VMEM((seq * bpad, 8 * hidden), jnp.float32)],
        compiler_params=pltpu.CompilerParams(vmem_limit_bytes=8 * 1024 * 1024),
    )

    def forward(x, kp):
        # pad batch to a full sublane tile, flatten seq-major: row = t*bpad + b
        x_pad = jnp.pad(x, ((0, bpad - batch), (0, 0), (0, 0)))
        x_sm = jnp.transpose(x_pad, (1, 0, 2)).reshape(seq * bpad, input_dim)
        out = fused(x_sm, kp['lstm_slab'], kp['misc_slab'])
        return out[:batch]

    return jax.jit(forward)


# -------------------------- deterministic parameters ---------------------------
def _uniform(key, shape, bound):
    return jax.random.uniform(key, shape, jnp.float32, -bound, bound)


def init_params(key):
    keys = iter(jax.random.split(key, 64))
    H, H2, H4 = HIDDEN, 2 * HIDDEN, 4 * HIDDEN
    p = {}
    # input_embeded: Linear(input_dim, H//2)
    bw = 1.0 / (INPUT_DIM ** 0.5)
    p['w_emb'] = _uniform(next(keys), (INPUT_DIM, H // 2), bw)   # stored as (in, out)
    p['b_emb'] = _uniform(next(keys), (1, H // 2), bw)

    # LSTM layers: PyTorch shapes W_ih (4H, Din), W_hh (4H, H), biases (4H,)
    lstm = []
    bw = 1.0 / (H ** 0.5)
    for layer in range(LAYERS):
        din = H // 2 if layer == 0 else 2 * H
        per_dir = []
        for _ in range(2):                                        # fwd, reverse
            w_ih = _uniform(next(keys), (H4, din), bw)
            w_hh = _uniform(next(keys), (H4, H), bw)
            b_ih = _uniform(next(keys), (H4,), bw).at[H:2 * H].set(1.0)  # forget gate
            b_hh = _uniform(next(keys), (H4,), bw).at[H:2 * H].set(1.0)
            wih_stack = w_ih.reshape(4, H, din).transpose(0, 2, 1)   # (4, Din, H) [i,f,g,o]
            whh_stack = w_hh.reshape(4, H, H).transpose(0, 2, 1)     # (4, H, H)
            b_stack = (b_ih + b_hh).reshape(4, 1, H)                 # (4, 1, H)
            per_dir.extend([wih_stack, whh_stack, b_stack])
        lstm.append(tuple(per_dir))
    p['lstm'] = lstm

    # self_attention: Linear(2H,2H) -> ReLU -> Linear(2H,1)
    bw = 1.0 / (H2 ** 0.5)
    p['w1'] = _uniform(next(keys), (H2, H2), bw)
    p['b1'] = _uniform(next(keys), (1, H2), bw)
    p['w2'] = _uniform(next(keys), (H2, 1), bw)
    p['b2'] = _uniform(next(keys), (1, 1), bw)
    # label: Linear(4H, output_dim)   (output_linear exists in __init__ but is unused)
    bw = 1.0 / (H4 ** 0.5)
    p['wlab'] = _uniform(next(keys), (H4, OUTPUT_DIM), bw)
    p['blab'] = _uniform(next(keys), (1, OUTPUT_DIM), bw)
    return p


def to_kernel_params(p, num_layers=LAYERS, hidden=HIDDEN,
                     input_dim=INPUT_DIM, output_dim=OUTPUT_DIM):
    """Repack PyTorch-style params into the 2-slab fused-kernel layout."""
    H = hidden
    H2, H8 = 2 * H, 8 * H
    lay = _layout(num_layers, hidden, input_dim, output_dim)
    reorder = (0, 1, 3, 2)   # [i, f, g, o] -> [i, f, o, g]

    def cat_gates(w):        # (4, Din, H) -> (Din, 4H); g block pre-scaled x2
        blocks = [w[j] for j in reorder]
        blocks[3] = blocks[3] * 2.0            # tanh(z) = 2*sigmoid(2z) - 1
        return jnp.concatenate(blocks, axis=1)

    def cat_bias(b):         # (4, 1, H) -> (1, 4H); g block pre-scaled x2
        blocks = [b[j] for j in reorder]
        blocks[3] = blocks[3] * 2.0
        return jnp.concatenate(blocks, axis=1)

    lstm_slab = jnp.zeros((lay['lstm_rows'], H8), jnp.float32)
    for l, (wih_f, whh_f, b_f, wih_r, whh_r, b_r) in enumerate(p['lstm']):
        o = lay['lstm_offs'][l]
        wih_x = jnp.concatenate([cat_gates(wih_f), cat_gates(wih_r)], axis=1)  # (Din, 8H)
        whh_x = jnp.concatenate([cat_gates(whh_f), cat_gates(whh_r)], axis=1)  # (H, 8H)
        b_x = jnp.concatenate([cat_bias(b_f), cat_bias(b_r)], axis=1)          # (1, 8H)
        lstm_slab = lstm_slab.at[o['wih']:o['wih'] + o['din'], :].set(wih_x)
        lstm_slab = lstm_slab.at[o['whh']:o['whh'] + H, :].set(whh_x)
        lstm_slab = lstm_slab.at[o['b']:o['b'] + 1, :].set(b_x)

    mo = lay['misc_offs']
    misc = jnp.zeros((lay['misc_rows'], H2), jnp.float32)
    misc = misc.at[mo['w_emb']:mo['w_emb'] + input_dim, 0:H // 2].set(p['w_emb'])
    misc = misc.at[mo['b_emb']:mo['b_emb'] + 1, 0:H // 2].set(p['b_emb'])
    misc = misc.at[mo['w1']:mo['w1'] + H2, :].set(p['w1'])
    misc = misc.at[mo['b1']:mo['b1'] + 1, :].set(p['b1'])
    # 1/sqrt(H) folded into w2; b2 dropped (softmax is shift-invariant)
    misc = misc.at[mo['w2']:mo['w2'] + 1, :].set((p['w2'] * SCALE).T)
    misc = misc.at[mo['wlab_a']:mo['wlab_a'] + H2, 0:output_dim].set(p['wlab'][0:H2])
    misc = misc.at[mo['wlab_b']:mo['wlab_b'] + H2, 0:output_dim].set(p['wlab'][H2:2 * H2])
    misc = misc.at[mo['blab']:mo['blab'] + 1, 0:output_dim].set(p['blab'])
    return {'lstm_slab': lstm_slab, 'misc_slab': misc}


# ------------------------------ pure-JAX reference -----------------------------
def _ref_lstm_dir(xs, wih, whh, b):
    s, bsz, _ = xs.shape
    h = jnp.zeros((bsz, HIDDEN), jnp.float32)
    c = jnp.zeros((bsz, HIDDEN), jnp.float32)
    ys = []
    for t in range(s):
        xt = xs[t]
        pre = [xt @ wih[k] + h @ whh[k] + b[k] for k in range(4)]   # [i, f, g, o]
        i = jax.nn.sigmoid(pre[0])
        f = jax.nn.sigmoid(pre[1])
        g = jnp.tanh(pre[2])
        o = jax.nn.sigmoid(pre[3])
        c = f * c + i * g
        h = o * jnp.tanh(c)
        ys.append(h)
    return jnp.stack(ys, axis=0)


def ref_forward(x, params):
    emb = jnp.tanh(jnp.einsum('bsd,dh->bsh', x, params['w_emb']) + params['b_emb'][0])
    layer_in = jnp.transpose(emb, (1, 0, 2))
    for wih_f, whh_f, b_f, wih_r, whh_r, b_r in params['lstm']:
        y_f = _ref_lstm_dir(layer_in, wih_f, whh_f, b_f)
        y_r = _ref_lstm_dir(layer_in[::-1], wih_r, whh_r, b_r)[::-1]
        layer_in = jnp.concatenate([y_f, y_r], axis=-1)
    out = jnp.transpose(layer_in, (1, 0, 2))
    bsz, seq, d2 = out.shape
    flat = out.reshape(bsz * seq, d2)
    h = jax.nn.relu(flat @ params['w1'] + params['b1'][0])
    e = ((h @ params['w2'] + params['b2'][0]) * SCALE).reshape(bsz, seq)
    p = jax.nn.softmax(e, axis=1)[..., None]
    f1 = jnp.sum(out * p, axis=1)
    f2 = jnp.sum(out, axis=1)
    comb = jnp.concatenate([f1, f2], axis=1)
    return comb @ params['wlab'] + params['blab'][0]


# ----------------------------------- main ---------------------------------------
if __name__ == "__main__":
    key = jax.random.PRNGKey(0)
    k_x, k_p = jax.random.split(key)
    x = jax.random.normal(k_x, (BATCH, SEQ, INPUT_DIM), jnp.float32)
    params = init_params(k_p)
    kparams = to_kernel_params(params)

    forward = build_forward()
    logits = jax.block_until_ready(forward(x, kparams))
    assert logits.shape == (BATCH, OUTPUT_DIM)

    ref = ref_forward(x, params)
    assert jnp.allclose(logits, ref, rtol=1e-3, atol=1e-3), (logits, ref)
    print("KERNEL_OK")
</pallas_src>

<mosaic_0001>
module attributes {stable_mosaic.version = 11 : i64} {
  func.func @kernel(%arg0: memref<64x16xf32, #tpu.memory_space<vmem>>, %arg1: memref<304x512xf32, #tpu.memory_space<vmem>>, %arg2: memref<432x128xf32, #tpu.memory_space<vmem>>, %arg3: memref<8x4xf32, #tpu.memory_space<vmem>>, %arg4: memref<64x512xf32, #tpu.memory_space<vmem>>) attributes {dimension_semantics = [], scalar_prefetch = 0 : i64, scratch_operands = 1 : i64, tpu.core_type = #tpu.core_type<tc>} {
    %c0 = arith.constant 0 : index
    %c0_0 = arith.constant 0 : index
    %0 = vector.load %arg2[%c0, %c0_0] : memref<432x128xf32, #tpu.memory_space<vmem>>, vector<16x32xf32>
    %c16 = arith.constant 16 : index
    %c0_1 = arith.constant 0 : index
    %1 = vector.load %arg2[%c16, %c0_1] : memref<432x128xf32, #tpu.memory_space<vmem>>, vector<1x32xf32>
    %c0_2 = arith.constant 0 : index
    %c0_3 = arith.constant 0 : index
    %2 = vector.load %arg0[%c0_2, %c0_3] : memref<64x16xf32, #tpu.memory_space<vmem>>, vector<64x16xf32>
    %cst = arith.constant dense<0.000000e+00> : vector<64x32xf32>
    %3 = tpu.matmul %2, %0, %cst {dimension_numbers = #tpu.dot_dimension_numbers<[1], [0], [0], [1], [0, 0, 1, 1], [], []>} : vector<64x16xf32>, vector<16x32xf32>, vector<64x32xf32> -> vector<64x32xf32>
    %4 = vector.broadcast %1 : vector<1x32xf32> to vector<64x32xf32>
    %5 = arith.addf %3, %4 : vector<64x32xf32>
    %6 = math.tanh %5 : vector<64x32xf32>
    %c0_4 = arith.constant 0 : index
    %c0_5 = arith.constant 0 : index
    %7 = vector.load %arg1[%c0_4, %c0_5] : memref<304x512xf32, #tpu.memory_space<vmem>>, vector<32x512xf32>
    %c96 = arith.constant 96 : index
    %c0_6 = arith.constant 0 : index
    %8 = vector.load %arg1[%c96, %c0_6] : memref<304x512xf32, #tpu.memory_space<vmem>>, vector<1x512xf32>
    %cst_7 = arith.constant dense<0.000000e+00> : vector<64x512xf32>
    %9 = tpu.matmul %6, %7, %cst_7 {dimension_numbers = #tpu.dot_dimension_numbers<[1], [0], [0], [1], [0, 0, 1, 1], [], []>} : vector<64x32xf32>, vector<32x512xf32>, vector<64x512xf32> -> vector<64x512xf32>
    %10 = vector.broadcast %8 : vector<1x512xf32> to vector<64x512xf32>
    %11 = arith.addf %9, %10 : vector<64x512xf32>
    %c0_8 = arith.constant 0 : index
    %c0_9 = arith.constant 0 : index
    %12 = vector.load %arg4[%c0_8, %c0_9] : memref<64x512xf32, #tpu.memory_space<vmem>>, vector<64x512xf32>
    tpu.vector_store %arg4[%c0_8, %c0_9], %11 {strides = array<i32>} : memref<64x512xf32, #tpu.memory_space<vmem>>, vector<64x512xf32>,
    %cst_10 = arith.constant 0.000000e+00 : f32
    %13 = vector.broadcast %cst_10 : f32 to vector<16x64xf32>
    %c0_11 = arith.constant 0 : index
    %c0_12 = arith.constant 0 : index
    %14 = vector.load %arg4[%c0_11, %c0_12] : memref<64x512xf32, #tpu.memory_space<vmem>>, vector<8x256xf32>
    %c56 = arith.constant 56 : index
    %c256 = arith.constant 256 : index
    %15 = vector.load %arg4[%c56, %c256] : memref<64x512xf32, #tpu.memory_space<vmem>>, vector<8x256xf32>
    %16 = tpu.concatenate %14, %15 in 0 : vector<8x256xf32>, vector<8x256xf32> -> vector<16x256xf32>
    %17 = arith.negf %16 : vector<16x256xf32>
    %18 = math.exp %17 : vector<16x256xf32>
    %cst_13 = arith.constant 1.000000e+00 : f32
    %19 = vector.broadcast %cst_13 : f32 to vector<16x256xf32>
    %20 = arith.addf %19, %18 : vector<16x256xf32>
    %21 = arith.divf %19, %20 : vector<16x256xf32>
    %22 = vector.extract_strided_slice %21 {offsets = [0, 64], sizes = [16, 64], strides = [1, 1]} : vector<16x256xf32> to vector<16x64xf32>
    %23 = arith.mulf %22, %13 : vector<16x64xf32>
    %24 = vector.extract_strided_slice %21 {offsets = [0, 0], sizes = [16, 64], strides = [1, 1]} : vector<16x256xf32> to vector<16x64xf32>
    %25 = vector.extract_strided_slice %21 {offsets = [0, 192], sizes = [16, 64], strides = [1, 1]} : vector<16x256xf32> to vector<16x64xf32>
    %cst_14 = arith.constant 2.000000e+00 : f32
    %26 = vector.broadcast %cst_14 : f32 to vector<16x64xf32>
    %27 = arith.mulf %26, %25 : vector<16x64xf32>
    %cst_15 = arith.constant 1.000000e+00 : f32
    %28 = vector.broadcast %cst_15 : f32 to vector<16x64xf32>
    %29 = arith.subf %27, %28 : vector<16x64xf32>
    %30 = arith.mulf %24, %29 : vector<16x64xf32>
    %31 = arith.addf %23, %30 : vector<16x64xf32>
    %32 = vector.extract_strided_slice %21 {offsets = [0, 128], sizes = [16, 64], strides = [1, 1]} : vector<16x256xf32> to vector<16x64xf32>
    %33 = math.tanh %31 : vector<16x64xf32>
    %34 = arith.mulf %32, %33 : vector<16x64xf32>
    %c8 = arith.constant 8 : index
    %c0_16 = arith.constant 0 : index
    %35 = vector.load %arg4[%c8, %c0_16] : memref<64x512xf32, #tpu.memory_space<vmem>>, vector<8x256xf32>
    %c48 = arith.constant 48 : index
    %c256_17 = arith.constant 256 : index
    %36 = vector.load %arg4[%c48, %c256_17] : memref<64x512xf32, #tpu.memory_space<vmem>>, vector<8x256xf32>
    %37 = tpu.concatenate %35, %36 in 0 : vector<8x256xf32>, vector<8x256xf32> -> vector<16x256xf32>
    %c32 = arith.constant 32 : index
    %c0_18 = arith.constant 0 : index
    %38 = vector.load %arg1[%c32, %c0_18] : memref<304x512xf32, #tpu.memory_space<vmem>>, vector<64x512xf32>
    %cst_19 = arith.constant dense<0.000000e+00> : vector<16x512xf32>
    %39 = tpu.matmul %34, %38, %cst_19 {dimension_numbers = #tpu.dot_dimension_numbers<[1], [0], [0], [1], [0, 0, 1, 1], [], []>} : vector<16x64xf32>, vector<64x512xf32>, vector<16x512xf32> -> vector<16x512xf32>
    %40 = vector.extract_strided_slice %39 {offsets = [0, 0], sizes = [8, 256], strides = [1, 1]} : vector<16x512xf32> to vector<8x256xf32>
    %41 = vector.extract_strided_slice %39 {offsets = [8, 256], sizes = [8, 256], strides = [1, 1]} : vector<16x512xf32> to vector<8x256xf32>
    %42 = tpu.concatenate %40, %41 in 0 : vector<8x256xf32>, vector<8x256xf32> -> vector<16x256xf32>
    %43 = arith.addf %37, %42 : vector<16x256xf32>
    %44 = arith.negf %43 : vector<16x256xf32>
    %45 = math.exp %44 : vector<16x256xf32>
    %cst_20 = arith.constant 1.000000e+00 : f32
    %46 = vector.broadcast %cst_20 : f32 to vector<16x256xf32>
    %47 = arith.addf %46, %45 : vector<16x256xf32>
    %48 = arith.divf %46, %47 : vector<16x256xf32>
    %49 = vector.extract_strided_slice %48 {offsets = [0, 64], sizes = [16, 64], strides = [1, 1]} : vector<16x256xf32> to vector<16x64xf32>
    %50 = arith.mulf %49, %31 : vector<16x64xf32>
    %51 = vector.extract_strided_slice %48 {offsets = [0, 0], sizes = [16, 64], strides = [1, 1]} : vector<16x256xf32> to vector<16x64xf32>
    %52 = vector.extract_strided_slice %48 {offsets = [0, 192], sizes = [16, 64], strides = [1, 1]} : vector<16x256xf32> to vector<16x64xf32>
    %cst_21 = arith.constant 2.000000e+00 : f32
    %53 = vector.broadcast %cst_21 : f32 to vector<16x64xf32>
    %54 = arith.mulf %53, %52 : vector<16x64xf32>
    %cst_22 = arith.constant 1.000000e+00 : f32
    %55 = vector.broadcast %cst_22 : f32 to vector<16x64xf32>
    %56 = arith.subf %54, %55 : vector<16x64xf32>
    %57 = arith.mulf %51, %56 : vector<16x64xf32>
    %58 = arith.addf %50, %57 : vector<16x64xf32>
    %59 = vector.extract_strided_slice %48 {offsets = [0, 128], sizes = [16, 64], strides = [1, 1]} : vector<16x256xf32> to vector<16x64xf32>
    %60 = math.tanh %58 : vector<16x64xf32>
    %61 = arith.mulf %59, %60 : vector<16x64xf32>
    %c16_23 = arith.constant 16 : index
    %c0_24 = arith.constant 0 : index
    %62 = vector.load %arg4[%c16_23, %c0_24] : memref<64x512xf32, #tpu.memory_space<vmem>>, vector<8x256xf32>
    %c40 = arith.constant 40 : index
    %c256_25 = arith.constant 256 : index
    %63 = vector.load %arg4[%c40, %c256_25] : memref<64x512xf32, #tpu.memory_space<vmem>>, vector<8x256xf32>
    %64 = tpu.concatenate %62, %63 in 0 : vector<8x256xf32>, vector<8x256xf32> -> vector<16x256xf32>
    %c32_26 = arith.constant 32 : index
    %c0_27 = arith.constant 0 : index
    %65 = vector.load %arg1[%c32_26, %c0_27] : memref<304x512xf32, #tpu.memory_space<vmem>>, vector<64x512xf32>
    %cst_28 = arith.constant dense<0.000000e+00> : vector<16x512xf32>
    %66 = tpu.matmul %61, %65, %cst_28 {dimension_numbers = #tpu.dot_dimension_numbers<[1], [0], [0], [1], [0, 0, 1, 1], [], []>} : vector<16x64xf32>, vector<64x512xf32>, vector<16x512xf32> -> vector<16x512xf32>
    %67 = vector.extract_strided_slice %66 {offsets = [0, 0], sizes = [8, 256], strides = [1, 1]} : vector<16x512xf32> to vector<8x256xf32>
    %68 = vector.extract_strided_slice %66 {offsets = [8, 256], sizes = [8, 256], strides = [1, 1]} : vector<16x512xf32> to vector<8x256xf32>
    %69 = tpu.concatenate %67, %68 in 0 : vector<8x256xf32>, vector<8x256xf32> -> vector<16x256xf32>
    %70 = arith.addf %64, %69 : vector<16x256xf32>
    %71 = arith.negf %70 : vector<16x256xf32>
    %72 = math.exp %71 : vector<16x256xf32>
    %cst_29 = arith.constant 1.000000e+00 : f32
    %73 = vector.broadcast %cst_29 : f32 to vector<16x256xf32>
    %74 = arith.addf %73, %72 : vector<16x256xf32>
    %75 = arith.divf %73, %74 : vector<16x256xf32>
    %76 = vector.extract_strided_slice %75 {offsets = [0, 64], sizes = [16, 64], strides = [1, 1]} : vector<16x256xf32> to vector<16x64xf32>
    %77 = arith.mulf %76, %58 : vector<16x64xf32>
    %78 = vector.extract_strided_slice %75 {offsets = [0, 0], sizes = [16, 64], strides = [1, 1]} : vector<16x256xf32> to vector<16x64xf32>
    %79 = vector.extract_strided_slice %75 {offsets = [0, 192], sizes = [16, 64], strides = [1, 1]} : vector<16x256xf32> to vector<16x64xf32>
    %cst_30 = arith.constant 2.000000e+00 : f32
    %80 = vector.broadcast %cst_30 : f32 to vector<16x64xf32>
    %81 = arith.mulf %80, %79 : vector<16x64xf32>
    %cst_31 = arith.constant 1.000000e+00 : f32
    %82 = vector.broadcast %cst_31 : f32 to vector<16x64xf32>
    %83 = arith.subf %81, %82 : vector<16x64xf32>
    %84 = arith.mulf %78, %83 : vector<16x64xf32>
    %85 = arith.addf %77, %84 : vector<16x64xf32>
    %86 = vector.extract_strided_slice %75 {offsets = [0, 128], sizes = [16, 64], strides = [1, 1]} : vector<16x256xf32> to vector<16x64xf32>
    %87 = math.tanh %85 : vector<16x64xf32>
    %88 = arith.mulf %86, %87 : vector<16x64xf32>
    %c24 = arith.constant 24 : index
    %c0_32 = arith.constant 0 : index
    %89 = vector.load %arg4[%c24, %c0_32] : memref<64x512xf32, #tpu.memory_space<vmem>>, vector<8x256xf32>
    %c32_33 = arith.constant 32 : index
    %c256_34 = arith.constant 256 : index
    %90 = vector.load %arg4[%c32_33, %c256_34] : memref<64x512xf32, #tpu.memory_space<vmem>>, vector<8x256xf32>
    %91 = tpu.concatenate %89, %90 in 0 : vector<8x256xf32>, vector<8x256xf32> -> vector<16x256xf32>
    %c32_35 = arith.constant 32 : index
    %c0_36 = arith.constant 0 : index
    %92 = vector.load %arg1[%c32_35, %c0_36] : memref<304x512xf32, #tpu.memory_space<vmem>>, vector<64x512xf32>
    %cst_37 = arith.constant dense<0.000000e+00> : vector<16x512xf32>
    %93 = tpu.matmul %88, %92, %cst_37 {dimension_numbers = #tpu.dot_dimension_numbers<[1], [0], [0], [1], [0, 0, 1, 1], [], []>} : vector<16x64xf32>, vector<64x512xf32>, vector<16x512xf32> -> vector<16x512xf32>
    %94 = vector.extract_strided_slice %93 {offsets = [0, 0], sizes = [8, 256], strides = [1, 1]} : vector<16x512xf32> to vector<8x256xf32>
    %95 = vector.extract_strided_slice %93 {offsets = [8, 256], sizes = [8, 256], strides = [1, 1]} : vector<16x512xf32> to vector<8x256xf32>
    %96 = tpu.concatenate %94, %95 in 0 : vector<8x256xf32>, vector<8x256xf32> -> vector<16x256xf32>
    %97 = arith.addf %91, %96 : vector<16x256xf32>
    %98 = arith.negf %97 : vector<16x256xf32>
    %99 = math.exp %98 : vector<16x256xf32>
    %cst_38 = arith.constant 1.000000e+00 : f32
    %100 = vector.broadcast %cst_38 : f32 to vector<16x256xf32>
    %101 = arith.addf %100, %99 : vector<16x256xf32>
    %102 = arith.divf %100, %101 : vector<16x256xf32>
    %103 = vector.extract_strided_slice %102 {offsets = [0, 64], sizes = [16, 64], strides = [1, 1]} : vector<16x256xf32> to vector<16x64xf32>
    %104 = arith.mulf %103, %85 : vector<16x64xf32>
    %105 = vector.extract_strided_slice %102 {offsets = [0, 0], sizes = [16, 64], strides = [1, 1]} : vector<16x256xf32> to vector<16x64xf32>
    %106 = vector.extract_strided_slice %102 {offsets = [0, 192], sizes = [16, 64], strides = [1, 1]} : vector<16x256xf32> to vector<16x64xf32>
    %cst_39 = arith.constant 2.000000e+00 : f32
    %107 = vector.broadcast %cst_39 : f32 to vector<16x64xf32>
    %108 = arith.mulf %107, %106 : vector<16x64xf32>
    %cst_40 = arith.constant 1.000000e+00 : f32
    %109 = vector.broadcast %cst_40 : f32 to vector<16x64xf32>
    %110 = arith.subf %108, %109 : vector<16x64xf32>
    %111 = arith.mulf %105, %110 : vector<16x64xf32>
    %112 = arith.addf %104, %111 : vector<16x64xf32>
    %113 = vector.extract_strided_slice %102 {offsets = [0, 128], sizes = [16, 64], strides = [1, 1]} : vector<16x256xf32> to vector<16x64xf32>
    %114 = math.tanh %112 : vector<16x64xf32>
    %115 = arith.mulf %113, %114 : vector<16x64xf32>
    %c32_41 = arith.constant 32 : index
    %c0_42 = arith.constant 0 : index
    %116 = vector.load %arg4[%c32_41, %c0_42] : memref<64x512xf32, #tpu.memory_space<vmem>>, vector<8x256xf32>
    %c24_43 = arith.constant 24 : index
    %c256_44 = arith.constant 256 : index
    %117 = vector.load %arg4[%c24_43, %c256_44] : memref<64x512xf32, #tpu.memory_space<vmem>>, vector<8x256xf32>
    %118 = tpu.concatenate %116, %117 in 0 : vector<8x256xf32>, vector<8x256xf32> -> vector<16x256xf32>
    %c32_45 = arith.constant 32 : index
    %c0_46 = arith.constant 0 : index
    %119 = vector.load %arg1[%c32_45, %c0_46] : memref<304x512xf32, #tpu.memory_space<vmem>>, vector<64x512xf32>
    %cst_47 = arith.constant dense<0.000000e+00> : vector<16x512xf32>
    %120 = tpu.matmul %115, %119, %cst_47 {dimension_numbers = #tpu.dot_dimension_numbers<[1], [0], [0], [1], [0, 0, 1, 1], [], []>} : vector<16x64xf32>, vector<64x512xf32>, vector<16x512xf32> -> vector<16x512xf32>
    %121 = vector.extract_strided_slice %120 {offsets = [0, 0], sizes = [8, 256], strides = [1, 1]} : vector<16x512xf32> to vector<8x256xf32>
    %122 = vector.extract_strided_slice %120 {offsets = [8, 256], sizes = [8, 256], strides = [1, 1]} : vector<16x512xf32> to vector<8x256xf32>
    %123 = tpu.concatenate %121, %122 in 0 : vector<8x256xf32>, vector<8x256xf32> -> vector<16x256xf32>
    %124 = arith.addf %118, %123 : vector<16x256xf32>
    %125 = arith.negf %124 : vector<16x256xf32>
    %126 = math.exp %125 : vector<16x256xf32>
    %cst_48 = arith.constant 1.000000e+00 : f32
    %127 = vector.broadcast %cst_48 : f32 to vector<16x256xf32>
    %128 = arith.addf %127, %126 : vector<16x256xf32>
    %129 = arith.divf %127, %128 : vector<16x256xf32>
    %130 = vector.extract_strided_slice %129 {offsets = [0, 64], sizes = [16, 64], strides = [1, 1]} : vector<16x256xf32> to vector<16x64xf32>
    %131 = arith.mulf %130, %112 : vector<16x64xf32>
    %132 = vector.extract_strided_slice %129 {offsets = [0, 0], sizes = [16, 64], strides = [1, 1]} : vector<16x256xf32> to vector<16x64xf32>
    %133 = vector.extract_strided_slice %129 {offsets = [0, 192], sizes = [16, 64], strides = [1, 1]} : vector<16x256xf32> to vector<16x64xf32>
    %cst_49 = arith.constant 2.000000e+00 : f32
    %134 = vector.broadcast %cst_49 : f32 to vector<16x64xf32>
    %135 = arith.mulf %134, %133 : vector<16x64xf32>
    %cst_50 = arith.constant 1.000000e+00 : f32
    %136 = vector.broadcast %cst_50 : f32 to vector<16x64xf32>
    %137 = arith.subf %135, %136 : vector<16x64xf32>
    %138 = arith.mulf %132, %137 : vector<16x64xf32>
    %139 = arith.addf %131, %138 : vector<16x64xf32>
    %140 = vector.extract_strided_slice %129 {offsets = [0, 128], sizes = [16, 64], strides = [1, 1]} : vector<16x256xf32> to vector<16x64xf32>
    %141 = math.tanh %139 : vector<16x64xf32>
    %142 = arith.mulf %140, %141 : vector<16x64xf32>
    %c40_51 = arith.constant 40 : index
    %c0_52 = arith.constant 0 : index
    %143 = vector.load %arg4[%c40_51, %c0_52] : memref<64x512xf32, #tpu.memory_space<vmem>>, vector<8x256xf32>
    %c16_53 = arith.constant 16 : index
    %c256_54 = arith.constant 256 : index
    %144 = vector.load %arg4[%c16_53, %c256_54] : memref<64x512xf32, #tpu.memory_space<vmem>>, vector<8x256xf32>
    %145 = tpu.concatenate %143, %144 in 0 : vector<8x256xf32>, vector<8x256xf32> -> vector<16x256xf32>
    %c32_55 = arith.constant 32 : index
    %c0_56 = arith.constant 0 : index
    %146 = vector.load %arg1[%c32_55, %c0_56] : memref<304x512xf32, #tpu.memory_space<vmem>>, vector<64x512xf32>
    %cst_57 = arith.constant dense<0.000000e+00> : vector<16x512xf32>
    %147 = tpu.matmul %142, %146, %cst_57 {dimension_numbers = #tpu.dot_dimension_numbers<[1], [0], [0], [1], [0, 0, 1, 1], [], []>} : vector<16x64xf32>, vector<64x512xf32>, vector<16x512xf32> -> vector<16x512xf32>
    %148 = vector.extract_strided_slice %147 {offsets = [0, 0], sizes = [8, 256], strides = [1, 1]} : vector<16x512xf32> to vector<8x256xf32>
    %149 = vector.extract_strided_slice %147 {offsets = [8, 256], sizes = [8, 256], strides = [1, 1]} : vector<16x512xf32> to vector<8x256xf32>
    %150 = tpu.concatenate %148, %149 in 0 : vector<8x256xf32>, vector<8x256xf32> -> vector<16x256xf32>
    %151 = arith.addf %145, %150 : vector<16x256xf32>
    %152 = arith.negf %151 : vector<16x256xf32>
    %153 = math.exp %152 : vector<16x256xf32>
    %cst_58 = arith.constant 1.000000e+00 : f32
    %154 = vector.broadcast %cst_58 : f32 to vector<16x256xf32>
    %155 = arith.addf %154, %153 : vector<16x256xf32>
    %156 = arith.divf %154, %155 : vector<16x256xf32>
    %157 = vector.extract_strided_slice %156 {offsets = [0, 64], sizes = [16, 64], strides = [1, 1]} : vector<16x256xf32> to vector<16x64xf32>
    %158 = arith.mulf %157, %139 : vector<16x64xf32>
    %159 = vector.extract_strided_slice %156 {offsets = [0, 0], sizes = [16, 64], strides = [1, 1]} : vector<16x256xf32> to vector<16x64xf32>
    %160 = vector.extract_strided_slice %156 {offsets = [0, 192], sizes = [16, 64], strides = [1, 1]} : vector<16x256xf32> to vector<16x64xf32>
    %cst_59 = arith.constant 2.000000e+00 : f32
    %161 = vector.broadcast %cst_59 : f32 to vector<16x64xf32>
    %162 = arith.mulf %161, %160 : vector<16x64xf32>
    %cst_60 = arith.constant 1.000000e+00 : f32
    %163 = vector.broadcast %cst_60 : f32 to vector<16x64xf32>
    %164 = arith.subf %162, %163 : vector<16x64xf32>
    %165 = arith.mulf %159, %164 : vector<16x64xf32>
    %166 = arith.addf %158, %165 : vector<16x64xf32>
    %167 = vector.extract_strided_slice %156 {offsets = [0, 128], sizes = [16, 64], strides = [1, 1]} : vector<16x256xf32> to vector<16x64xf32>
    %168 = math.tanh %166 : vector<16x64xf32>
    %169 = arith.mulf %167, %168 : vector<16x64xf32>
    %c48_61 = arith.constant 48 : index
    %c0_62 = arith.constant 0 : index
    %170 = vector.load %arg4[%c48_61, %c0_62] : memref<64x512xf32, #tpu.memory_space<vmem>>, vector<8x256xf32>
    %c8_63 = arith.constant 8 : index
    %c256_64 = arith.constant 256 : index
    %171 = vector.load %arg4[%c8_63, %c256_64] : memref<64x512xf32, #tpu.memory_space<vmem>>, vector<8x256xf32>
    %172 = tpu.concatenate %170, %171 in 0 : vector<8x256xf32>, vector<8x256xf32> -> vector<16x256xf32>
    %c32_65 = arith.constant 32 : index
    %c0_66 = arith.constant 0 : index
    %173 = vector.load %arg1[%c32_65, %c0_66] : memref<304x512xf32, #tpu.memory_space<vmem>>, vector<64x512xf32>
    %cst_67 = arith.constant dense<0.000000e+00> : vector<16x512xf32>
    %174 = tpu.matmul %169, %173, %cst_67 {dimension_numbers = #tpu.dot_dimension_numbers<[1], [0], [0], [1], [0, 0, 1, 1], [], []>} : vector<16x64xf32>, vector<64x512xf32>, vector<16x512xf32> -> vector<16x512xf32>
    %175 = vector.extract_strided_slice %174 {offsets = [0, 0], sizes = [8, 256], strides = [1, 1]} : vector<16x512xf32> to vector<8x256xf32>
    %176 = vector.extract_strided_slice %174 {offsets = [8, 256], sizes = [8, 256], strides = [1, 1]} : vector<16x512xf32> to vector<8x256xf32>
    %177 = tpu.concatenate %175, %176 in 0 : vector<8x256xf32>, vector<8x256xf32> -> vector<16x256xf32>
    %178 = arith.addf %172, %177 : vector<16x256xf32>
    %179 = arith.negf %178 : vector<16x256xf32>
    %180 = math.exp %179 : vector<16x256xf32>
    %cst_68 = arith.constant 1.000000e+00 : f32
    %181 = vector.broadcast %cst_68 : f32 to vector<16x256xf32>
    %182 = arith.addf %181, %180 : vector<16x256xf32>
    %183 = arith.divf %181, %182 : vector<16x256xf32>
    %184 = vector.extract_strided_slice %183 {offsets = [0, 64], sizes = [16, 64], strides = [1, 1]} : vector<16x256xf32> to vector<16x64xf32>
    %185 = arith.mulf %184, %166 : vector<16x64xf32>
    %186 = vector.extract_strided_slice %183 {offsets = [0, 0], sizes = [16, 64], strides = [1, 1]} : vector<16x256xf32> to vector<16x64xf32>
    %187 = vector.extract_strided_slice %183 {offsets = [0, 192], sizes = [16, 64], strides = [1, 1]} : vector<16x256xf32> to vector<16x64xf32>
    %cst_69 = arith.constant 2.000000e+00 : f32
    %188 = vector.broadcast %cst_69 : f32 to vector<16x64xf32>
    %189 = arith.mulf %188, %187 : vector<16x64xf32>
    %cst_70 = arith.constant 1.000000e+00 : f32
    %190 = vector.broadcast %cst_70 : f32 to vector<16x64xf32>
    %191 = arith.subf %189, %190 : vector<16x64xf32>
    %192 = arith.mulf %186, %191 : vector<16x64xf32>
    %193 = arith.addf %185, %192 : vector<16x64xf32>
    %194 = vector.extract_strided_slice %183 {offsets = [0, 128], sizes = [16, 64], strides = [1, 1]} : vector<16x256xf32> to vector<16x64xf32>
    %195 = math.tanh %193 : vector<16x64xf32>
    %196 = arith.mulf %194, %195 : vector<16x64xf32>
    %c56_71 = arith.constant 56 : index
    %c0_72 = arith.constant 0 : index
    %197 = vector.load %arg4[%c56_71, %c0_72] : memref<64x512xf32, #tpu.memory_space<vmem>>, vector<8x256xf32>
    %c0_73 = arith.constant 0 : index
    %c256_74 = arith.constant 256 : index
    %198 = vector.load %arg4[%c0_73, %c256_74] : memref<64x512xf32, #tpu.memory_space<vmem>>, vector<8x256xf32>
    %199 = tpu.concatenate %197, %198 in 0 : vector<8x256xf32>, vector<8x256xf32> -> vector<16x256xf32>
    %c32_75 = arith.constant 32 : index
    %c0_76 = arith.constant 0 : index
    %200 = vector.load %arg1[%c32_75, %c0_76] : memref<304x512xf32, #tpu.memory_space<vmem>>, vector<64x512xf32>
    %cst_77 = arith.constant dense<0.000000e+00> : vector<16x512xf32>
    %201 = tpu.matmul %196, %200, %cst_77 {dimension_numbers = #tpu.dot_dimension_numbers<[1], [0], [0], [1], [0, 0, 1, 1], [], []>} : vector<16x64xf32>, vector<64x512xf32>, vector<16x512xf32> -> vector<16x512xf32>
    %202 = vector.extract_strided_slice %201 {offsets = [0, 0], sizes = [8, 256], strides = [1, 1]} : vector<16x512xf32> to vector<8x256xf32>
    %203 = vector.extract_strided_slice %201 {offsets = [8, 256], sizes = [8, 256], strides = [1, 1]} : vector<16x512xf32> to vector<8x256xf32>
    %204 = tpu.concatenate %202, %203 in 0 : vector<8x256xf32>, vector<8x256xf32> -> vector<16x256xf32>
    %205 = arith.addf %199, %204 : vector<16x256xf32>
    %206 = arith.negf %205 : vector<16x256xf32>
    %207 = math.exp %206 : vector<16x256xf32>
    %cst_78 = arith.constant 1.000000e+00 : f32
    %208 = vector.broadcast %cst_78 : f32 to vector<16x256xf32>
    %209 = arith.addf %208, %207 : vector<16x256xf32>
    %210 = arith.divf %208, %209 : vector<16x256xf32>
    %211 = vector.extract_strided_slice %210 {offsets = [0, 64], sizes = [16, 64], strides = [1, 1]} : vector<16x256xf32> to vector<16x64xf32>
    %212 = arith.mulf %211, %193 : vector<16x64xf32>
    %213 = vector.extract_strided_slice %210 {offsets = [0, 0], sizes = [16, 64], strides = [1, 1]} : vector<16x256xf32> to vector<16x64xf32>
    %214 = vector.extract_strided_slice %210 {offsets = [0, 192], sizes = [16, 64], strides = [1, 1]} : vector<16x256xf32> to vector<16x64xf32>
    %cst_79 = arith.constant 2.000000e+00 : f32
    %215 = vector.broadcast %cst_79 : f32 to vector<16x64xf32>
    %216 = arith.mulf %215, %214 : vector<16x64xf32>
    %cst_80 = arith.constant 1.000000e+00 : f32
    %217 = vector.broadcast %cst_80 : f32 to vector<16x64xf32>
    %218 = arith.subf %216, %217 : vector<16x64xf32>
    %219 = arith.mulf %213, %218 : vector<16x64xf32>
    %220 = arith.addf %212, %219 : vector<16x64xf32>
    %221 = vector.extract_strided_slice %210 {offsets = [0, 128], sizes = [16, 64], strides = [1, 1]} : vector<16x256xf32> to vector<16x64xf32>
    %222 = math.tanh %220 : vector<16x64xf32>
    %223 = arith.mulf %221, %222 : vector<16x64xf32>
    %224 = vector.extract_strided_slice %34 {offsets = [0, 0], sizes = [8, 64], strides = [1, 1]} : vector<16x64xf32> to vector<8x64xf32>
    %225 = vector.extract_strided_slice %61 {offsets = [0, 0], sizes = [8, 64], strides = [1, 1]} : vector<16x64xf32> to vector<8x64xf32>
    %226 = vector.extract_strided_slice %88 {offsets = [0, 0], sizes = [8, 64], strides = [1, 1]} : vector<16x64xf32> to vector<8x64xf32>
    %227 = vector.extract_strided_slice %115 {offsets = [0, 0], sizes = [8, 64], strides = [1, 1]} : vector<16x64xf32> to vector<8x64xf32>
    %228 = vector.extract_strided_slice %142 {offsets = [0, 0], sizes = [8, 64], strides = [1, 1]} : vector<16x64xf32> to vector<8x64xf32>
    %229 = vector.extract_strided_slice %169 {offsets = [0, 0], sizes = [8, 64], strides = [1, 1]} : vector<16x64xf32> to vector<8x64xf32>
    %230 = vector.extract_strided_slice %196 {offsets = [0, 0], sizes = [8, 64], strides = [1, 1]} : vector<16x64xf32> to vector<8x64xf32>
    %231 = vector.extract_strided_slice %223 {offsets = [0, 0], sizes = [8, 64], strides = [1, 1]} : vector<16x64xf32> to vector<8x64xf32>
    %232 = tpu.concatenate %224, %225, %226, %227, %228, %229, %230, %231 in 0 : vector<8x64xf32>, vector<8x64xf32>, vector<8x64xf32>, vector<8x64xf32>, vector<8x64xf32>, vector<8x64xf32>, vector<8x64xf32>, vector<8x64xf32> -> vector<64x64xf32>
    %233 = vector.extract_strided_slice %223 {offsets = [8, 0], sizes = [8, 64], strides = [1, 1]} : vector<16x64xf32> to vector<8x64xf32>
    %234 = vector.extract_strided_slice %196 {offsets = [8, 0], sizes = [8, 64], strides = [1, 1]} : vector<16x64xf32> to vector<8x64xf32>
    %235 = vector.extract_strided_slice %169 {offsets = [8, 0], sizes = [8, 64], strides = [1, 1]} : vector<16x64xf32> to vector<8x64xf32>
    %236 = vector.extract_strided_slice %142 {offsets = [8, 0], sizes = [8, 64], strides = [1, 1]} : vector<16x64xf32> to vector<8x64xf32>
    %237 = vector.extract_strided_slice %115 {offsets = [8, 0], sizes = [8, 64], strides = [1, 1]} : vector<16x64xf32> to vector<8x64xf32>
    %238 = vector.extract_strided_slice %88 {offsets = [8, 0], sizes = [8, 64], strides = [1, 1]} : vector<16x64xf32> to vector<8x64xf32>
    %239 = vector.extract_strided_slice %61 {offsets = [8, 0], sizes = [8, 64], strides = [1, 1]} : vector<16x64xf32> to vector<8x64xf32>
    %240 = vector.extract_strided_slice %34 {offsets = [8, 0], sizes = [8, 64], strides = [1, 1]} : vector<16x64xf32> to vector<8x64xf32>
    %241 = tpu.concatenate %233, %234, %235, %236, %237, %238, %239, %240 in 0 : vector<8x64xf32>, vector<8x64xf32>, vector<8x64xf32>, vector<8x64xf32>, vector<8x64xf32>, vector<8x64xf32>, vector<8x64xf32>, vector<8x64xf32> -> vector<64x64xf32>
    %242 = tpu.concatenate %232, %241 in 1 : vector<64x64xf32>, vector<64x64xf32> -> vector<64x128xf32>
    %c104 = arith.constant 104 : index
    %c0_81 = arith.constant 0 : index
    %243 = vector.load %arg1[%c104, %c0_81] : memref<304x512xf32, #tpu.memory_space<vmem>>, vector<128x512xf32>
    %c296 = arith.constant 296 : index
    %c0_82 = arith.constant 0 : index
    %244 = vector.load %arg1[%c296, %c0_82] : memref<304x512xf32, #tpu.memory_space<vmem>>, vector<1x512xf32>
    %cst_83 = arith.constant dense<0.000000e+00> : vector<64x512xf32>
    %245 = tpu.matmul %242, %243, %cst_83 {dimension_numbers = #tpu.dot_dimension_numbers<[1], [0], [0], [1], [0, 0, 1, 1], [], []>} : vector<64x128xf32>, vector<128x512xf32>, vector<64x512xf32> -> vector<64x512xf32>
    %246 = vector.broadcast %244 : vector<1x512xf32> to vector<64x512xf32>
    %247 = arith.addf %245, %246 : vector<64x512xf32>
    %c0_84 = arith.constant 0 : index
    %c0_85 = arith.constant 0 : index
    %248 = vector.load %arg4[%c0_84, %c0_85] : memref<64x512xf32, #tpu.memory_space<vmem>>, vector<64x512xf32>
    tpu.vector_store %arg4[%c0_84, %c0_85], %247 {strides = array<i32>} : memref<64x512xf32, #tpu.memory_space<vmem>>, vector<64x512xf32>,
    %cst_86 = arith.constant 0.000000e+00 : f32
    %249 = vector.broadcast %cst_86 : f32 to vector<16x64xf32>
    %c0_87 = arith.constant 0 : index
    %c0_88 = arith.constant 0 : index
    %250 = vector.load %arg4[%c0_87, %c0_88] : memref<64x512xf32, #tpu.memory_space<vmem>>, vector<8x256xf32>
    %c56_89 = arith.constant 56 : index
    %c256_90 = arith.constant 256 : index
    %251 = vector.load %arg4[%c56_89, %c256_90] : memref<64x512xf32, #tpu.memory_space<vmem>>, vector<8x256xf32>
    %252 = tpu.concatenate %250, %251 in 0 : vector<8x256xf32>, vector<8x256xf32> -> vector<16x256xf32>
    %253 = arith.negf %252 : vector<16x256xf32>
    %254 = math.exp %253 : vector<16x256xf32>
    %cst_91 = arith.constant 1.000000e+00 : f32
    %255 = vector.broadcast %cst_91 : f32 to vector<16x256xf32>
    %256 = arith.addf %255, %254 : vector<16x256xf32>
    %257 = arith.divf %255, %256 : vector<16x256xf32>
    %258 = vector.extract_strided_slice %257 {offsets = [0, 64], sizes = [16, 64], strides = [1, 1]} : vector<16x256xf32> to vector<16x64xf32>
    %259 = arith.mulf %258, %249 : vector<16x64xf32>
    %260 = vector.extract_strided_slice %257 {offsets = [0, 0], sizes = [16, 64], strides = [1, 1]} : vector<16x256xf32> to vector<16x64xf32>
    %261 = vector.extract_strided_slice %257 {offsets = [0, 192], sizes = [16, 64], strides = [1, 1]} : vector<16x256xf32> to vector<16x64xf32>
    %cst_92 = arith.constant 2.000000e+00 : f32
    %262 = vector.broadcast %cst_92 : f32 to vector<16x64xf32>
    %263 = arith.mulf %262, %261 : vector<16x64xf32>
    %cst_93 = arith.constant 1.000000e+00 : f32
    %264 = vector.broadcast %cst_93 : f32 to vector<16x64xf32>
    %265 = arith.subf %263, %264 : vector<16x64xf32>
    %266 = arith.mulf %260, %265 : vector<16x64xf32>
    %267 = arith.addf %259, %266 : vector<16x64xf32>
    %268 = vector.extract_strided_slice %257 {offsets = [0, 128], sizes = [16, 64], strides = [1, 1]} : vector<16x256xf32> to vector<16x64xf32>
    %269 = math.tanh %267 : vector<16x64xf32>
    %270 = arith.mulf %268, %269 : vector<16x64xf32>
    %c8_94 = arith.constant 8 : index
    %c0_95 = arith.constant 0 : index
    %271 = vector.load %arg4[%c8_94, %c0_95] : memref<64x512xf32, #tpu.memory_space<vmem>>, vector<8x256xf32>
    %c48_96 = arith.constant 48 : index
    %c256_97 = arith.constant 256 : index
    %272 = vector.load %arg4[%c48_96, %c256_97] : memref<64x512xf32, #tpu.memory_space<vmem>>, vector<8x256xf32>
    %273 = tpu.concatenate %271, %272 in 0 : vector<8x256xf32>, vector<8x256xf32> -> vector<16x256xf32>
    %c232 = arith.constant 232 : index
    %c0_98 = arith.constant 0 : index
    %274 = vector.load %arg1[%c232, %c0_98] : memref<304x512xf32, #tpu.memory_space<vmem>>, vector<64x512xf32>
    %cst_99 = arith.constant dense<0.000000e+00> : vector<16x512xf32>
    %275 = tpu.matmul %270, %274, %cst_99 {dimension_numbers = #tpu.dot_dimension_numbers<[1], [0], [0], [1], [0, 0, 1, 1], [], []>} : vector<16x64xf32>, vector<64x512xf32>, vector<16x512xf32> -> vector<16x512xf32>
    %276 = vector.extract_strided_slice %275 {offsets = [0, 0], sizes = [8, 256], strides = [1, 1]} : vector<16x512xf32> to vector<8x256xf32>
    %277 = vector.extract_strided_slice %275 {offsets = [8, 256], sizes = [8, 256], strides = [1, 1]} : vector<16x512xf32> to vector<8x256xf32>
    %278 = tpu.concatenate %276, %277 in 0 : vector<8x256xf32>, vector<8x256xf32> -> vector<16x256xf32>
    %279 = arith.addf %273, %278 : vector<16x256xf32>
    %280 = arith.negf %279 : vector<16x256xf32>
    %281 = math.exp %280 : vector<16x256xf32>
    %cst_100 = arith.constant 1.000000e+00 : f32
    %282 = vector.broadcast %cst_100 : f32 to vector<16x256xf32>
    %283 = arith.addf %282, %281 : vector<16x256xf32>
    %284 = arith.divf %282, %283 : vector<16x256xf32>
    %285 = vector.extract_strided_slice %284 {offsets = [0, 64], sizes = [16, 64], strides = [1, 1]} : vector<16x256xf32> to vector<16x64xf32>
    %286 = arith.mulf %285, %267 : vector<16x64xf32>
    %287 = vector.extract_strided_slice %284 {offsets = [0, 0], sizes = [16, 64], strides = [1, 1]} : vector<16x256xf32> to vector<16x64xf32>
    %288 = vector.extract_strided_slice %284 {offsets = [0, 192], sizes = [16, 64], strides = [1, 1]} : vector<16x256xf32> to vector<16x64xf32>
    %cst_101 = arith.constant 2.000000e+00 : f32
    %289 = vector.broadcast %cst_101 : f32 to vector<16x64xf32>
    %290 = arith.mulf %289, %288 : vector<16x64xf32>
    %cst_102 = arith.constant 1.000000e+00 : f32
    %291 = vector.broadcast %cst_102 : f32 to vector<16x64xf32>
    %292 = arith.subf %290, %291 : vector<16x64xf32>
    %293 = arith.mulf %287, %292 : vector<16x64xf32>
    %294 = arith.addf %286, %293 : vector<16x64xf32>
    %295 = vector.extract_strided_slice %284 {offsets = [0, 128], sizes = [16, 64], strides = [1, 1]} : vector<16x256xf32> to vector<16x64xf32>
    %296 = math.tanh %294 : vector<16x64xf32>
    %297 = arith.mulf %295, %296 : vector<16x64xf32>
    %c16_103 = arith.constant 16 : index
    %c0_104 = arith.constant 0 : index
    %298 = vector.load %arg4[%c16_103, %c0_104] : memref<64x512xf32, #tpu.memory_space<vmem>>, vector<8x256xf32>
    %c40_105 = arith.constant 40 : index
    %c256_106 = arith.constant 256 : index
    %299 = vector.load %arg4[%c40_105, %c256_106] : memref<64x512xf32, #tpu.memory_space<vmem>>, vector<8x256xf32>
    %300 = tpu.concatenate %298, %299 in 0 : vector<8x256xf32>, vector<8x256xf32> -> vector<16x256xf32>
    %c232_107 = arith.constant 232 : index
    %c0_108 = arith.constant 0 : index
    %301 = vector.load %arg1[%c232_107, %c0_108] : memref<304x512xf32, #tpu.memory_space<vmem>>, vector<64x512xf32>
    %cst_109 = arith.constant dense<0.000000e+00> : vector<16x512xf32>
    %302 = tpu.matmul %297, %301, %cst_109 {dimension_numbers = #tpu.dot_dimension_numbers<[1], [0], [0], [1], [0, 0, 1, 1], [], []>} : vector<16x64xf32>, vector<64x512xf32>, vector<16x512xf32> -> vector<16x512xf32>
    %303 = vector.extract_strided_slice %302 {offsets = [0, 0], sizes = [8, 256], strides = [1, 1]} : vector<16x512xf32> to vector<8x256xf32>
    %304 = vector.extract_strided_slice %302 {offsets = [8, 256], sizes = [8, 256], strides = [1, 1]} : vector<16x512xf32> to vector<8x256xf32>
    %305 = tpu.concatenate %303, %304 in 0 : vector<8x256xf32>, vector<8x256xf32> -> vector<16x256xf32>
    %306 = arith.addf %300, %305 : vector<16x256xf32>
    %307 = arith.negf %306 : vector<16x256xf32>
    %308 = math.exp %307 : vector<16x256xf32>
    %cst_110 = arith.constant 1.000000e+00 : f32
    %309 = vector.broadcast %cst_110 : f32 to vector<16x256xf32>
    %310 = arith.addf %309, %308 : vector<16x256xf32>
    %311 = arith.divf %309, %310 : vector<16x256xf32>
    %312 = vector.extract_strided_slice %311 {offsets = [0, 64], sizes = [16, 64], strides = [1, 1]} : vector<16x256xf32> to vector<16x64xf32>
    %313 = arith.mulf %312, %294 : vector<16x64xf32>
    %314 = vector.extract_strided_slice %311 {offsets = [0, 0], sizes = [16, 64], strides = [1, 1]} : vector<16x256xf32> to vector<16x64xf32>
    %315 = vector.extract_strided_slice %311 {offsets = [0, 192], sizes = [16, 64], strides = [1, 1]} : vector<16x256xf32> to vector<16x64xf32>
    %cst_111 = arith.constant 2.000000e+00 : f32
    %316 = vector.broadcast %cst_111 : f32 to vector<16x64xf32>
    %317 = arith.mulf %316, %315 : vector<16x64xf32>
    %cst_112 = arith.constant 1.000000e+00 : f32
    %318 = vector.broadcast %cst_112 : f32 to vector<16x64xf32>
    %319 = arith.subf %317, %318 : vector<16x64xf32>
    %320 = arith.mulf %314, %319 : vector<16x64xf32>
    %321 = arith.addf %313, %320 : vector<16x64xf32>
    %322 = vector.extract_strided_slice %311 {offsets = [0, 128], sizes = [16, 64], strides = [1, 1]} : vector<16x256xf32> to vector<16x64xf32>
    %323 = math.tanh %321 : vector<16x64xf32>
    %324 = arith.mulf %322, %323 : vector<16x64xf32>
    %c24_113 = arith.constant 24 : index
    %c0_114 = arith.constant 0 : index
    %325 = vector.load %arg4[%c24_113, %c0_114] : memref<64x512xf32, #tpu.memory_space<vmem>>, vector<8x256xf32>
    %c32_115 = arith.constant 32 : index
    %c256_116 = arith.constant 256 : index
    %326 = vector.load %arg4[%c32_115, %c256_116] : memref<64x512xf32, #tpu.memory_space<vmem>>, vector<8x256xf32>
    %327 = tpu.concatenate %325, %326 in 0 : vector<8x256xf32>, vector<8x256xf32> -> vector<16x256xf32>
    %c232_117 = arith.constant 232 : index
    %c0_118 = arith.constant 0 : index
    %328 = vector.load %arg1[%c232_117, %c0_118] : memref<304x512xf32, #tpu.memory_space<vmem>>, vector<64x512xf32>
    %cst_119 = arith.constant dense<0.000000e+00> : vector<16x512xf32>
    %329 = tpu.matmul %324, %328, %cst_119 {dimension_numbers = #tpu.dot_dimension_numbers<[1], [0], [0], [1], [0, 0, 1, 1], [], []>} : vector<16x64xf32>, vector<64x512xf32>, vector<16x512xf32> -> vector<16x512xf32>
    %330 = vector.extract_strided_slice %329 {offsets = [0, 0], sizes = [8, 256], strides = [1, 1]} : vector<16x512xf32> to vector<8x256xf32>
    %331 = vector.extract_strided_slice %329 {offsets = [8, 256], sizes = [8, 256], strides = [1, 1]} : vector<16x512xf32> to vector<8x256xf32>
    %332 = tpu.concatenate %330, %331 in 0 : vector<8x256xf32>, vector<8x256xf32> -> vector<16x256xf32>
    %333 = arith.addf %327, %332 : vector<16x256xf32>
    %334 = arith.negf %333 : vector<16x256xf32>
    %335 = math.exp %334 : vector<16x256xf32>
    %cst_120 = arith.constant 1.000000e+00 : f32
    %336 = vector.broadcast %cst_120 : f32 to vector<16x256xf32>
    %337 = arith.addf %336, %335 : vector<16x256xf32>
    %338 = arith.divf %336, %337 : vector<16x256xf32>
    %339 = vector.extract_strided_slice %338 {offsets = [0, 64], sizes = [16, 64], strides = [1, 1]} : vector<16x256xf32> to vector<16x64xf32>
    %340 = arith.mulf %339, %321 : vector<16x64xf32>
    %341 = vector.extract_strided_slice %338 {offsets = [0, 0], sizes = [16, 64], strides = [1, 1]} : vector<16x256xf32> to vector<16x64xf32>
    %342 = vector.extract_strided_slice %338 {offsets = [0, 192], sizes = [16, 64], strides = [1, 1]} : vector<16x256xf32> to vector<16x64xf32>
    %cst_121 = arith.constant 2.000000e+00 : f32
    %343 = vector.broadcast %cst_121 : f32 to vector<16x64xf32>
    %344 = arith.mulf %343, %342 : vector<16x64xf32>
    %cst_122 = arith.constant 1.000000e+00 : f32
    %345 = vector.broadcast %cst_122 : f32 to vector<16x64xf32>
    %346 = arith.subf %344, %345 : vector<16x64xf32>
    %347 = arith.mulf %341, %346 : vector<16x64xf32>
    %348 = arith.addf %340, %347 : vector<16x64xf32>
    %349 = vector.extract_strided_slice %338 {offsets = [0, 128], sizes = [16, 64], strides = [1, 1]} : vector<16x256xf32> to vector<16x64xf32>
    %350 = math.tanh %348 : vector<16x64xf32>
    %351 = arith.mulf %349, %350 : vector<16x64xf32>
    %c32_123 = arith.constant 32 : index
    %c0_124 = arith.constant 0 : index
    %352 = vector.load %arg4[%c32_123, %c0_124] : memref<64x512xf32, #tpu.memory_space<vmem>>, vector<8x256xf32>
    %c24_125 = arith.constant 24 : index
    %c256_126 = arith.constant 256 : index
    %353 = vector.load %arg4[%c24_125, %c256_126] : memref<64x512xf32, #tpu.memory_space<vmem>>, vector<8x256xf32>
    %354 = tpu.concatenate %352, %353 in 0 : vector<8x256xf32>, vector<8x256xf32> -> vector<16x256xf32>
    %c232_127 = arith.constant 232 : index
    %c0_128 = arith.constant 0 : index
    %355 = vector.load %arg1[%c232_127, %c0_128] : memref<304x512xf32, #tpu.memory_space<vmem>>, vector<64x512xf32>
    %cst_129 = arith.constant dense<0.000000e+00> : vector<16x512xf32>
    %356 = tpu.matmul %351, %355, %cst_129 {dimension_numbers = #tpu.dot_dimension_numbers<[1], [0], [0], [1], [0, 0, 1, 1], [], []>} : vector<16x64xf32>, vector<64x512xf32>, vector<16x512xf32> -> vector<16x512xf32>
    %357 = vector.extract_strided_slice %356 {offsets = [0, 0], sizes = [8, 256], strides = [1, 1]} : vector<16x512xf32> to vector<8x256xf32>
    %358 = vector.extract_strided_slice %356 {offsets = [8, 256], sizes = [8, 256], strides = [1, 1]} : vector<16x512xf32> to vector<8x256xf32>
    %359 = tpu.concatenate %357, %358 in 0 : vector<8x256xf32>, vector<8x256xf32> -> vector<16x256xf32>
    %360 = arith.addf %354, %359 : vector<16x256xf32>
    %361 = arith.negf %360 : vector<16x256xf32>
    %362 = math.exp %361 : vector<16x256xf32>
    %cst_130 = arith.constant 1.000000e+00 : f32
    %363 = vector.broadcast %cst_130 : f32 to vector<16x256xf32>
    %364 = arith.addf %363, %362 : vector<16x256xf32>
    %365 = arith.divf %363, %364 : vector<16x256xf32>
    %366 = vector.extract_strided_slice %365 {offsets = [0, 64], sizes = [16, 64], strides = [1, 1]} : vector<16x256xf32> to vector<16x64xf32>
    %367 = arith.mulf %366, %348 : vector<16x64xf32>
    %368 = vector.extract_strided_slice %365 {offsets = [0, 0], sizes = [16, 64], strides = [1, 1]} : vector<16x256xf32> to vector<16x64xf32>
    %369 = vector.extract_strided_slice %365 {offsets = [0, 192], sizes = [16, 64], strides = [1, 1]} : vector<16x256xf32> to vector<16x64xf32>
    %cst_131 = arith.constant 2.000000e+00 : f32
    %370 = vector.broadcast %cst_131 : f32 to vector<16x64xf32>
    %371 = arith.mulf %370, %369 : vector<16x64xf32>
    %cst_132 = arith.constant 1.000000e+00 : f32
    %372 = vector.broadcast %cst_132 : f32 to vector<16x64xf32>
    %373 = arith.subf %371, %372 : vector<16x64xf32>
    %374 = arith.mulf %368, %373 : vector<16x64xf32>
    %375 = arith.addf %367, %374 : vector<16x64xf32>
    %376 = vector.extract_strided_slice %365 {offsets = [0, 128], sizes = [16, 64], strides = [1, 1]} : vector<16x256xf32> to vector<16x64xf32>
    %377 = math.tanh %375 : vector<16x64xf32>
    %378 = arith.mulf %376, %377 : vector<16x64xf32>
    %c40_133 = arith.constant 40 : index
    %c0_134 = arith.constant 0 : index
    %379 = vector.load %arg4[%c40_133, %c0_134] : memref<64x512xf32, #tpu.memory_space<vmem>>, vector<8x256xf32>
    %c16_135 = arith.constant 16 : index
    %c256_136 = arith.constant 256 : index
    %380 = vector.load %arg4[%c16_135, %c256_136] : memref<64x512xf32, #tpu.memory_space<vmem>>, vector<8x256xf32>
    %381 = tpu.concatenate %379, %380 in 0 : vector<8x256xf32>, vector<8x256xf32> -> vector<16x256xf32>
    %c232_137 = arith.constant 232 : index
    %c0_138 = arith.constant 0 : index
    %382 = vector.load %arg1[%c232_137, %c0_138] : memref<304x512xf32, #tpu.memory_space<vmem>>, vector<64x512xf32>
    %cst_139 = arith.constant dense<0.000000e+00> : vector<16x512xf32>
    %383 = tpu.matmul %378, %382, %cst_139 {dimension_numbers = #tpu.dot_dimension_numbers<[1], [0], [0], [1], [0, 0, 1, 1], [], []>} : vector<16x64xf32>, vector<64x512xf32>, vector<16x512xf32> -> vector<16x512xf32>
    %384 = vector.extract_strided_slice %383 {offsets = [0, 0], sizes = [8, 256], strides = [1, 1]} : vector<16x512xf32> to vector<8x256xf32>
    %385 = vector.extract_strided_slice %383 {offsets = [8, 256], sizes = [8, 256], strides = [1, 1]} : vector<16x512xf32> to vector<8x256xf32>
    %386 = tpu.concatenate %384, %385 in 0 : vector<8x256xf32>, vector<8x256xf32> -> vector<16x256xf32>
    %387 = arith.addf %381, %386 : vector<16x256xf32>
    %388 = arith.negf %387 : vector<16x256xf32>
    %389 = math.exp %388 : vector<16x256xf32>
    %cst_140 = arith.constant 1.000000e+00 : f32
    %390 = vector.broadcast %cst_140 : f32 to vector<16x256xf32>
    %391 = arith.addf %390, %389 : vector<16x256xf32>
    %392 = arith.divf %390, %391 : vector<16x256xf32>
    %393 = vector.extract_strided_slice %392 {offsets = [0, 64], sizes = [16, 64], strides = [1, 1]} : vector<16x256xf32> to vector<16x64xf32>
    %394 = arith.mulf %393, %375 : vector<16x64xf32>
    %395 = vector.extract_strided_slice %392 {offsets = [0, 0], sizes = [16, 64], strides = [1, 1]} : vector<16x256xf32> to vector<16x64xf32>
    %396 = vector.extract_strided_slice %392 {offsets = [0, 192], sizes = [16, 64], strides = [1, 1]} : vector<16x256xf32> to vector<16x64xf32>
    %cst_141 = arith.constant 2.000000e+00 : f32
    %397 = vector.broadcast %cst_141 : f32 to vector<16x64xf32>
    %398 = arith.mulf %397, %396 : vector<16x64xf32>
    %cst_142 = arith.constant 1.000000e+00 : f32
    %399 = vector.broadcast %cst_142 : f32 to vector<16x64xf32>
    %400 = arith.subf %398, %399 : vector<16x64xf32>
    %401 = arith.mulf %395, %400 : vector<16x64xf32>
    %402 = arith.addf %394, %401 : vector<16x64xf32>
    %403 = vector.extract_strided_slice %392 {offsets = [0, 128], sizes = [16, 64], strides = [1, 1]} : vector<16x256xf32> to vector<16x64xf32>
    %404 = math.tanh %402 : vector<16x64xf32>
    %405 = arith.mulf %403, %404 : vector<16x64xf32>
    %c48_143 = arith.constant 48 : index
    %c0_144 = arith.constant 0 : index
    %406 = vector.load %arg4[%c48_143, %c0_144] : memref<64x512xf32, #tpu.memory_space<vmem>>, vector<8x256xf32>
    %c8_145 = arith.constant 8 : index
    %c256_146 = arith.constant 256 : index
    %407 = vector.load %arg4[%c8_145, %c256_146] : memref<64x512xf32, #tpu.memory_space<vmem>>, vector<8x256xf32>
    %408 = tpu.concatenate %406, %407 in 0 : vector<8x256xf32>, vector<8x256xf32> -> vector<16x256xf32>
    %c232_147 = arith.constant 232 : index
    %c0_148 = arith.constant 0 : index
    %409 = vector.load %arg1[%c232_147, %c0_148] : memref<304x512xf32, #tpu.memory_space<vmem>>, vector<64x512xf32>
    %cst_149 = arith.constant dense<0.000000e+00> : vector<16x512xf32>
    %410 = tpu.matmul %405, %409, %cst_149 {dimension_numbers = #tpu.dot_dimension_numbers<[1], [0], [0], [1], [0, 0, 1, 1], [], []>} : vector<16x64xf32>, vector<64x512xf32>, vector<16x512xf32> -> vector<16x512xf32>
    %411 = vector.extract_strided_slice %410 {offsets = [0, 0], sizes = [8, 256], strides = [1, 1]} : vector<16x512xf32> to vector<8x256xf32>
    %412 = vector.extract_strided_slice %410 {offsets = [8, 256], sizes = [8, 256], strides = [1, 1]} : vector<16x512xf32> to vector<8x256xf32>
    %413 = tpu.concatenate %411, %412 in 0 : vector<8x256xf32>, vector<8x256xf32> -> vector<16x256xf32>
    %414 = arith.addf %408, %413 : vector<16x256xf32>
    %415 = arith.negf %414 : vector<16x256xf32>
    %416 = math.exp %415 : vector<16x256xf32>
    %cst_150 = arith.constant 1.000000e+00 : f32
    %417 = vector.broadcast %cst_150 : f32 to vector<16x256xf32>
    %418 = arith.addf %417, %416 : vector<16x256xf32>
    %419 = arith.divf %417, %418 : vector<16x256xf32>
    %420 = vector.extract_strided_slice %419 {offsets = [0, 64], sizes = [16, 64], strides = [1, 1]} : vector<16x256xf32> to vector<16x64xf32>
    %421 = arith.mulf %420, %402 : vector<16x64xf32>
    %422 = vector.extract_strided_slice %419 {offsets = [0, 0], sizes = [16, 64], strides = [1, 1]} : vector<16x256xf32> to vector<16x64xf32>
    %423 = vector.extract_strided_slice %419 {offsets = [0, 192], sizes = [16, 64], strides = [1, 1]} : vector<16x256xf32> to vector<16x64xf32>
    %cst_151 = arith.constant 2.000000e+00 : f32
    %424 = vector.broadcast %cst_151 : f32 to vector<16x64xf32>
    %425 = arith.mulf %424, %423 : vector<16x64xf32>
    %cst_152 = arith.constant 1.000000e+00 : f32
    %426 = vector.broadcast %cst_152 : f32 to vector<16x64xf32>
    %427 = arith.subf %425, %426 : vector<16x64xf32>
    %428 = arith.mulf %422, %427 : vector<16x64xf32>
    %429 = arith.addf %421, %428 : vector<16x64xf32>
    %430 = vector.extract_strided_slice %419 {offsets = [0, 128], sizes = [16, 64], strides = [1, 1]} : vector<16x256xf32> to vector<16x64xf32>
    %431 = math.tanh %429 : vector<16x64xf32>
    %432 = arith.mulf %430, %431 : vector<16x64xf32>
    %c56_153 = arith.constant 56 : index
    %c0_154 = arith.constant 0 : index
    %433 = vector.load %arg4[%c56_153, %c0_154] : memref<64x512xf32, #tpu.memory_space<vmem>>, vector<8x256xf32>
    %c0_155 = arith.constant 0 : index
    %c256_156 = arith.constant 256 : index
    %434 = vector.load %arg4[%c0_155, %c256_156] : memref<64x512xf32, #tpu.memory_space<vmem>>, vector<8x256xf32>
    %435 = tpu.concatenate %433, %434 in 0 : vector<8x256xf32>, vector<8x256xf32> -> vector<16x256xf32>
    %c232_157 = arith.constant 232 : index
    %c0_158 = arith.constant 0 : index
    %436 = vector.load %arg1[%c232_157, %c0_158] : memref<304x512xf32, #tpu.memory_space<vmem>>, vector<64x512xf32>
    %cst_159 = arith.constant dense<0.000000e+00> : vector<16x512xf32>
    %437 = tpu.matmul %432, %436, %cst_159 {dimension_numbers = #tpu.dot_dimension_numbers<[1], [0], [0], [1], [0, 0, 1, 1], [], []>} : vector<16x64xf32>, vector<64x512xf32>, vector<16x512xf32> -> vector<16x512xf32>
    %438 = vector.extract_strided_slice %437 {offsets = [0, 0], sizes = [8, 256], strides = [1, 1]} : vector<16x512xf32> to vector<8x256xf32>
    %439 = vector.extract_strided_slice %437 {offsets = [8, 256], sizes = [8, 256], strides = [1, 1]} : vector<16x512xf32> to vector<8x256xf32>
    %440 = tpu.concatenate %438, %439 in 0 : vector<8x256xf32>, vector<8x256xf32> -> vector<16x256xf32>
    %441 = arith.addf %435, %440 : vector<16x256xf32>
    %442 = arith.negf %441 : vector<16x256xf32>
    %443 = math.exp %442 : vector<16x256xf32>
    %cst_160 = arith.constant 1.000000e+00 : f32
    %444 = vector.broadcast %cst_160 : f32 to vector<16x256xf32>
    %445 = arith.addf %444, %443 : vector<16x256xf32>
    %446 = arith.divf %444, %445 : vector<16x256xf32>
    %447 = vector.extract_strided_slice %446 {offsets = [0, 64], sizes = [16, 64], strides = [1, 1]} : vector<16x256xf32> to vector<16x64xf32>
    %448 = arith.mulf %447, %429 : vector<16x64xf32>
    %449 = vector.extract_strided_slice %446 {offsets = [0, 0], sizes = [16, 64], strides = [1, 1]} : vector<16x256xf32> to vector<16x64xf32>
    %450 = vector.extract_strided_slice %446 {offsets = [0, 192], sizes = [16, 64], strides = [1, 1]} : vector<16x256xf32> to vector<16x64xf32>
    %cst_161 = arith.constant 2.000000e+00 : f32
    %451 = vector.broadcast %cst_161 : f32 to vector<16x64xf32>
    %452 = arith.mulf %451, %450 : vector<16x64xf32>
    %cst_162 = arith.constant 1.000000e+00 : f32
    %453 = vector.broadcast %cst_162 : f32 to vector<16x64xf32>
    %454 = arith.subf %452, %453 : vector<16x64xf32>
    %455 = arith.mulf %449, %454 : vector<16x64xf32>
    %456 = arith.addf %448, %455 : vector<16x64xf32>
    %457 = vector.extract_strided_slice %446 {offsets = [0, 128], sizes = [16, 64], strides = [1, 1]} : vector<16x256xf32> to vector<16x64xf32>
    %458 = math.tanh %456 : vector<16x64xf32>
    %459 = arith.mulf %457, %458 : vector<16x64xf32>
    %460 = vector.extract_strided_slice %270 {offsets = [0, 0], sizes = [8, 64], strides = [1, 1]} : vector<16x64xf32> to vector<8x64xf32>
    %461 = vector.extract_strided_slice %297 {offsets = [0, 0], sizes = [8, 64], strides = [1, 1]} : vector<16x64xf32> to vector<8x64xf32>
    %462 = vector.extract_strided_slice %324 {offsets = [0, 0], sizes = [8, 64], strides = [1, 1]} : vector<16x64xf32> to vector<8x64xf32>
    %463 = vector.extract_strided_slice %351 {offsets = [0, 0], sizes = [8, 64], strides = [1, 1]} : vector<16x64xf32> to vector<8x64xf32>
    %464 = vector.extract_strided_slice %378 {offsets = [0, 0], sizes = [8, 64], strides = [1, 1]} : vector<16x64xf32> to vector<8x64xf32>
    %465 = vector.extract_strided_slice %405 {offsets = [0, 0], sizes = [8, 64], strides = [1, 1]} : vector<16x64xf32> to vector<8x64xf32>
    %466 = vector.extract_strided_slice %432 {offsets = [0, 0], sizes = [8, 64], strides = [1, 1]} : vector<16x64xf32> to vector<8x64xf32>
    %467 = vector.extract_strided_slice %459 {offsets = [0, 0], sizes = [8, 64], strides = [1, 1]} : vector<16x64xf32> to vector<8x64xf32>
    %468 = tpu.concatenate %460, %461, %462, %463, %464, %465, %466, %467 in 0 : vector<8x64xf32>, vector<8x64xf32>, vector<8x64xf32>, vector<8x64xf32>, vector<8x64xf32>, vector<8x64xf32>, vector<8x64xf32>, vector<8x64xf32> -> vector<64x64xf32>
    %469 = vector.extract_strided_slice %459 {offsets = [8, 0], sizes = [8, 64], strides = [1, 1]} : vector<16x64xf32> to vector<8x64xf32>
    %470 = vector.extract_strided_slice %432 {offsets = [8, 0], sizes = [8, 64], strides = [1, 1]} : vector<16x64xf32> to vector<8x64xf32>
    %471 = vector.extract_strided_slice %405 {offsets = [8, 0], sizes = [8, 64], strides = [1, 1]} : vector<16x64xf32> to vector<8x64xf32>
    %472 = vector.extract_strided_slice %378 {offsets = [8, 0], sizes = [8, 64], strides = [1, 1]} : vector<16x64xf32> to vector<8x64xf32>
    %473 = vector.extract_strided_slice %351 {offsets = [8, 0], sizes = [8, 64], strides = [1, 1]} : vector<16x64xf32> to vector<8x64xf32>
    %474 = vector.extract_strided_slice %324 {offsets = [8, 0], sizes = [8, 64], strides = [1, 1]} : vector<16x64xf32> to vector<8x64xf32>
    %475 = vector.extract_strided_slice %297 {offsets = [8, 0], sizes = [8, 64], strides = [1, 1]} : vector<16x64xf32> to vector<8x64xf32>
    %476 = vector.extract_strided_slice %270 {offsets = [8, 0], sizes = [8, 64], strides = [1, 1]} : vector<16x64xf32> to vector<8x64xf32>
    %477 = tpu.concatenate %469, %470, %471, %472, %473, %474, %475, %476 in 0 : vector<8x64xf32>, vector<8x64xf32>, vector<8x64xf32>, vector<8x64xf32>, vector<8x64xf32>, vector<8x64xf32>, vector<8x64xf32>, vector<8x64xf32> -> vector<64x64xf32>
    %478 = tpu.concatenate %468, %477 in 1 : vector<64x64xf32>, vector<64x64xf32> -> vector<64x128xf32>
    %c24_163 = arith.constant 24 : index
    %c0_164 = arith.constant 0 : index
    %479 = vector.load %arg2[%c24_163, %c0_164] : memref<432x128xf32, #tpu.memory_space<vmem>>, vector<128x128xf32>
    %c152 = arith.constant 152 : index
    %c0_165 = arith.constant 0 : index
    %480 = vector.load %arg2[%c152, %c0_165] : memref<432x128xf32, #tpu.memory_space<vmem>>, vector<1x128xf32>
    %cst_166 = arith.constant dense<0.000000e+00> : vector<64x128xf32>
    %481 = tpu.matmul %478, %479, %cst_166 {dimension_numbers = #tpu.dot_dimension_numbers<[1], [0], [0], [1], [0, 0, 1, 1], [], []>} : vector<64x128xf32>, vector<128x128xf32>, vector<64x128xf32> -> vector<64x128xf32>
    %482 = vector.broadcast %480 : vector<1x128xf32> to vector<64x128xf32>
    %483 = arith.addf %481, %482 : vector<64x128xf32>
    %cst_167 = arith.constant 0.000000e+00 : f32
    %484 = vector.broadcast %cst_167 : f32 to vector<64x128xf32>
    %485 = arith.maximumf %483, %484 : vector<64x128xf32>
    %c160 = arith.constant 160 : index
    %c0_168 = arith.constant 0 : index
    %486 = vector.load %arg2[%c160, %c0_168] : memref<432x128xf32, #tpu.memory_space<vmem>>, vector<1x128xf32>
    %487 = vector.extract_strided_slice %485 {offsets = [0, 0], sizes = [8, 128], strides = [1, 1]} : vector<64x128xf32> to vector<8x128xf32>
    %488 = vector.broadcast %486 : vector<1x128xf32> to vector<8x128xf32>
    %489 = arith.mulf %487, %488 : vector<8x128xf32>
    %cst_169 = arith.constant dense<0.000000e+00> : vector<8xf32>
    %490 = vector.multi_reduction <add>, %489, %cst_169 [1] : vector<8x128xf32> to vector<8xf32>
    %491 = vector.shape_cast %490 : vector<8xf32> to vector<8x1xf32>
    %492 = vector.extract_strided_slice %485 {offsets = [8, 0], sizes = [8, 128], strides = [1, 1]} : vector<64x128xf32> to vector<8x128xf32>
    %493 = vector.broadcast %486 : vector<1x128xf32> to vector<8x128xf32>
    %494 = arith.mulf %492, %493 : vector<8x128xf32>
    %cst_170 = arith.constant dense<0.000000e+00> : vector<8xf32>
    %495 = vector.multi_reduction <add>, %494, %cst_170 [1] : vector<8x128xf32> to vector<8xf32>
    %496 = vector.shape_cast %495 : vector<8xf32> to vector<8x1xf32>
    %497 = vector.extract_strided_slice %485 {offsets = [16, 0], sizes = [8, 128], strides = [1, 1]} : vector<64x128xf32> to vector<8x128xf32>
    %498 = vector.broadcast %486 : vector<1x128xf32> to vector<8x128xf32>
    %499 = arith.mulf %497, %498 : vector<8x128xf32>
    %cst_171 = arith.constant dense<0.000000e+00> : vector<8xf32>
    %500 = vector.multi_reduction <add>, %499, %cst_171 [1] : vector<8x128xf32> to vector<8xf32>
    %501 = vector.shape_cast %500 : vector<8xf32> to vector<8x1xf32>
    %502 = vector.extract_strided_slice %485 {offsets = [24, 0], sizes = [8, 128], strides = [1, 1]} : vector<64x128xf32> to vector<8x128xf32>
    %503 = vector.broadcast %486 : vector<1x128xf32> to vector<8x128xf32>
    %504 = arith.mulf %502, %503 : vector<8x128xf32>
    %cst_172 = arith.constant dense<0.000000e+00> : vector<8xf32>
    %505 = vector.multi_reduction <add>, %504, %cst_172 [1] : vector<8x128xf32> to vector<8xf32>
    %506 = vector.shape_cast %505 : vector<8xf32> to vector<8x1xf32>
    %507 = vector.extract_strided_slice %485 {offsets = [32, 0], sizes = [8, 128], strides = [1, 1]} : vector<64x128xf32> to vector<8x128xf32>
    %508 = vector.broadcast %486 : vector<1x128xf32> to vector<8x128xf32>
    %509 = arith.mulf %507, %508 : vector<8x128xf32>
    %cst_173 = arith.constant dense<0.000000e+00> : vector<8xf32>
    %510 = vector.multi_reduction <add>, %509, %cst_173 [1] : vector<8x128xf32> to vector<8xf32>
    %511 = vector.shape_cast %510 : vector<8xf32> to vector<8x1xf32>
    %512 = vector.extract_strided_slice %485 {offsets = [40, 0], sizes = [8, 128], strides = [1, 1]} : vector<64x128xf32> to vector<8x128xf32>
    %513 = vector.broadcast %486 : vector<1x128xf32> to vector<8x128xf32>
    %514 = arith.mulf %512, %513 : vector<8x128xf32>
    %cst_174 = arith.constant dense<0.000000e+00> : vector<8xf32>
    %515 = vector.multi_reduction <add>, %514, %cst_174 [1] : vector<8x128xf32> to vector<8xf32>
    %516 = vector.shape_cast %515 : vector<8xf32> to vector<8x1xf32>
    %517 = vector.extract_strided_slice %485 {offsets = [48, 0], sizes = [8, 128], strides = [1, 1]} : vector<64x128xf32> to vector<8x128xf32>
    %518 = vector.broadcast %486 : vector<1x128xf32> to vector<8x128xf32>
    %519 = arith.mulf %517, %518 : vector<8x128xf32>
    %cst_175 = arith.constant dense<0.000000e+00> : vector<8xf32>
    %520 = vector.multi_reduction <add>, %519, %cst_175 [1] : vector<8x128xf32> to vector<8xf32>
    %521 = vector.shape_cast %520 : vector<8xf32> to vector<8x1xf32>
    %522 = vector.extract_strided_slice %485 {offsets = [56, 0], sizes = [8, 128], strides = [1, 1]} : vector<64x128xf32> to vector<8x128xf32>
    %523 = vector.broadcast %486 : vector<1x128xf32> to vector<8x128xf32>
    %524 = arith.mulf %522, %523 : vector<8x128xf32>
    %cst_176 = arith.constant dense<0.000000e+00> : vector<8xf32>
    %525 = vector.multi_reduction <add>, %524, %cst_176 [1] : vector<8x128xf32> to vector<8xf32>
    %526 = vector.shape_cast %525 : vector<8xf32> to vector<8x1xf32>
    %527 = tpu.concatenate %491, %496, %501, %506, %511, %516, %521, %526 in 1 : vector<8x1xf32>, vector<8x1xf32>, vector<8x1xf32>, vector<8x1xf32>, vector<8x1xf32>, vector<8x1xf32>, vector<8x1xf32>, vector<8x1xf32> -> vector<8x8xf32>
    %cst_177 = arith.constant dense<0xFF800000> : vector<8xf32>
    %528 = vector.multi_reduction <maximumf>, %527, %cst_177 [1] : vector<8x8xf32> to vector<8xf32>
    %529 = vector.shape_cast %528 : vector<8xf32> to vector<8x1xf32>
    %530 = vector.broadcast %529 : vector<8x1xf32> to vector<8x8xf32>
    %531 = arith.subf %527, %530 : vector<8x8xf32>
    %532 = math.exp %531 : vector<8x8xf32>
    %cst_178 = arith.constant dense<0.000000e+00> : vector<8xf32>
    %533 = vector.multi_reduction <add>, %532, %cst_178 [1] : vector<8x8xf32> to vector<8xf32>
    %534 = vector.shape_cast %533 : vector<8xf32> to vector<8x1xf32>
    %535 = tpu.reciprocal %534 {approx = true} : vector<8x1xf32> -> vector<8x1xf32>
    %536 = vector.broadcast %535 : vector<8x1xf32> to vector<8x8xf32>
    %537 = arith.mulf %532, %536 : vector<8x8xf32>
    %cst_179 = arith.constant 0.000000e+00 : f32
    %538 = vector.broadcast %cst_179 : f32 to vector<8x128xf32>
    %cst_180 = arith.constant 0.000000e+00 : f32
    %539 = vector.broadcast %cst_180 : f32 to vector<8x128xf32>
    %540 = vector.extract_strided_slice %478 {offsets = [0, 0], sizes = [8, 128], strides = [1, 1]} : vector<64x128xf32> to vector<8x128xf32>
    %541 = vector.extract_strided_slice %537 {offsets = [0, 0], sizes = [8, 1], strides = [1, 1]} : vector<8x8xf32> to vector<8x1xf32>
    %542 = vector.broadcast %541 : vector<8x1xf32> to vector<8x128xf32>
    %543 = arith.mulf %542, %540 : vector<8x128xf32>
    %544 = arith.addf %538, %543 : vector<8x128xf32>
    %545 = arith.addf %539, %540 : vector<8x128xf32>
    %546 = vector.extract_strided_slice %478 {offsets = [8, 0], sizes = [8, 128], strides = [1, 1]} : vector<64x128xf32> to vector<8x128xf32>
    %547 = vector.extract_strided_slice %537 {offsets = [0, 1], sizes = [8, 1], strides = [1, 1]} : vector<8x8xf32> to vector<8x1xf32>
    %548 = vector.broadcast %547 : vector<8x1xf32> to vector<8x128xf32>
    %549 = arith.mulf %548, %546 : vector<8x128xf32>
    %550 = arith.addf %544, %549 : vector<8x128xf32>
    %551 = arith.addf %545, %546 : vector<8x128xf32>
    %552 = vector.extract_strided_slice %478 {offsets = [16, 0], sizes = [8, 128], strides = [1, 1]} : vector<64x128xf32> to vector<8x128xf32>
    %553 = vector.extract_strided_slice %537 {offsets = [0, 2], sizes = [8, 1], strides = [1, 1]} : vector<8x8xf32> to vector<8x1xf32>
    %554 = vector.broadcast %553 : vector<8x1xf32> to vector<8x128xf32>
    %555 = arith.mulf %554, %552 : vector<8x128xf32>
    %556 = arith.addf %550, %555 : vector<8x128xf32>
    %557 = arith.addf %551, %552 : vector<8x128xf32>
    %558 = vector.extract_strided_slice %478 {offsets = [24, 0], sizes = [8, 128], strides = [1, 1]} : vector<64x128xf32> to vector<8x128xf32>
    %559 = vector.extract_strided_slice %537 {offsets = [0, 3], sizes = [8, 1], strides = [1, 1]} : vector<8x8xf32> to vector<8x1xf32>
    %560 = vector.broadcast %559 : vector<8x1xf32> to vector<8x128xf32>
    %561 = arith.mulf %560, %558 : vector<8x128xf32>
    %562 = arith.addf %556, %561 : vector<8x128xf32>
    %563 = arith.addf %557, %558 : vector<8x128xf32>
    %564 = vector.extract_strided_slice %478 {offsets = [32, 0], sizes = [8, 128], strides = [1, 1]} : vector<64x128xf32> to vector<8x128xf32>
    %565 = vector.extract_strided_slice %537 {offsets = [0, 4], sizes = [8, 1], strides = [1, 1]} : vector<8x8xf32> to vector<8x1xf32>
    %566 = vector.broadcast %565 : vector<8x1xf32> to vector<8x128xf32>
    %567 = arith.mulf %566, %564 : vector<8x128xf32>
    %568 = arith.addf %562, %567 : vector<8x128xf32>
    %569 = arith.addf %563, %564 : vector<8x128xf32>
    %570 = vector.extract_strided_slice %478 {offsets = [40, 0], sizes = [8, 128], strides = [1, 1]} : vector<64x128xf32> to vector<8x128xf32>
    %571 = vector.extract_strided_slice %537 {offsets = [0, 5], sizes = [8, 1], strides = [1, 1]} : vector<8x8xf32> to vector<8x1xf32>
    %572 = vector.broadcast %571 : vector<8x1xf32> to vector<8x128xf32>
    %573 = arith.mulf %572, %570 : vector<8x128xf32>
    %574 = arith.addf %568, %573 : vector<8x128xf32>
    %575 = arith.addf %569, %570 : vector<8x128xf32>
    %576 = vector.extract_strided_slice %478 {offsets = [48, 0], sizes = [8, 128], strides = [1, 1]} : vector<64x128xf32> to vector<8x128xf32>
    %577 = vector.extract_strided_slice %537 {offsets = [0, 6], sizes = [8, 1], strides = [1, 1]} : vector<8x8xf32> to vector<8x1xf32>
    %578 = vector.broadcast %577 : vector<8x1xf32> to vector<8x128xf32>
    %579 = arith.mulf %578, %576 : vector<8x128xf32>
    %580 = arith.addf %574, %579 : vector<8x128xf32>
    %581 = arith.addf %575, %576 : vector<8x128xf32>
    %582 = vector.extract_strided_slice %478 {offsets = [56, 0], sizes = [8, 128], strides = [1, 1]} : vector<64x128xf32> to vector<8x128xf32>
    %583 = vector.extract_strided_slice %537 {offsets = [0, 7], sizes = [8, 1], strides = [1, 1]} : vector<8x8xf32> to vector<8x1xf32>
    %584 = vector.broadcast %583 : vector<8x1xf32> to vector<8x128xf32>
    %585 = arith.mulf %584, %582 : vector<8x128xf32>
    %586 = arith.addf %580, %585 : vector<8x128xf32>
    %587 = arith.addf %581, %582 : vector<8x128xf32>
    %c168 = arith.constant 168 : index
    %c0_181 = arith.constant 0 : index
    %588 = vector.load %arg2[%c168, %c0_181] : memref<432x128xf32, #tpu.memory_space<vmem>>, vector<128x4xf32>
    %c296_182 = arith.constant 296 : index
    %c0_183 = arith.constant 0 : index
    %589 = vector.load %arg2[%c296_182, %c0_183] : memref<432x128xf32, #tpu.memory_space<vmem>>, vector<128x4xf32>
    %c424 = arith.constant 424 : index
    %c0_184 = arith.constant 0 : index
    %590 = vector.load %arg2[%c424, %c0_184] : memref<432x128xf32, #tpu.memory_space<vmem>>, vector<1x4xf32>
    %cst_185 = arith.constant dense<0.000000e+00> : vector<8x4xf32>
    %591 = tpu.matmul %586, %588, %cst_185 {dimension_numbers = #tpu.dot_dimension_numbers<[1], [0], [0], [1], [0, 0, 1, 1], [], []>} : vector<8x128xf32>, vector<128x4xf32>, vector<8x4xf32> -> vector<8x4xf32>
    %cst_186 = arith.constant dense<0.000000e+00> : vector<8x4xf32>
    %592 = tpu.matmul %587, %589, %cst_186 {dimension_numbers = #tpu.dot_dimension_numbers<[1], [0], [0], [1], [0, 0, 1, 1], [], []>} : vector<8x128xf32>, vector<128x4xf32>, vector<8x4xf32> -> vector<8x4xf32>
    %593 = arith.addf %591, %592 : vector<8x4xf32>
    %594 = vector.broadcast %590 : vector<1x4xf32> to vector<8x4xf32>
    %595 = arith.addf %593, %594 : vector<8x4xf32>
    %c0_187 = arith.constant 0 : index
    %c0_188 = arith.constant 0 : index
    %596 = vector.load %arg3[%c0_187, %c0_188] : memref<8x4xf32, #tpu.memory_space<vmem>>, vector<8x4xf32>
    tpu.vector_store %arg3[%c0_187, %c0_188], %595 {strides = array<i32>} : memref<8x4xf32, #tpu.memory_space<vmem>>, vector<8x4xf32>,
    return
  }
}

</mosaic_0001>

<llo_original>
// kernel: forward.1
$region0: #{forward.1}
  #allocation0 [shape = 'u32[]', space=smem, size = 0x4, offset = 0x4, fixed_abs, tag = 'smem constant byte address 0x4 - core index']
  #allocation1 [shape = 'u32[72,128]{1,0:T(1,128)}', space=vmem, size = 0x9000, scoped, tag = 'internal scratch']
  #allocation2 [shape = 'f32[64,512]{1,0:T(8,128)}', space=vmem, size = 0x20000, scoped, tag = 'scratch operand']
  %s0 = inlined_call_operand.vmem [shape: f32[64,16], index: 0, kind: input, shape index: {}]
  %s1 = inlined_call_operand.hbm [shape: f32[304,512], index: 1, kind: input, shape index: {}]
  %s2 = inlined_call_operand.hbm [shape: f32[432,128], index: 2, kind: input, shape index: {}]
  %s3 = inlined_call_operand.vmem [shape: f32[8,4], index: 3, kind: output, shape index: {}]
  %s4 = sld [smem:[#allocation0]]
  $region30: #{forward.1} parent=0
    _
  %s6 = ssub.s32 1, %s4
  %s7 = scalar_select 0, %s6, %s4
  $region1: #{forward.1} parent=0
    #allocation3 [shape = 'u8[622592]{0}', space=vmem, size = 0x98000, scoped, tag = 'input window, operand 1, single buffered']
    #allocation4 [shape = 's32[1]{0}', space=sflag, size = 0x4, scoped, tag = 'scoped memory for forward.1']
    #allocation5 [shape = 'u8[221184]{0}', space=vmem, size = 0x36000, scoped, tag = 'input window, operand 2, single buffered']
    #allocation6 [shape = 's32[1]{0}', space=sflag, size = 0x4, scoped, tag = 'scoped memory for forward.1']
    %8 = vsyncpa [#allocation4], 0
    %9 = vsyncpa [#allocation6], 0
    // Predicated region
    $region2: #{forward.1} parent=1 // pred_check
      _
    $region3: #{forward.1} parent=1 // pred_check_branch
      %11 = sbr.rel (0) target = $region5
    $region4: #{forward.1} parent=1 // pred_region
      _
    $region5: #{forward.1} parent=1 // pred_fallthru
      _
    // Predicated region
    $region6: #{forward.1} parent=1 // pred_check
      _
    $region7: #{forward.1} parent=1 // pred_check_branch
      %13 = sbr.rel (0) target = $region9
    $region8: #{forward.1} parent=1 // pred_region
      %15 = vsyncadd [#allocation4], 0
      %s16 = sshll.u32 %s1, 4
      %s17 = int_to_ptr.hbm [resolvable:$true] %s16
      %s18 = sshll.u32 [#allocation3], 4
      %s19 = int_to_ptr.vmem [resolvable:$true] %s18
      %24 = dma.hbm_to_vmem [thread:$0]  %s17, 19456, %s19, [#allocation4], 512, 512, 32
    $region9: #{forward.1} parent=1 // pred_fallthru
      _
    // Predicated region
    $region10: #{forward.1} parent=1 // pred_check
      _
    $region11: #{forward.1} parent=1 // pred_check_branch
      %26 = sbr.rel (0) target = $region13
    $region12: #{forward.1} parent=1 // pred_region
      %28 = vsyncadd [#allocation6], 0
      %s29 = sshll.u32 %s2, 4
      %s30 = int_to_ptr.hbm [resolvable:$true] %s29
      %s31 = sshll.u32 [#allocation5], 4
      %s32 = int_to_ptr.vmem [resolvable:$true] %s31
      %37 = dma.hbm_to_vmem [thread:$0]  %s30, 6912, %s32, [#allocation6], 128, 128, 8
    $region13: #{forward.1} parent=1 // pred_fallthru
      _
    // Predicated region
    $region14: #{forward.1} parent=1 // pred_check
      _
    $region15: #{forward.1} parent=1 // pred_check_branch
      %39 = sbr.rel (0) target = $region17
    $region16: #{forward.1} parent=1 // pred_region
      %41 = dma.done [#allocation4], 19456
    $region17: #{forward.1} parent=1 // pred_fallthru
      _
    // Predicated region
    $region18: #{forward.1} parent=1 // pred_check
      _
    $region19: #{forward.1} parent=1 // pred_check_branch
      %43 = sbr.rel (0) target = $region21
    $region20: #{forward.1} parent=1 // pred_region
      %45 = dma.done [#allocation6], 6912
    $region21: #{forward.1} parent=1 // pred_fallthru
      _
    %v46 = vld [vmem:[#allocation5] sm:$0xff]
    %v47 = vld [vmem:[#allocation5 + $0x8] sm:$0xff]
    %v48 = vld [vmem:[#allocation5 + $0x10] sm:$0x1]
    %v49 = vld [vmem:[%s0] sm:$0xff]
    %v50 = vld [vmem:[%s0 + $0x8] sm:$0xff]
    %v51 = vld [vmem:[%s0 + $0x10] sm:$0xff]
    %v52 = vld [vmem:[%s0 + $0x18] sm:$0xff]
    %v53 = vld [vmem:[%s0 + $0x20] sm:$0xff]
    %v54 = vld [vmem:[%s0 + $0x28] sm:$0xff]
    %v55 = vld [vmem:[%s0 + $0x30] sm:$0xff]
    %v56 = vld [vmem:[%s0 + $0x38] sm:$0xff]
    %v57 = vperm.slane %v48, 0
    %vm58 = vcmask 130048
    %v60 = vsel %vm58, %v49, 0
    %v63 = vsel %vm58, %v50, 0
    %v66 = vsel %vm58, %v51, 0
    %v69 = vsel %vm58, %v52, 0
    %v72 = vsel %vm58, %v53, 0
    %v75 = vsel %vm58, %v54, 0
    %v78 = vsel %vm58, %v55, 0
    %v81 = vsel %vm58, %v56, 0
    %83 = vmatpush.msra.mxu0 0.0
    %84 = vmatpush.msra.mxu0 0.0
    %85 = vmatpush.msra.mxu0 0.0
    %86 = vmatpush.msra.mxu0 0.0
    %87 = vmatpush.msra.mxu0 0.0
    %88 = vmatpush.msra.mxu0 0.0
    %89 = vmatpush.msra.mxu0 0.0
    %90 = vmatpush.msra.mxu0 0.0
    %91 = vmatpush.msra.mxu0 0.0
    %92 = vmatpush.msra.mxu0 0.0
    %93 = vmatpush.msra.mxu0 0.0
    %94 = vmatpush.msra.mxu0 0.0
    %95 = vmatpush.msra.mxu0 0.0
    %96 = vmatpush.msra.mxu0 0.0
    %97 = vmatpush.msra.mxu0 %v47
    %98 = vmatpush.msra.mxu0 %v46
    %99 = vmatmul.f32.gmra.mxu0 %v60
    %v100 = vpop.f32.mrf.mxu0
    %v101 = vadd.f32 %v57, %v100
    %102 = vmatmul.f32.gmra.mxu0 %v63
    %v103 = vpop.f32.mrf.mxu0
    %v104 = vadd.f32 %v57, %v103
    %105 = vmatmul.f32.gmra.mxu0 %v66
    %v106 = vpop.f32.mrf.mxu0
    %v107 = vadd.f32 %v57, %v106
    %108 = vmatmul.f32.gmra.mxu0 %v69
    %v109 = vpop.f32.mrf.mxu0
    %v110 = vadd.f32 %v57, %v109
    %111 = vmatmul.f32.gmra.mxu0 %v72
    %v112 = vpop.f32.mrf.mxu0
    %v113 = vadd.f32 %v57, %v112
    %114 = vmatmul.f32.gmra.mxu0 %v75
    %v115 = vpop.f32.mrf.mxu0
    %v116 = vadd.f32 %v57, %v115
    %117 = vmatmul.f32.gmra.mxu0 %v78
    %v118 = vpop.f32.mrf.mxu0
    %v119 = vadd.f32 %v57, %v118
    %120 = vmatmul.f32.gmra.mxu0 %v81
    %v121 = vpop.f32.mrf.mxu0
    %v122 = vadd.f32 %v57, %v121
    %123 = vdwg.mxu0
    %v124 = vtanh.pop %v101
    %v125 = vtanh.pop %v104
    %v126 = vtanh.pop %v107
    %v127 = vtanh.pop %v110
    %v128 = vtanh.pop %v113
    %v129 = vtanh.pop %v116
    %v130 = vtanh.pop %v119
    %v131 = vtanh.pop %v122
    %v132 = vld [vmem:[#allocation3] sm:$0xff]
    %v133 = vld [vmem:[#allocation3 + $0x8] sm:$0xff]
    %v134 = vld [vmem:[#allocation3 + $0x10] sm:$0xff]
    %v135 = vld [vmem:[#allocation3 + $0x18] sm:$0xff]
    %v136 = vld [vmem:[#allocation3 + $0x20] sm:$0xff]
    %v137 = vld [vmem:[#allocation3 + $0x28] sm:$0xff]
    %v138 = vld [vmem:[#allocation3 + $0x30] sm:$0xff]
    %v139 = vld [vmem:[#allocation3 + $0x38] sm:$0xff]
    %v140 = vld [vmem:[#allocation3 + $0x40] sm:$0xff]
    %v141 = vld [vmem:[#allocation3 + $0x48] sm:$0xff]
    %v142 = vld [vmem:[#allocation3 + $0x50] sm:$0xff]
    %v143 = vld [vmem:[#allocation3 + $0x58] sm:$0xff]
    %v144 = vld [vmem:[#allocation3 + $0x60] sm:$0xff]
    %v145 = vld [vmem:[#allocation3 + $0x68] sm:$0xff]
    %v146 = vld [vmem:[#allocation3 + $0x70] sm:$0xff]
    %v147 = vld [vmem:[#allocation3 + $0x78] sm:$0xff]
    %s148 = scalar_lea.vmem [#allocation3], 384
    %v149 = vld [vmem:[%s148] ss:$8 sm:$0xf]
    %v151 = vperm.slane %v149, 0
    %v152 = vperm.slane %v149, 1
    %v153 = vperm.slane %v149, 2
    %v154 = vperm.slane %v149, 3
    %vm159 = vcmask 261120
    %v161 = vsel %vm159, %v124, 0
    %v164 = vsel %vm159, %v125, 0
    %v167 = vsel %vm159, %v126, 0
    %v170 = vsel %vm159, %v127, 0
    %v173 = vsel %vm159, %v128, 0
    %v176 = vsel %vm159, %v129, 0
    %v179 = vsel %vm159, %v130, 0
    %v182 = vsel %vm159, %v131, 0
    %184 = vmatpush.msra.mxu0 0.0
    %185 = vmatpush.msra.mxu0 0.0
    %186 = vmatpush.msra.mxu0 0.0
    %187 = vmatpush.msra.mxu0 0.0
    %188 = vmatpush.msra.mxu0 0.0
    %189 = vmatpush.msra.mxu0 0.0
    %190 = vmatpush.msra.mxu0 0.0
    %191 = vmatpush.msra.mxu0 0.0
    %192 = vmatpush.msra.mxu0 0.0
    %193 = vmatpush.msra.mxu0 0.0
    %194 = vmatpush.msra.mxu0 0.0
    %195 = vmatpush.msra.mxu0 0.0
    %196 = vmatpush.msra.mxu0 %v144
    %197 = vmatpush.msra.mxu0 %v140
    %198 = vmatpush.msra.mxu0 %v136
    %199 = vmatpush.msra.mxu0 %v132
    %200 = vmatmul.f32.gmra.mxu0 %v161
    %v201 = vpop.f32.mrf.mxu0
    %v202 = vadd.f32 %v151, %v201
    %203 = vmatmul.f32.gmra.mxu0 %v164
    %v204 = vpop.f32.mrf.mxu0
    %v205 = vadd.f32 %v151, %v204
    %206 = vmatmul.f32.gmra.mxu0 %v167
    %v207 = vpop.f32.mrf.mxu0
    %v208 = vadd.f32 %v151, %v207
    %209 = vmatmul.f32.gmra.mxu0 %v170
    %v210 = vpop.f32.mrf.mxu0
    %v211 = vadd.f32 %v151, %v210
    %212 = vmatmul.f32.gmra.mxu0 %v173
    %v213 = vpop.f32.mrf.mxu0
    %v214 = vadd.f32 %v151, %v213
    %215 = vmatmul.f32.gmra.mxu0 %v176
    %v216 = vpop.f32.mrf.mxu0
    %v217 = vadd.f32 %v151, %v216
    %218 = vmatmul.f32.gmra.mxu0 %v179
    %v219 = vpop.f32.mrf.mxu0
    %v220 = vadd.f32 %v151, %v219
    %221 = vmatmul.f32.gmra.mxu0 %v182
    %v222 = vpop.f32.mrf.mxu0
    %v223 = vadd.f32 %v151, %v222
    %224 = vdwg.mxu0
    %225 = vmatpush.msra.mxu0 0.0
    %226 = vmatpush.msra.mxu0 0.0
    %227 = vmatpush.msra.mxu0 0.0
    %228 = vmatpush.msra.mxu0 0.0
    %229 = vmatpush.msra.mxu0 0.0
    %230 = vmatpush.msra.mxu0 0.0
    %231 = vmatpush.msra.mxu0 0.0
    %232 = vmatpush.msra.mxu0 0.0
    %233 = vmatpush.msra.mxu0 0.0
    %234 = vmatpush.msra.mxu0 0.0
    %235 = vmatpush.msra.mxu0 0.0
    %236 = vmatpush.msra.mxu0 0.0
    %237 = vmatpush.msra.mxu0 %v145
    %238 = vmatpush.msra.mxu0 %v141
    %239 = vmatpush.msra.mxu0 %v137
    %240 = vmatpush.msra.mxu0 %v133
    %241 = vmatmul.f32.gmra.mxu0 %v161
    %v242 = vpop.f32.mrf.mxu0
    %v243 = vadd.f32 %v152, %v242
    %244 = vmatmul.f32.gmra.mxu0 %v164
    %v245 = vpop.f32.mrf.mxu0
    %v246 = vadd.f32 %v152, %v245
    %247 = vmatmul.f32.gmra.mxu0 %v167
    %v248 = vpop.f32.mrf.mxu0
    %v249 = vadd.f32 %v152, %v248
    %250 = vmatmul.f32.gmra.mxu0 %v170
    %v251 = vpop.f32.mrf.mxu0
    %v252 = vadd.f32 %v152, %v251
    %253 = vmatmul.f32.gmra.mxu0 %v173
    %v254 = vpop.f32.mrf.mxu0
    %v255 = vadd.f32 %v152, %v254
    %256 = vmatmul.f32.gmra.mxu0 %v176
    %v257 = vpop.f32.mrf.mxu0
    %v258 = vadd.f32 %v152, %v257
    %259 = vmatmul.f32.gmra.mxu0 %v179
    %v260 = vpop.f32.mrf.mxu0
    %v261 = vadd.f32 %v152, %v260
    %262 = vmatmul.f32.gmra.mxu0 %v182
    %v263 = vpop.f32.mrf.mxu0
    %v264 = vadd.f32 %v152, %v263
    %265 = vdwg.mxu0
    %266 = vmatpush.msra.mxu0 0.0
    %267 = vmatpush.msra.mxu0 0.0
    %268 = vmatpush.msra.mxu0 0.0
    %269 = vmatpush.msra.mxu0 0.0
    %270 = vmatpush.msra.mxu0 0.0
    %271 = vmatpush.msra.mxu0 0.0
    %272 = vmatpush.msra.mxu0 0.0
    %273 = vmatpush.msra.mxu0 0.0
    %274 = vmatpush.msra.mxu0 0.0
    %275 = vmatpush.msra.mxu0 0.0
    %276 = vmatpush.msra.mxu0 0.0
    %277 = vmatpush.msra.mxu0 0.0
    %278 = vmatpush.msra.mxu0 %v146
    %279 = vmatpush.msra.mxu0 %v142
    %280 = vmatpush.msra.mxu0 %v138
    %281 = vmatpush.msra.mxu0 %v134
    %282 = vmatmul.f32.gmra.mxu0 %v161
    %v283 = vpop.f32.mrf.mxu0
    %v284 = vadd.f32 %v153, %v283
    %285 = vmatmul.f32.gmra.mxu0 %v164
    %v286 = vpop.f32.mrf.mxu0
    %v287 = vadd.f32 %v153, %v286
    %288 = vmatmul.f32.gmra.mxu0 %v167
    %v289 = vpop.f32.mrf.mxu0
    %v290 = vadd.f32 %v153, %v289
    %291 = vmatmul.f32.gmra.mxu0 %v170
    %v292 = vpop.f32.mrf.mxu0
    %v293 = vadd.f32 %v153, %v292
    %294 = vmatmul.f32.gmra.mxu0 %v173
    %v295 = vpop.f32.mrf.mxu0
    %v296 = vadd.f32 %v153, %v295
    %297 = vmatmul.f32.gmra.mxu0 %v176
    %v298 = vpop.f32.mrf.mxu0
    %v299 = vadd.f32 %v153, %v298
    %300 = vmatmul.f32.gmra.mxu0 %v179
    %v301 = vpop.f32.mrf.mxu0
    %v302 = vadd.f32 %v153, %v301
    %303 = vmatmul.f32.gmra.mxu0 %v182
    %v304 = vpop.f32.mrf.mxu0
    %v305 = vadd.f32 %v153, %v304
    %306 = vdwg.mxu0
    %307 = vmatpush.msra.mxu0 0.0
    %308 = vmatpush.msra.mxu0 0.0
    %309 = vmatpush.msra.mxu0 0.0
    %310 = vmatpush.msra.mxu0 0.0
    %311 = vmatpush.msra.mxu0 0.0
    %312 = vmatpush.msra.mxu0 0.0
    %313 = vmatpush.msra.mxu0 0.0
    %314 = vmatpush.msra.mxu0 0.0
    %315 = vmatpush.msra.mxu0 0.0
    %316 = vmatpush.msra.mxu0 0.0
    %317 = vmatpush.msra.mxu0 0.0
    %318 = vmatpush.msra.mxu0 0.0
    %319 = vmatpush.msra.mxu0 %v147
    %320 = vmatpush.msra.mxu0 %v143
    %321 = vmatpush.msra.mxu0 %v139
    %322 = vmatpush.msra.mxu0 %v135
    %323 = vmatmul.f32.gmra.mxu0 %v161
    %v324 = vpop.f32.mrf.mxu0
    %v325 = vadd.f32 %v154, %v324
    %326 = vmatmul.f32.gmra.mxu0 %v164
    %v327 = vpop.f32.mrf.mxu0
    %v328 = vadd.f32 %v154, %v327
    %329 = vmatmul.f32.gmra.mxu0 %v167
    %v330 = vpop.f32.mrf.mxu0
    %v331 = vadd.f32 %v154, %v330
    %332 = vmatmul.f32.gmra.mxu0 %v170
    %v333 = vpop.f32.mrf.mxu0
    %v334 = vadd.f32 %v154, %v333
    %335 = vmatmul.f32.gmra.mxu0 %v173
    %v336 = vpop.f32.mrf.mxu0
    %v337 = vadd.f32 %v154, %v336
    %338 = vmatmul.f32.gmra.mxu0 %v176
    %v339 = vpop.f32.mrf.mxu0
    %v340 = vadd.f32 %v154, %v339
    %341 = vmatmul.f32.gmra.mxu0 %v179
    %v342 = vpop.f32.mrf.mxu0
    %v343 = vadd.f32 %v154, %v342
    %344 = vmatmul.f32.gmra.mxu0 %v182
    %v345 = vpop.f32.mrf.mxu0
    %v346 = vadd.f32 %v154, %v345
    %347 = vdwg.mxu0
    %348 = vst [vmem:[#allocation2] sm:$0xff] %v202
    %349 = vst [vmem:[#allocation2 + $0x8] sm:$0xff] %v243
    %350 = vst [vmem:[#allocation2 + $0x10] sm:$0xff] %v284
    %351 = vst [vmem:[#allocation2 + $0x18] sm:$0xff] %v325
    %352 = vst [vmem:[#allocation2 + $0x20] sm:$0xff] %v205
    %353 = vst [vmem:[#allocation2 + $0x28] sm:$0xff] %v246
    %354 = vst [vmem:[#allocation2 + $0x30] sm:$0xff] %v287
    %355 = vst [vmem:[#allocation2 + $0x38] sm:$0xff] %v328
    %356 = vst [vmem:[#allocation2 + $0x40] sm:$0xff] %v208
    %357 = vst [vmem:[#allocation2 + $0x48] sm:$0xff] %v249
    %358 = vst [vmem:[#allocation2 + $0x50] sm:$0xff] %v290
    %359 = vst [vmem:[#allocation2 + $0x58] sm:$0xff] %v331
    %360 = vst [vmem:[#allocation2 + $0x60] sm:$0xff] %v211
    %361 = vst [vmem:[#allocation2 + $0x68] sm:$0xff] %v252
    %362 = vst [vmem:[#allocation2 + $0x70] sm:$0xff] %v293
    %363 = vst [vmem:[#allocation2 + $0x78] sm:$0xff] %v334
    %364 = vst [vmem:[#allocation2 + $0x80] sm:$0xff] %v214
    %365 = vst [vmem:[#allocation2 + $0x88] sm:$0xff] %v255
    %366 = vst [vmem:[#allocation2 + $0x90] sm:$0xff] %v296
    %367 = vst [vmem:[#allocation2 + $0x98] sm:$0xff] %v337
    %368 = vst [vmem:[#allocation2 + $0xa0] sm:$0xff] %v217
    %369 = vst [vmem:[#allocation2 + $0xa8] sm:$0xff] %v258
    %370 = vst [vmem:[#allocation2 + $0xb0] sm:$0xff] %v299
    %371 = vst [vmem:[#allocation2 + $0xb8] sm:$0xff] %v340
    %372 = vst [vmem:[#allocation2 + $0xc0] sm:$0xff] %v220
    %373 = vst [vmem:[#allocation2 + $0xc8] sm:$0xff] %v261
    %374 = vst [vmem:[#allocation2 + $0xd0] sm:$0xff] %v302
    %375 = vst [vmem:[#allocation2 + $0xd8] sm:$0xff] %v343
    %376 = vst [vmem:[#allocation2 + $0xe0] sm:$0xff] %v223
    %377 = vst [vmem:[#allocation2 + $0xe8] sm:$0xff] %v264
    %378 = vst [vmem:[#allocation2 + $0xf0] sm:$0xff] %v305
    %379 = vst [vmem:[#allocation2 + $0xf8] sm:$0xff] %v346
    %v380 = vld [vmem:[#allocation2] sm:$0xff]
    %v381 = vld [vmem:[#allocation2 + $0x8] sm:$0xff]
    %v382 = vld [vmem:[#allocation2 + $0xf0] sm:$0xff]
    %v383 = vld [vmem:[#allocation2 + $0xf8] sm:$0xff]
    %v384 = vxor.u32 %v380, 2147483648
    %v385 = vxor.u32 %v381, 2147483648
    %v386 = vxor.u32 %v382, 2147483648
    %v387 = vxor.u32 %v383, 2147483648
    %v388 = vmul.f32 %v384, 1.442695
    %v389 = vpow.pop %v388
    %v390 = vmul.f32 %v385, 1.442695
    %v391 = vpow.pop %v390
    %v392 = vmul.f32 %v386, 1.442695
    %v393 = vpow.pop %v392
    %v394 = vmul.f32 %v387, 1.442695
    %v395 = vpow.pop %v394
    %v396 = vadd.f32 %v389, 1.0
    %v397 = vadd.f32 %v391, 1.0
    %v398 = vadd.f32 %v393, 1.0
    %v399 = vadd.f32 %v395, 1.0
    %v400 = vrcp.pop %v396
    %v401 = vmul.f32 %v396, %v400
    %v402 = vsub.f32 1.0, %v401
    %v403 = vmul.f32 %v400, %v402
    %v404 = vadd.f32 %v400, %v403
    %vm405 = vweird.f32 %v396
    %vm406 = vweird.f32 %v400
    %vm407 = vmor %vm405, %vm406
    %v408 = vsel %vm407, %v400, %v404
    %v409 = vand.u32 2147483647, %v396
    %vm410 = vcmp.eq.f32.partialorder %v409, 8.507059e+37
    %v411 = vand.u32 %v396, 2147483648
    %v412 = vor.u32 1.1754944e-38, %v411
    %v413 = vsel %vm410, %v412, %v408
    %v414 = vmul.f32 1.0, %v413
    %v415 = vrcp.pop %v397
    %v416 = vmul.f32 %v397, %v415
    %v417 = vsub.f32 1.0, %v416
    %v418 = vmul.f32 %v415, %v417
    %v419 = vadd.f32 %v415, %v418
    %vm420 = vweird.f32 %v397
    %vm421 = vweird.f32 %v415
    %vm422 = vmor %vm420, %vm421
    %v423 = vsel %vm422, %v415, %v419
    %v424 = vand.u32 2147483647, %v397
    %vm425 = vcmp.eq.f32.partialorder %v424, 8.507059e+37
    %v426 = vand.u32 %v397, 2147483648
    %v427 = vor.u32 1.1754944e-38, %v426
    %v428 = vsel %vm425, %v427, %v423
    %v429 = vmul.f32 1.0, %v428
    %v430 = vrcp.pop %v398
    %v431 = vmul.f32 %v398, %v430
    %v432 = vsub.f32 1.0, %v431
    %v433 = vmul.f32 %v430, %v432
    %v434 = vadd.f32 %v430, %v433
    %vm435 = vweird.f32 %v398
    %vm436 = vweird.f32 %v430
    %vm437 = vmor %vm435, %vm436
    %v438 = vsel %vm437, %v430, %v434
    %v439 = vand.u32 2147483647, %v398
    %vm440 = vcmp.eq.f32.partialorder %v439, 8.507059e+37
    %v441 = vand.u32 %v398, 2147483648
    %v442 = vor.u32 1.1754944e-38, %v441
    %v443 = vsel %vm440, %v442, %v438
    %v444 = vmul.f32 1.0, %v443
    %v445 = vrcp.pop %v399
    %v446 = vmul.f32 %v399, %v445
    %v447 = vsub.f32 1.0, %v446
    %v448 = vmul.f32 %v445, %v447
    %v449 = vadd.f32 %v445, %v448
    %vm450 = vweird.f32 %v399
    %vm451 = vweird.f32 %v445
    %vm452 = vmor %vm450, %vm451
    %v453 = vsel %vm452, %v445, %v449
    %v454 = vand.u32 2147483647, %v399
    %vm455 = vcmp.eq.f32.partialorder %v454, 8.507059e+37
    %v456 = vand.u32 %v399, 2147483648
    %v457 = vor.u32 1.1754944e-38, %v456
    %v458 = vsel %vm455, %v457, %v453
    %v459 = vmul.f32 1.0, %v458
    %v460 = vmul.f32 %v414, 0.0
    %v461 = vmul.f32 %v444, 0.0
    %v462 = vmul.f32 %v429, 2.0
    %v463 = vmul.f32 %v459, 2.0
    %v464 = vsub.f32 %v462, 1.0
    %v465 = vsub.f32 %v463, 1.0
    %468 = vrot.lane.b32.xlu0 %v464, 64
    %v469 = vpop.permute.xlu0 %468
    %470 = vrot.lane.b32.xlu0 %v465, 64
    %v471 = vpop.permute.xlu0 %470
    %v474 = vmul.f32 %v414, %v469
    %v475 = vmul.f32 %v444, %v471
    %478 = vrot.lane.b32.xlu0 %v474, 64
    %v479 = vpop.permute.xlu0 %478
    %480 = vrot.lane.b32.xlu0 %v475, 64
    %v481 = vpop.permute.xlu0 %480
    %v484 = vadd.f32 %v460, %v479
    %v485 = vadd.f32 %v461, %v481
    %v486 = vtanh.pop %v484
    %v487 = vtanh.pop %v485
    %490 = vrot.lane.b32.xlu0 %v486, 64
    %v491 = vpop.permute.xlu0 %490
    %492 = vrot.lane.b32.xlu0 %v487, 64
    %v493 = vpop.permute.xlu0 %492
    %v496 = vmul.f32 %v429, %v491
    %v497 = vmul.f32 %v459, %v493
    %v498 = vld [vmem:[#allocation2 + $0x20] sm:$0xff]
    %v499 = vld [vmem:[#allocation2 + $0x28] sm:$0xff]
    %v500 = vld [vmem:[#allocation2 + $0xd0] sm:$0xff]
    %v501 = vld [vmem:[#allocation2 + $0xd8] sm:$0xff]
    %v502 = vld [vmem:[#allocation3 + $0x80] sm:$0xff]
    %v503 = vld [vmem:[#allocation3 + $0x88] sm:$0xff]
    %v504 = vld [vmem:[#allocation3 + $0x90] sm:$0xff]
    %v505 = vld [vmem:[#allocation3 + $0x98] sm:$0xff]
    %v506 = vld [vmem:[#allocation3 + $0xa0] sm:$0xff]
    %v507 = vld [vmem:[#allocation3 + $0xa8] sm:$0xff]
    %v508 = vld [vmem:[#allocation3 + $0xb0] sm:$0xff]
    %v509 = vld [vmem:[#allocation3 + $0xb8] sm:$0xff]
    %v510 = vld [vmem:[#allocation3 + $0xc0] sm:$0xff]
    %v511 = vld [vmem:[#allocation3 + $0xc8] sm:$0xff]
    %v512 = vld [vmem:[#allocation3 + $0xd0] sm:$0xff]
    %v513 = vld [vmem:[#allocation3 + $0xd8] sm:$0xff]
    %v514 = vld [vmem:[#allocation3 + $0xe0] sm:$0xff]
    %v515 = vld [vmem:[#allocation3 + $0xe8] sm:$0xff]
    %v516 = vld [vmem:[#allocation3 + $0xf0] sm:$0xff]
    %v517 = vld [vmem:[#allocation3 + $0xf8] sm:$0xff]
    %v518 = vld [vmem:[#allocation3 + $0x100] sm:$0xff]
    %v519 = vld [vmem:[#allocation3 + $0x108] sm:$0xff]
    %v520 = vld [vmem:[#allocation3 + $0x110] sm:$0xff]
    %v521 = vld [vmem:[#allocation3 + $0x118] sm:$0xff]
    %v522 = vld [vmem:[#allocation3 + $0x120] sm:$0xff]
    %v523 = vld [vmem:[#allocation3 + $0x128] sm:$0xff]
    %v524 = vld [vmem:[#allocation3 + $0x130] sm:$0xff]
    %v525 = vld [vmem:[#allocation3 + $0x138] sm:$0xff]
    %v526 = vld [vmem:[#allocation3 + $0x140] sm:$0xff]
    %v527 = vld [vmem:[#allocation3 + $0x148] sm:$0xff]
    %v528 = vld [vmem:[#allocation3 + $0x150] sm:$0xff]
    %v529 = vld [vmem:[#allocation3 + $0x158] sm:$0xff]
    %v530 = vld [vmem:[#allocation3 + $0x160] sm:$0xff]
    %v531 = vld [vmem:[#allocation3 + $0x168] sm:$0xff]
    %v532 = vld [vmem:[#allocation3 + $0x170] sm:$0xff]
    %v533 = vld [vmem:[#allocation3 + $0x178] sm:$0xff]
    %vm534 = vcmask 523264
    %v536 = vsel %vm534, %v496, 0
    %v539 = vsel %vm534, %v497, 0
    %541 = vmatpush.msra.mxu0 0.0
    %542 = vmatpush.msra.mxu0 0.0
    %543 = vmatpush.msra.mxu0 0.0
    %544 = vmatpush.msra.mxu0 0.0
    %545 = vmatpush.msra.mxu0 0.0
    %546 = vmatpush.msra.mxu0 0.0
    %547 = vmatpush.msra.mxu0 0.0
    %548 = vmatpush.msra.mxu0 0.0
    %549 = vmatpush.msra.mxu0 %v530
    %550 = vmatpush.msra.mxu0 %v526
    %551 = vmatpush.msra.mxu0 %v522
    %552 = vmatpush.msra.mxu0 %v518
    %553 = vmatpush.msra.mxu0 %v514
    %554 = vmatpush.msra.mxu0 %v510
    %555 = vmatpush.msra.mxu0 %v506
    %556 = vmatpush.msra.mxu0 %v502
    %557 = vmatmul.f32.gmra.mxu0 %v536
    %v558 = vpop.f32.mrf.mxu0
    %v559 = vadd.f32 0.0, %v558
    %560 = vmatmul.f32.gmra.mxu0 %v539
    %v561 = vpop.f32.mrf.mxu0
    %562 = vdwg.mxu0
    %563 = vmatpush.msra.mxu0 0.0
    %564 = vmatpush.msra.mxu0 0.0
    %565 = vmatpush.msra.mxu0 0.0
    %566 = vmatpush.msra.mxu0 0.0
    %567 = vmatpush.msra.mxu0 0.0
    %568 = vmatpush.msra.mxu0 0.0
    %569 = vmatpush.msra.mxu0 0.0
    %570 = vmatpush.msra.mxu0 0.0
    %571 = vmatpush.msra.mxu0 %v531
    %572 = vmatpush.msra.mxu0 %v527
    %573 = vmatpush.msra.mxu0 %v523
    %574 = vmatpush.msra.mxu0 %v519
    %575 = vmatpush.msra.mxu0 %v515
    %576 = vmatpush.msra.mxu0 %v511
    %577 = vmatpush.msra.mxu0 %v507
    %578 = vmatpush.msra.mxu0 %v503
    %579 = vmatmul.f32.gmra.mxu0 %v536
    %v580 = vpop.f32.mrf.mxu0
    %v581 = vadd.f32 0.0, %v580
    %582 = vmatmul.f32.gmra.mxu0 %v539
    %v583 = vpop.f32.mrf.mxu0
    %584 = vdwg.mxu0
    %585 = vmatpush.msra.mxu0 0.0
    %586 = vmatpush.msra.mxu0 0.0
    %587 = vmatpush.msra.mxu0 0.0
    %588 = vmatpush.msra.mxu0 0.0
    %589 = vmatpush.msra.mxu0 0.0
    %590 = vmatpush.msra.mxu0 0.0
    %591 = vmatpush.msra.mxu0 0.0
    %592 = vmatpush.msra.mxu0 0.0
    %593 = vmatpush.msra.mxu0 %v532
    %594 = vmatpush.msra.mxu0 %v528
    %595 = vmatpush.msra.mxu0 %v524
    %596 = vmatpush.msra.mxu0 %v520
    %597 = vmatpush.msra.mxu0 %v516
    %598 = vmatpush.msra.mxu0 %v512
    %599 = vmatpush.msra.mxu0 %v508
    %600 = vmatpush.msra.mxu0 %v504
    %601 = vmatmul.f32.gmra.mxu0 %v536
    %v602 = vpop.f32.mrf.mxu0
    %603 = vmatmul.f32.gmra.mxu0 %v539
    %v604 = vpop.f32.mrf.mxu0
    %v605 = vadd.f32 0.0, %v604
    %606 = vdwg.mxu0
    %607 = vmatpush.msra.mxu0 0.0
    %608 = vmatpush.msra.mxu0 0.0
    %609 = vmatpush.msra.mxu0 0.0
    %610 = vmatpush.msra.mxu0 0.0
    %611 = vmatpush.msra.mxu0 0.0
    %612 = vmatpush.msra.mxu0 0.0
    %613 = vmatpush.msra.mxu0 0.0
    %614 = vmatpush.msra.mxu0 0.0
    %615 = vmatpush.msra.mxu0 %v533
    %616 = vmatpush.msra.mxu0 %v529
    %617 = vmatpush.msra.mxu0 %v525
    %618 = vmatpush.msra.mxu0 %v521
    %619 = vmatpush.msra.mxu0 %v517
    %620 = vmatpush.msra.mxu0 %v513
    %621 = vmatpush.msra.mxu0 %v509
    %622 = vmatpush.msra.mxu0 %v505
    %623 = vmatmul.f32.gmra.mxu0 %v536
    %v624 = vpop.f32.mrf.mxu0
    %625 = vmatmul.f32.gmra.mxu0 %v539
    %v626 = vpop.f32.mrf.mxu0
    %v627 = vadd.f32 0.0, %v626
    %628 = vdwg.mxu0
    %v629 = vadd.f32 %v498, %v559
    %v630 = vadd.f32 %v499, %v581
    %v631 = vadd.f32 %v500, %v605
    %v632 = vadd.f32 %v501, %v627
    %v633 = vxor.u32 %v629, 2147483648
    %v634 = vxor.u32 %v630, 2147483648
    %v635 = vxor.u32 %v631, 2147483648
    %v636 = vxor.u32 %v632, 2147483648
    %v637 = vmul.f32 %v633, 1.442695
    %v638 = vpow.pop %v637
    %v639 = vmul.f32 %v634, 1.442695
    %v640 = vpow.pop %v639
    %v641 = vmul.f32 %v635, 1.442695
    %v642 = vpow.pop %v641
    %v643 = vmul.f32 %v636, 1.442695
    %v644 = vpow.pop %v643
    %v645 = vadd.f32 %v638, 1.0
    %v646 = vadd.f32 %v640, 1.0
    %v647 = vadd.f32 %v642, 1.0
    %v648 = vadd.f32 %v644, 1.0
    %v649 = vrcp.pop %v645
    %v650 = vmul.f32 %v645, %v649
    %v651 = vsub.f32 1.0, %v650
    %v652 = vmul.f32 %v649, %v651
    %v653 = vadd.f32 %v649, %v652
    %vm654 = vweird.f32 %v645
    %vm655 = vweird.f32 %v649
    %vm656 = vmor %vm654, %vm655
    %v657 = vsel %vm656, %v649, %v653
    %v658 = vand.u32 2147483647, %v645
    %vm659 = vcmp.eq.f32.partialorder %v658, 8.507059e+37
    %v660 = vand.u32 %v645, 2147483648
    %v661 = vor.u32 1.1754944e-38, %v660
    %v662 = vsel %vm659, %v661, %v657
    %v663 = vmul.f32 1.0, %v662
    %v664 = vrcp.pop %v646
    %v665 = vmul.f32 %v646, %v664
    %v666 = vsub.f32 1.0, %v665
    %v667 = vmul.f32 %v664, %v666
    %v668 = vadd.f32 %v664, %v667
    %vm669 = vweird.f32 %v646
    %vm670 = vweird.f32 %v664
    %vm671 = vmor %vm669, %vm670
    %v672 = vsel %vm671, %v664, %v668
    %v673 = vand.u32 2147483647, %v646
    %vm674 = vcmp.eq.f32.partialorder %v673, 8.507059e+37
    %v675 = vand.u32 %v646, 2147483648
    %v676 = vor.u32 1.1754944e-38, %v675
    %v677 = vsel %vm674, %v676, %v672
    %v678 = vmul.f32 1.0, %v677
    %v679 = vrcp.pop %v647
    %v680 = vmul.f32 %v647, %v679
    %v681 = vsub.f32 1.0, %v680
    %v682 = vmul.f32 %v679, %v681
    %v683 = vadd.f32 %v679, %v682
    %vm684 = vweird.f32 %v647
    %vm685 = vweird.f32 %v679
    %vm686 = vmor %vm684, %vm685
    %v687 = vsel %vm686, %v679, %v683
    %v688 = vand.u32 2147483647, %v647
    %vm689 = vcmp.eq.f32.partialorder %v688, 8.507059e+37
    %v690 = vand.u32 %v647, 2147483648
    %v691 = vor.u32 1.1754944e-38, %v690
    %v692 = vsel %vm689, %v691, %v687
    %v693 = vmul.f32 1.0, %v692
    %v694 = vrcp.pop %v648
    %v695 = vmul.f32 %v648, %v694
    %v696 = vsub.f32 1.0, %v695
    %v697 = vmul.f32 %v694, %v696
    %v698 = vadd.f32 %v694, %v697
    %vm699 = vweird.f32 %v648
    %vm700 = vweird.f32 %v694
    %vm701 = vmor %vm699, %vm700
    %v702 = vsel %vm701, %v694, %v698
    %v703 = vand.u32 2147483647, %v648
    %vm704 = vcmp.eq.f32.partialorder %v703, 8.507059e+37
    %v705 = vand.u32 %v648, 2147483648
    %v706 = vor.u32 1.1754944e-38, %v705
    %v707 = vsel %vm704, %v706, %v702
    %v708 = vmul.f32 1.0, %v707
    %v709 = vmul.f32 %v663, %v484
    %v710 = vmul.f32 %v693, %v485
    %v711 = vmul.f32 %v678, 2.0
    %v712 = vmul.f32 %v708, 2.0
    %v713 = vsub.f32 %v711, 1.0
    %v714 = vsub.f32 %v712, 1.0
    %717 = vrot.lane.b32.xlu0 %v713, 64
    %v718 = vpop.permute.xlu0 %717
    %719 = vrot.lane.b32.xlu0 %v714, 64
    %v720 = vpop.permute.xlu0 %719
    %v723 = vmul.f32 %v663, %v718
    %v724 = vmul.f32 %v693, %v720
    %727 = vrot.lane.b32.xlu0 %v723, 64
    %v728 = vpop.permute.xlu0 %727
    %729 = vrot.lane.b32.xlu0 %v724, 64
    %v730 = vpop.permute.xlu0 %729
    %v733 = vadd.f32 %v709, %v728
    %v734 = vadd.f32 %v710, %v730
    %v735 = vtanh.pop %v733
    %v736 = vtanh.pop %v734
    %739 = vrot.lane.b32.xlu0 %v735, 64
    %v740 = vpop.permute.xlu0 %739
    %741 = vrot.lane.b32.xlu0 %v736, 64
    %v742 = vpop.permute.xlu0 %741
    %v745 = vmul.f32 %v678, %v740
    %v746 = vmul.f32 %v708, %v742
    %v747 = vld [vmem:[#allocation2 + $0x40] sm:$0xff]
    %v748 = vld [vmem:[#allocation2 + $0x48] sm:$0xff]
    %v749 = vld [vmem:[#allocation2 + $0xb0] sm:$0xff]
    %v750 = vld [vmem:[#allocation2 + $0xb8] sm:$0xff]
    %v752 = vsel %vm534, %v745, 0
    %v755 = vsel %vm534, %v746, 0
    %757 = vmatpush.msra.mxu0 0.0
    %758 = vmatpush.msra.mxu0 0.0
    %759 = vmatpush.msra.mxu0 0.0
    %760 = vmatpush.msra.mxu0 0.0
    %761 = vmatpush.msra.mxu0 0.0
    %762 = vmatpush.msra.mxu0 0.0
    %763 = vmatpush.msra.mxu0 0.0
    %764 = vmatpush.msra.mxu0 0.0
    %765 = vmatpush.msra.mxu0 %v530
    %766 = vmatpush.msra.mxu0 %v526
    %767 = vmatpush.msra.mxu0 %v522
    %768 = vmatpush.msra.mxu0 %v518
    %769 = vmatpush.msra.mxu0 %v514
    %770 = vmatpush.msra.mxu0 %v510
    %771 = vmatpush.msra.mxu0 %v506
    %772 = vmatpush.msra.mxu0 %v502
    %773 = vmatmul.f32.gmra.mxu0 %v752
    %v774 = vpop.f32.mrf.mxu0
    %v775 = vadd.f32 0.0, %v774
    %776 = vmatmul.f32.gmra.mxu0 %v755
    %v777 = vpop.f32.mrf.mxu0
    %778 = vdwg.mxu0
    %779 = vmatpush.msra.mxu0 0.0
    %780 = vmatpush.msra.mxu0 0.0
    %781 = vmatpush.msra.mxu0 0.0
    %782 = vmatpush.msra.mxu0 0.0
    %783 = vmatpush.msra.mxu0 0.0
    %784 = vmatpush.msra.mxu0 0.0
    %785 = vmatpush.msra.mxu0 0.0
    %786 = vmatpush.msra.mxu0 0.0
    %787 = vmatpush.msra.mxu0 %v531
    %788 = vmatpush.msra.mxu0 %v527
    %789 = vmatpush.msra.mxu0 %v523
    %790 = vmatpush.msra.mxu0 %v519
    %791 = vmatpush.msra.mxu0 %v515
    %792 = vmatpush.msra.mxu0 %v511
    %793 = vmatpush.msra.mxu0 %v507
    %794 = vmatpush.msra.mxu0 %v503
    %795 = vmatmul.f32.gmra.mxu0 %v752
    %v796 = vpop.f32.mrf.mxu0
    %v797 = vadd.f32 0.0, %v796
    %798 = vmatmul.f32.gmra.mxu0 %v755
    %v799 = vpop.f32.mrf.mxu0
    %800 = vdwg.mxu0
    %801 = vmatpush.msra.mxu0 0.0
    %802 = vmatpush.msra.mxu0 0.0
    %803 = vmatpush.msra.mxu0 0.0
    %804 = vmatpush.msra.mxu0 0.0
    %805 = vmatpush.msra.mxu0 0.0
    %806 = vmatpush.msra.mxu0 0.0
    %807 = vmatpush.msra.mxu0 0.0
    %808 = vmatpush.msra.mxu0 0.0
    %809 = vmatpush.msra.mxu0 %v532
    %810 = vmatpush.msra.mxu0 %v528
    %811 = vmatpush.msra.mxu0 %v524
    %812 = vmatpush.msra.mxu0 %v520
    %813 = vmatpush.msra.mxu0 %v516
    %814 = vmatpush.msra.mxu0 %v512
    %815 = vmatpush.msra.mxu0 %v508
    %816 = vmatpush.msra.mxu0 %v504
    %817 = vmatmul.f32.gmra.mxu0 %v752
    %v818 = vpop.f32.mrf.mxu0
    %819 = vmatmul.f32.gmra.mxu0 %v755
    %v820 = vpop.f32.mrf.mxu0
    %v821 = vadd.f32 0.0, %v820
    %822 = vdwg.mxu0
    %823 = vmatpush.msra.mxu0 0.0
    %824 = vmatpush.msra.mxu0 0.0
    %825 = vmatpush.msra.mxu0 0.0
    %826 = vmatpush.msra.mxu0 0.0
    %827 = vmatpush.msra.mxu0 0.0
    %828 = vmatpush.msra.mxu0 0.0
    %829 = vmatpush.msra.mxu0 0.0
    %830 = vmatpush.msra.mxu0 0.0
    %831 = vmatpush.msra.mxu0 %v533
    %832 = vmatpush.msra.mxu0 %v529
    %833 = vmatpush.msra.mxu0 %v525
    %834 = vmatpush.msra.mxu0 %v521
    %835 = vmatpush.msra.mxu0 %v517
    %836 = vmatpush.msra.mxu0 %v513
    %837 = vmatpush.msra.mxu0 %v509
    %838 = vmatpush.msra.mxu0 %v505
    %839 = vmatmul.f32.gmra.mxu0 %v752
    %v840 = vpop.f32.mrf.mxu0
    %841 = vmatmul.f32.gmra.mxu0 %v755
    %v842 = vpop.f32.mrf.mxu0
    %v843 = vadd.f32 0.0, %v842
    %844 = vdwg.mxu0
    %v845 = vadd.f32 %v747, %v775
    %v846 = vadd.f32 %v748, %v797
    %v847 = vadd.f32 %v749, %v821
    %v848 = vadd.f32 %v750, %v843
    %v849 = vxor.u32 %v845, 2147483648
    %v850 = vxor.u32 %v846, 2147483648
    %v851 = vxor.u32 %v847, 2147483648
    %v852 = vxor.u32 %v848, 2147483648
    %v853 = vmul.f32 %v849, 1.442695
    %v854 = vpow.pop %v853
    %v855 = vmul.f32 %v850, 1.442695
    %v856 = vpow.pop %v855
    %v857 = vmul.f32 %v851, 1.442695
    %v858 = vpow.pop %v857
    %v859 = vmul.f32 %v852, 1.442695
    %v860 = vpow.pop %v859
    %v861 = vadd.f32 %v854, 1.0
    %v862 = vadd.f32 %v856, 1.0
    %v863 = vadd.f32 %v858, 1.0
    %v864 = vadd.f32 %v860, 1.0
    %v865 = vrcp.pop %v861
    %v866 = vmul.f32 %v861, %v865
    %v867 = vsub.f32 1.0, %v866
    %v868 = vmul.f32 %v865, %v867
    %v869 = vadd.f32 %v865, %v868
    %vm870 = vweird.f32 %v861
    %vm871 = vweird.f32 %v865
    %vm872 = vmor %vm870, %vm871
    %v873 = vsel %vm872, %v865, %v869
    %v874 = vand.u32 2147483647, %v861
    %vm875 = vcmp.eq.f32.partialorder %v874, 8.507059e+37
    %v876 = vand.u32 %v861, 2147483648
    %v877 = vor.u32 1.1754944e-38, %v876
    %v878 = vsel %vm875, %v877, %v873
    %v879 = vmul.f32 1.0, %v878
    %v880 = vrcp.pop %v862
    %v881 = vmul.f32 %v862, %v880
    %v882 = vsub.f32 1.0, %v881
    %v883 = vmul.f32 %v880, %v882
    %v884 = vadd.f32 %v880, %v883
    %vm885 = vweird.f32 %v862
    %vm886 = vweird.f32 %v880
    %vm887 = vmor %vm885, %vm886
    %v888 = vsel %vm887, %v880, %v884
    %v889 = vand.u32 2147483647, %v862
    %vm890 = vcmp.eq.f32.partialorder %v889, 8.507059e+37
    %v891 = vand.u32 %v862, 2147483648
    %v892 = vor.u32 1.1754944e-38, %v891
    %v893 = vsel %vm890, %v892, %v888
    %v894 = vmul.f32 1.0, %v893
    %v895 = vrcp.pop %v863
    %v896 = vmul.f32 %v863, %v895
    %v897 = vsub.f32 1.0, %v896
    %v898 = vmul.f32 %v895, %v897
    %v899 = vadd.f32 %v895, %v898
    %vm900 = vweird.f32 %v863
    %vm901 = vweird.f32 %v895
    %vm902 = vmor %vm900, %vm901
    %v903 = vsel %vm902, %v895, %v899
    %v904 = vand.u32 2147483647, %v863
    %vm905 = vcmp.eq.f32.partialorder %v904, 8.507059e+37
    %v906 = vand.u32 %v863, 2147483648
    %v907 = vor.u32 1.1754944e-38, %v906
    %v908 = vsel %vm905, %v907, %v903
    %v909 = vmul.f32 1.0, %v908
    %v910 = vrcp.pop %v864
    %v911 = vmul.f32 %v864, %v910
    %v912 = vsub.f32 1.0, %v911
    %v913 = vmul.f32 %v910, %v912
    %v914 = vadd.f32 %v910, %v913
    %vm915 = vweird.f32 %v864
    %vm916 = vweird.f32 %v910
    %vm917 = vmor %vm915, %vm916
    %v918 = vsel %vm917, %v910, %v914
    %v919 = vand.u32 2147483647, %v864
    %vm920 = vcmp.eq.f32.partialorder %v919, 8.507059e+37
    %v921 = vand.u32 %v864, 2147483648
    %v922 = vor.u32 1.1754944e-38, %v921
    %v923 = vsel %vm920, %v922, %v918
    %v924 = vmul.f32 1.0, %v923
    %v925 = vmul.f32 %v879, %v733
    %v926 = vmul.f32 %v909, %v734
    %v927 = vmul.f32 %v894, 2.0
    %v928 = vmul.f32 %v924, 2.0
    %v929 = vsub.f32 %v927, 1.0
    %v930 = vsub.f32 %v928, 1.0
    %933 = vrot.lane.b32.xlu0 %v929, 64
    %v934 = vpop.permute.xlu0 %933
    %935 = vrot.lane.b32.xlu0 %v930, 64
    %v936 = vpop.permute.xlu0 %935
    %v939 = vmul.f32 %v879, %v934
    %v940 = vmul.f32 %v909, %v936
    %943 = vrot.lane.b32.xlu0 %v939, 64
    %v944 = vpop.permute.xlu0 %943
    %945 = vrot.lane.b32.xlu0 %v940, 64
    %v946 = vpop.permute.xlu0 %945
    %v949 = vadd.f32 %v925, %v944
    %v950 = vadd.f32 %v926, %v946
    %v951 = vtanh.pop %v949
    %v952 = vtanh.pop %v950
    %955 = vrot.lane.b32.xlu0 %v951, 64
    %v956 = vpop.permute.xlu0 %955
    %957 = vrot.lane.b32.xlu0 %v952, 64
    %v958 = vpop.permute.xlu0 %957
    %v961 = vmul.f32 %v894, %v956
    %v962 = vmul.f32 %v924, %v958
    %v963 = vld [vmem:[#allocation2 + $0x60] sm:$0xff]
    %v964 = vld [vmem:[#allocation2 + $0x68] sm:$0xff]
    %v965 = vld [vmem:[#allocation2 + $0x90] sm:$0xff]
    %v966 = vld [vmem:[#allocation2 + $0x98] sm:$0xff]
    %v968 = vsel %vm534, %v961, 0
    %v971 = vsel %vm534, %v962, 0
    %973 = vmatpush.msra.mxu0 0.0
    %974 = vmatpush.msra.mxu0 0.0
    %975 = vmatpush.msra.mxu0 0.0
    %976 = vmatpush.msra.mxu0 0.0
    %977 = vmatpush.msra.mxu0 0.0
    %978 = vmatpush.msra.mxu0 0.0
    %979 = vmatpush.msra.mxu0 0.0
    %980 = vmatpush.msra.mxu0 0.0
    %981 = vmatpush.msra.mxu0 %v530
    %982 = vmatpush.msra.mxu0 %v526
    %983 = vmatpush.msra.mxu0 %v522
    %984 = vmatpush.msra.mxu0 %v518
    %985 = vmatpush.msra.mxu0 %v514
    %986 = vmatpush.msra.mxu0 %v510
    %987 = vmatpush.msra.mxu0 %v506
    %988 = vmatpush.msra.mxu0 %v502
    %989 = vmatmul.f32.gmra.mxu0 %v968
    %v990 = vpop.f32.mrf.mxu0
    %v991 = vadd.f32 0.0, %v990
    %992 = vmatmul.f32.gmra.mxu0 %v971
    %v993 = vpop.f32.mrf.mxu0
    %994 = vdwg.mxu0
    %995 = vmatpush.msra.mxu0 0.0
    %996 = vmatpush.msra.mxu0 0.0
    %997 = vmatpush.msra.mxu0 0.0
    %998 = vmatpush.msra.mxu0 0.0
    %999 = vmatpush.msra.mxu0 0.0
    %1000 = vmatpush.msra.mxu0 0.0
    %1001 = vmatpush.msra.mxu0 0.0
    %1002 = vmatpush.msra.mxu0 0.0
    %1003 = vmatpush.msra.mxu0 %v531
    %1004 = vmatpush.msra.mxu0 %v527
    %1005 = vmatpush.msra.mxu0 %v523
    %1006 = vmatpush.msra.mxu0 %v519
    %1007 = vmatpush.msra.mxu0 %v515
    %1008 = vmatpush.msra.mxu0 %v511
    %1009 = vmatpush.msra.mxu0 %v507
    %1010 = vmatpush.msra.mxu0 %v503
    %1011 = vmatmul.f32.gmra.mxu0 %v968
    %v1012 = vpop.f32.mrf.mxu0
    %v1013 = vadd.f32 0.0, %v1012
    %1014 = vmatmul.f32.gmra.mxu0 %v971
    %v1015 = vpop.f32.mrf.mxu0
    %1016 = vdwg.mxu0
    %1017 = vmatpush.msra.mxu0 0.0
    %1018 = vmatpush.msra.mxu0 0.0
    %1019 = vmatpush.msra.mxu0 0.0
    %1020 = vmatpush.msra.mxu0 0.0
    %1021 = vmatpush.msra.mxu0 0.0
    %1022 = vmatpush.msra.mxu0 0.0
    %1023 = vmatpush.msra.mxu0 0.0
    %1024 = vmatpush.msra.mxu0 0.0
    %1025 = vmatpush.msra.mxu0 %v532
    %1026 = vmatpush.msra.mxu0 %v528
    %1027 = vmatpush.msra.mxu0 %v524
    %1028 = vmatpush.msra.mxu0 %v520
    %1029 = vmatpush.msra.mxu0 %v516
    %1030 = vmatpush.msra.mxu0 %v512
    %1031 = vmatpush.msra.mxu0 %v508
    %1032 = vmatpush.msra.mxu0 %v504
    %1033 = vmatmul.f32.gmra.mxu0 %v968
    %v1034 = vpop.f32.mrf.mxu0
    %1035 = vmatmul.f32.gmra.mxu0 %v971
    %v1036 = vpop.f32.mrf.mxu0
    %v1037 = vadd.f32 0.0, %v1036
    %1038 = vdwg.mxu0
    %1039 = vmatpush.msra.mxu0 0.0
    %1040 = vmatpush.msra.mxu0 0.0
    %1041 = vmatpush.msra.mxu0 0.0
    %1042 = vmatpush.msra.mxu0 0.0
    %1043 = vmatpush.msra.mxu0 0.0
    %1044 = vmatpush.msra.mxu0 0.0
    %1045 = vmatpush.msra.mxu0 0.0
    %1046 = vmatpush.msra.mxu0 0.0
    %1047 = vmatpush.msra.mxu0 %v533
    %1048 = vmatpush.msra.mxu0 %v529
    %1049 = vmatpush.msra.mxu0 %v525
    %1050 = vmatpush.msra.mxu0 %v521
    %1051 = vmatpush.msra.mxu0 %v517
    %1052 = vmatpush.msra.mxu0 %v513
    %1053 = vmatpush.msra.mxu0 %v509
    %1054 = vmatpush.msra.mxu0 %v505
    %1055 = vmatmul.f32.gmra.mxu0 %v968
    %v1056 = vpop.f32.mrf.mxu0
    %1057 = vmatmul.f32.gmra.mxu0 %v971
    %v1058 = vpop.f32.mrf.mxu0
    %v1059 = vadd.f32 0.0, %v1058
    %1060 = vdwg.mxu0
    %v1061 = vadd.f32 %v963, %v991
    %v1062 = vadd.f32 %v964, %v1013
    %v1063 = vadd.f32 %v965, %v1037
    %v1064 = vadd.f32 %v966, %v1059
    %v1065 = vxor.u32 %v1061, 2147483648
    %v1066 = vxor.u32 %v1062, 2147483648
    %v1067 = vxor.u32 %v1063, 2147483648
    %v1068 = vxor.u32 %v1064, 2147483648
    %v1069 = vmul.f32 %v1065, 1.442695
    %v1070 = vpow.pop %v1069
    %v1071 = vmul.f32 %v1066, 1.442695
    %v1072 = vpow.pop %v1071
    %v1073 = vmul.f32 %v1067, 1.442695
    %v1074 = vpow.pop %v1073
    %v1075 = vmul.f32 %v1068, 1.442695
    %v1076 = vpow.pop %v1075
    %v1077 = vadd.f32 %v1070, 1.0
    %v1078 = vadd.f32 %v1072, 1.0
    %v1079 = vadd.f32 %v1074, 1.0
    %v1080 = vadd.f32 %v1076, 1.0
    %v1081 = vrcp.pop %v1077
    %v1082 = vmul.f32 %v1077, %v1081
    %v1083 = vsub.f32 1.0, %v1082
    %v1084 = vmul.f32 %v1081, %v1083
    %v1085 = vadd.f32 %v1081, %v1084
    %vm1086 = vweird.f32 %v1077
    %vm1087 = vweird.f32 %v1081
    %vm1088 = vmor %vm1086, %vm1087
    %v1089 = vsel %vm1088, %v1081, %v1085
    %v1090 = vand.u32 2147483647, %v1077
    %vm1091 = vcmp.eq.f32.partialorder %v1090, 8.507059e+37
    %v1092 = vand.u32 %v1077, 2147483648
    %v1093 = vor.u32 1.1754944e-38, %v1092
    %v1094 = vsel %vm1091, %v1093, %v1089
    %v1095 = vmul.f32 1.0, %v1094
    %v1096 = vrcp.pop %v1078
    %v1097 = vmul.f32 %v1078, %v1096
    %v1098 = vsub.f32 1.0, %v1097
    %v1099 = vmul.f32 %v1096, %v1098
    %v1100 = vadd.f32 %v1096, %v1099
    %vm1101 = vweird.f32 %v1078
    %vm1102 = vweird.f32 %v1096
    %vm1103 = vmor %vm1101, %vm1102
    %v1104 = vsel %vm1103, %v1096, %v1100
    %v1105 = vand.u32 2147483647, %v1078
    %vm1106 = vcmp.eq.f32.partialorder %v1105, 8.507059e+37
    %v1107 = vand.u32 %v1078, 2147483648
    %v1108 = vor.u32 1.1754944e-38, %v1107
    %v1109 = vsel %vm1106, %v1108, %v1104
    %v1110 = vmul.f32 1.0, %v1109
    %v1111 = vrcp.pop %v1079
    %v1112 = vmul.f32 %v1079, %v1111
    %v1113 = vsub.f32 1.0, %v1112
    %v1114 = vmul.f32 %v1111, %v1113
    %v1115 = vadd.f32 %v1111, %v1114
    %vm1116 = vweird.f32 %v1079
    %vm1117 = vweird.f32 %v1111
    %vm1118 = vmor %vm1116, %vm1117
    %v1119 = vsel %vm1118, %v1111, %v1115
    %v1120 = vand.u32 2147483647, %v1079
    %vm1121 = vcmp.eq.f32.partialorder %v1120, 8.507059e+37
    %v1122 = vand.u32 %v1079, 2147483648
    %v1123 = vor.u32 1.1754944e-38, %v1122
    %v1124 = vsel %vm1121, %v1123, %v1119
    %v1125 = vmul.f32 1.0, %v1124
    %v1126 = vrcp.pop %v1080
    %v1127 = vmul.f32 %v1080, %v1126
    %v1128 = vsub.f32 1.0, %v1127
    %v1129 = vmul.f32 %v1126, %v1128
    %v1130 = vadd.f32 %v1126, %v1129
    %vm1131 = vweird.f32 %v1080
    %vm1132 = vweird.f32 %v1126
    %vm1133 = vmor %vm1131, %vm1132
    %v1134 = vsel %vm1133, %v1126, %v1130
    %v1135 = vand.u32 2147483647, %v1080
    %vm1136 = vcmp.eq.f32.partialorder %v1135, 8.507059e+37
    %v1137 = vand.u32 %v1080, 2147483648
    %v1138 = vor.u32 1.1754944e-38, %v1137
    %v1139 = vsel %vm1136, %v1138, %v1134
    %v1140 = vmul.f32 1.0, %v1139
    %v1141 = vmul.f32 %v1095, %v949
    %v1142 = vmul.f32 %v1125, %v950
    %v1143 = vmul.f32 %v1110, 2.0
    %v1144 = vmul.f32 %v1140, 2.0
    %v1145 = vsub.f32 %v1143, 1.0
    %v1146 = vsub.f32 %v1144, 1.0
    %1149 = vrot.lane.b32.xlu0 %v1145, 64
    %v1150 = vpop.permute.xlu0 %1149
    %1151 = vrot.lane.b32.xlu0 %v1146, 64
    %v1152 = vpop.permute.xlu0 %1151
    %v1155 = vmul.f32 %v1095, %v1150
    %v1156 = vmul.f32 %v1125, %v1152
    %1159 = vrot.lane.b32.xlu0 %v1155, 64
    %v1160 = vpop.permute.xlu0 %1159
    %1161 = vrot.lane.b32.xlu0 %v1156, 64
    %v1162 = vpop.permute.xlu0 %1161
    %v1165 = vadd.f32 %v1141, %v1160
    %v1166 = vadd.f32 %v1142, %v1162
    %v1167 = vtanh.pop %v1165
    %v1168 = vtanh.pop %v1166
    %1171 = vrot.lane.b32.xlu0 %v1167, 64
    %v1172 = vpop.permute.xlu0 %1171
    %1173 = vrot.lane.b32.xlu0 %v1168, 64
    %v1174 = vpop.permute.xlu0 %1173
    %v1177 = vmul.f32 %v1110, %v1172
    %v1178 = vmul.f32 %v1140, %v1174
    %v1179 = vld [vmem:[#allocation2 + $0x80] sm:$0xff]
    %v1180 = vld [vmem:[#allocation2 + $0x88] sm:$0xff]
    %v1181 = vld [vmem:[#allocation2 + $0x70] sm:$0xff]
    %v1182 = vld [vmem:[#allocation2 + $0x78] sm:$0xff]
    %v1184 = vsel %vm534, %v1177, 0
    %v1187 = vsel %vm534, %v1178, 0
    %1189 = vmatpush.msra.mxu0 0.0
    %1190 = vmatpush.msra.mxu0 0.0
    %1191 = vmatpush.msra.mxu0 0.0
    %1192 = vmatpush.msra.mxu0 0.0
    %1193 = vmatpush.msra.mxu0 0.0
    %1194 = vmatpush.msra.mxu0 0.0
    %1195 = vmatpush.msra.mxu0 0.0
    %1196 = vmatpush.msra.mxu0 0.0
    %1197 = vmatpush.msra.mxu0 %v530
    %1198 = vmatpush.msra.mxu0 %v526
    %1199 = vmatpush.msra.mxu0 %v522
    %1200 = vmatpush.msra.mxu0 %v518
    %1201 = vmatpush.msra.mxu0 %v514
    %1202 = vmatpush.msra.mxu0 %v510
    %1203 = vmatpush.msra.mxu0 %v506
    %1204 = vmatpush.msra.mxu0 %v502
    %1205 = vmatmul.f32.gmra.mxu0 %v1184
    %v1206 = vpop.f32.mrf.mxu0
    %v1207 = vadd.f32 0.0, %v1206
    %1208 = vmatmul.f32.gmra.mxu0 %v1187
    %v1209 = vpop.f32.mrf.mxu0
    %1210 = vdwg.mxu0
    %1211 = vmatpush.msra.mxu0 0.0
    %1212 = vmatpush.msra.mxu0 0.0
    %1213 = vmatpush.msra.mxu0 0.0
    %1214 = vmatpush.msra.mxu0 0.0
    %1215 = vmatpush.msra.mxu0 0.0
    %1216 = vmatpush.msra.mxu0 0.0
    %1217 = vmatpush.msra.mxu0 0.0
    %1218 = vmatpush.msra.mxu0 0.0
    %1219 = vmatpush.msra.mxu0 %v531
    %1220 = vmatpush.msra.mxu0 %v527
    %1221 = vmatpush.msra.mxu0 %v523
    %1222 = vmatpush.msra.mxu0 %v519
    %1223 = vmatpush.msra.mxu0 %v515
    %1224 = vmatpush.msra.mxu0 %v511
    %1225 = vmatpush.msra.mxu0 %v507
    %1226 = vmatpush.msra.mxu0 %v503
    %1227 = vmatmul.f32.gmra.mxu0 %v1184
    %v1228 = vpop.f32.mrf.mxu0
    %v1229 = vadd.f32 0.0, %v1228
    %1230 = vmatmul.f32.gmra.mxu0 %v1187
    %v1231 = vpop.f32.mrf.mxu0
    %1232 = vdwg.mxu0
    %1233 = vmatpush.msra.mxu0 0.0
    %1234 = vmatpush.msra.mxu0 0.0
    %1235 = vmatpush.msra.mxu0 0.0
    %1236 = vmatpush.msra.mxu0 0.0
    %1237 = vmatpush.msra.mxu0 0.0
    %1238 = vmatpush.msra.mxu0 0.0
    %1239 = vmatpush.msra.mxu0 0.0
    %1240 = vmatpush.msra.mxu0 0.0
    %1241 = vmatpush.msra.mxu0 %v532
    %1242 = vmatpush.msra.mxu0 %v528
    %1243 = vmatpush.msra.mxu0 %v524
    %1244 = vmatpush.msra.mxu0 %v520
    %1245 = vmatpush.msra.mxu0 %v516
    %1246 = vmatpush.msra.mxu0 %v512
    %1247 = vmatpush.msra.mxu0 %v508
    %1248 = vmatpush.msra.mxu0 %v504
    %1249 = vmatmul.f32.gmra.mxu0 %v1184
    %v1250 = vpop.f32.mrf.mxu0
    %1251 = vmatmul.f32.gmra.mxu0 %v1187
    %v1252 = vpop.f32.mrf.mxu0
    %v1253 = vadd.f32 0.0, %v1252
    %1254 = vdwg.mxu0
    %1255 = vmatpush.msra.mxu0 0.0
    %1256 = vmatpush.msra.mxu0 0.0
    %1257 = vmatpush.msra.mxu0 0.0
    %1258 = vmatpush.msra.mxu0 0.0
    %1259 = vmatpush.msra.mxu0 0.0
    %1260 = vmatpush.msra.mxu0 0.0
    %1261 = vmatpush.msra.mxu0 0.0
    %1262 = vmatpush.msra.mxu0 0.0
    %1263 = vmatpush.msra.mxu0 %v533
    %1264 = vmatpush.msra.mxu0 %v529
    %1265 = vmatpush.msra.mxu0 %v525
    %1266 = vmatpush.msra.mxu0 %v521
    %1267 = vmatpush.msra.mxu0 %v517
    %1268 = vmatpush.msra.mxu0 %v513
    %1269 = vmatpush.msra.mxu0 %v509
    %1270 = vmatpush.msra.mxu0 %v505
    %1271 = vmatmul.f32.gmra.mxu0 %v1184
    %v1272 = vpop.f32.mrf.mxu0
    %1273 = vmatmul.f32.gmra.mxu0 %v1187
    %v1274 = vpop.f32.mrf.mxu0
    %v1275 = vadd.f32 0.0, %v1274
    %1276 = vdwg.mxu0
    %v1277 = vadd.f32 %v1179, %v1207
    %v1278 = vadd.f32 %v1180, %v1229
    %v1279 = vadd.f32 %v1181, %v1253
    %v1280 = vadd.f32 %v1182, %v1275
    %v1281 = vxor.u32 %v1277, 2147483648
    %v1282 = vxor.u32 %v1278, 2147483648
    %v1283 = vxor.u32 %v1279, 2147483648
    %v1284 = vxor.u32 %v1280, 2147483648
    %v1285 = vmul.f32 %v1281, 1.442695
    %v1286 = vpow.pop %v1285
    %v1287 = vmul.f32 %v1282, 1.442695
    %v1288 = vpow.pop %v1287
    %v1289 = vmul.f32 %v1283, 1.442695
    %v1290 = vpow.pop %v1289
    %v1291 = vmul.f32 %v1284, 1.442695
    %v1292 = vpow.pop %v1291
    %v1293 = vadd.f32 %v1286, 1.0
    %v1294 = vadd.f32 %v1288, 1.0
    %v1295 = vadd.f32 %v1290, 1.0
    %v1296 = vadd.f32 %v1292, 1.0
    %v1297 = vrcp.pop %v1293
    %v1298 = vmul.f32 %v1293, %v1297
    %v1299 = vsub.f32 1.0, %v1298
    %v1300 = vmul.f32 %v1297, %v1299
    %v1301 = vadd.f32 %v1297, %v1300
    %vm1302 = vweird.f32 %v1293
    %vm1303 = vweird.f32 %v1297
    %vm1304 = vmor %vm1302, %vm1303
    %v1305 = vsel %vm1304, %v1297, %v1301
    %v1306 = vand.u32 2147483647, %v1293
    %vm1307 = vcmp.eq.f32.partialorder %v1306, 8.507059e+37
    %v1308 = vand.u32 %v1293, 2147483648
    %v1309 = vor.u32 1.1754944e-38, %v1308
    %v1310 = vsel %vm1307, %v1309, %v1305
    %v1311 = vmul.f32 1.0, %v1310
    %v1312 = vrcp.pop %v1294
    %v1313 = vmul.f32 %v1294, %v1312
    %v1314 = vsub.f32 1.0, %v1313
    %v1315 = vmul.f32 %v1312, %v1314
    %v1316 = vadd.f32 %v1312, %v1315
    %vm1317 = vweird.f32 %v1294
    %vm1318 = vweird.f32 %v1312
    %vm1319 = vmor %vm1317, %vm1318
    %v1320 = vsel %vm1319, %v1312, %v1316
    %v1321 = vand.u32 2147483647, %v1294
    %vm1322 = vcmp.eq.f32.partialorder %v1321, 8.507059e+37
    %v1323 = vand.u32 %v1294, 2147483648
    %v1324 = vor.u32 1.1754944e-38, %v1323
    %v1325 = vsel %vm1322, %v1324, %v1320
    %v1326 = vmul.f32 1.0, %v1325
    %v1327 = vrcp.pop %v1295
    %v1328 = vmul.f32 %v1295, %v1327
    %v1329 = vsub.f32 1.0, %v1328
    %v1330 = vmul.f32 %v1327, %v1329
    %v1331 = vadd.f32 %v1327, %v1330
    %vm1332 = vweird.f32 %v1295
    %vm1333 = vweird.f32 %v1327
    %vm1334 = vmor %vm1332, %vm1333
    %v1335 = vsel %vm1334, %v1327, %v1331
    %v1336 = vand.u32 2147483647, %v1295
    %vm1337 = vcmp.eq.f32.partialorder %v1336, 8.507059e+37
    %v1338 = vand.u32 %v1295, 2147483648
    %v1339 = vor.u32 1.1754944e-38, %v1338
    %v1340 = vsel %vm1337, %v1339, %v1335
    %v1341 = vmul.f32 1.0, %v1340
    %v1342 = vrcp.pop %v1296
    %v1343 = vmul.f32 %v1296, %v1342
    %v1344 = vsub.f32 1.0, %v1343
    %v1345 = vmul.f32 %v1342, %v1344
    %v1346 = vadd.f32 %v1342, %v1345
    %vm1347 = vweird.f32 %v1296
    %vm1348 = vweird.f32 %v1342
    %vm1349 = vmor %vm1347, %vm1348
    %v1350 = vsel %vm1349, %v1342, %v1346
    %v1351 = vand.u32 2147483647, %v1296
    %vm1352 = vcmp.eq.f32.partialorder %v1351, 8.507059e+37
    %v1353 = vand.u32 %v1296, 2147483648
    %v1354 = vor.u32 1.1754944e-38, %v1353
    %v1355 = vsel %vm1352, %v1354, %v1350
    %v1356 = vmul.f32 1.0, %v1355
    %v1357 = vmul.f32 %v1311, %v1165
    %v1358 = vmul.f32 %v1341, %v1166
    %v1359 = vmul.f32 %v1326, 2.0
    %v1360 = vmul.f32 %v1356, 2.0
    %v1361 = vsub.f32 %v1359, 1.0
    %v1362 = vsub.f32 %v1360, 1.0
    %1365 = vrot.lane.b32.xlu0 %v1361, 64
    %v1366 = vpop.permute.xlu0 %1365
    %1367 = vrot.lane.b32.xlu0 %v1362, 64
    %v1368 = vpop.permute.xlu0 %1367
    %v1371 = vmul.f32 %v1311, %v1366
    %v1372 = vmul.f32 %v1341, %v1368
    %1375 = vrot.lane.b32.xlu0 %v1371, 64
    %v1376 = vpop.permute.xlu0 %1375
    %1377 = vrot.lane.b32.xlu0 %v1372, 64
    %v1378 = vpop.permute.xlu0 %1377
    %v1381 = vadd.f32 %v1357, %v1376
    %v1382 = vadd.f32 %v1358, %v1378
    %v1383 = vtanh.pop %v1381
    %v1384 = vtanh.pop %v1382
    %1387 = vrot.lane.b32.xlu0 %v1383, 64
    %v1388 = vpop.permute.xlu0 %1387
    %1389 = vrot.lane.b32.xlu0 %v1384, 64
    %v1390 = vpop.permute.xlu0 %1389
    %v1393 = vmul.f32 %v1326, %v1388
    %v1394 = vmul.f32 %v1356, %v1390
    %v1395 = vld [vmem:[#allocation2 + $0xa0] sm:$0xff]
    %v1396 = vld [vmem:[#allocation2 + $0xa8] sm:$0xff]
    %v1397 = vld [vmem:[#allocation2 + $0x50] sm:$0xff]
    %v1398 = vld [vmem:[#allocation2 + $0x58] sm:$0xff]
    %v1400 = vsel %vm534, %v1393, 0
    %v1403 = vsel %vm534, %v1394, 0
    %1405 = vmatpush.msra.mxu0 0.0
    %1406 = vmatpush.msra.mxu0 0.0
    %1407 = vmatpush.msra.mxu0 0.0
    %1408 = vmatpush.msra.mxu0 0.0
    %1409 = vmatpush.msra.mxu0 0.0
    %1410 = vmatpush.msra.mxu0 0.0
    %1411 = vmatpush.msra.mxu0 0.0
    %1412 = vmatpush.msra.mxu0 0.0
    %1413 = vmatpush.msra.mxu0 %v530
    %1414 = vmatpush.msra.mxu0 %v526
    %1415 = vmatpush.msra.mxu0 %v522
    %1416 = vmatpush.msra.mxu0 %v518
    %1417 = vmatpush.msra.mxu0 %v514
    %1418 = vmatpush.msra.mxu0 %v510
    %1419 = vmatpush.msra.mxu0 %v506
    %1420 = vmatpush.msra.mxu0 %v502
    %1421 = vmatmul.f32.gmra.mxu0 %v1400
    %v1422 = vpop.f32.mrf.mxu0
    %v1423 = vadd.f32 0.0, %v1422
    %1424 = vmatmul.f32.gmra.mxu0 %v1403
    %v1425 = vpop.f32.mrf.mxu0
    %1426 = vdwg.mxu0
    %1427 = vmatpush.msra.mxu0 0.0
    %1428 = vmatpush.msra.mxu0 0.0
    %1429 = vmatpush.msra.mxu0 0.0
    %1430 = vmatpush.msra.mxu0 0.0
    %1431 = vmatpush.msra.mxu0 0.0
    %1432 = vmatpush.msra.mxu0 0.0
    %1433 = vmatpush.msra.mxu0 0.0
    %1434 = vmatpush.msra.mxu0 0.0
    %1435 = vmatpush.msra.mxu0 %v531
    %1436 = vmatpush.msra.mxu0 %v527
    %1437 = vmatpush.msra.mxu0 %v523
    %1438 = vmatpush.msra.mxu0 %v519
    %1439 = vmatpush.msra.mxu0 %v515
    %1440 = vmatpush.msra.mxu0 %v511
    %1441 = vmatpush.msra.mxu0 %v507
    %1442 = vmatpush.msra.mxu0 %v503
    %1443 = vmatmul.f32.gmra.mxu0 %v1400
    %v1444 = vpop.f32.mrf.mxu0
    %v1445 = vadd.f32 0.0, %v1444
    %1446 = vmatmul.f32.gmra.mxu0 %v1403
    %v1447 = vpop.f32.mrf.mxu0
    %1448 = vdwg.mxu0
    %1449 = vmatpush.msra.mxu0 0.0
    %1450 = vmatpush.msra.mxu0 0.0
    %1451 = vmatpush.msra.mxu0 0.0
    %1452 = vmatpush.msra.mxu0 0.0
    %1453 = vmatpush.msra.mxu0 0.0
    %1454 = vmatpush.msra.mxu0 0.0
    %1455 = vmatpush.msra.mxu0 0.0
    %1456 = vmatpush.msra.mxu0 0.0
    %1457 = vmatpush.msra.mxu0 %v532
    %1458 = vmatpush.msra.mxu0 %v528
    %1459 = vmatpush.msra.mxu0 %v524
    %1460 = vmatpush.msra.mxu0 %v520
    %1461 = vmatpush.msra.mxu0 %v516
    %1462 = vmatpush.msra.mxu0 %v512
    %1463 = vmatpush.msra.mxu0 %v508
    %1464 = vmatpush.msra.mxu0 %v504
    %1465 = vmatmul.f32.gmra.mxu0 %v1400
    %v1466 = vpop.f32.mrf.mxu0
    %1467 = vmatmul.f32.gmra.mxu0 %v1403
    %v1468 = vpop.f32.mrf.mxu0
    %v1469 = vadd.f32 0.0, %v1468
    %1470 = vdwg.mxu0
    %1471 = vmatpush.msra.mxu0 0.0
    %1472 = vmatpush.msra.mxu0 0.0
    %1473 = vmatpush.msra.mxu0 0.0
    %1474 = vmatpush.msra.mxu0 0.0
    %1475 = vmatpush.msra.mxu0 0.0
    %1476 = vmatpush.msra.mxu0 0.0
    %1477 = vmatpush.msra.mxu0 0.0
    %1478 = vmatpush.msra.mxu0 0.0
    %1479 = vmatpush.msra.mxu0 %v533
    %1480 = vmatpush.msra.mxu0 %v529
    %1481 = vmatpush.msra.mxu0 %v525
    %1482 = vmatpush.msra.mxu0 %v521
    %1483 = vmatpush.msra.mxu0 %v517
    %1484 = vmatpush.msra.mxu0 %v513
    %1485 = vmatpush.msra.mxu0 %v509
    %1486 = vmatpush.msra.mxu0 %v505
    %1487 = vmatmul.f32.gmra.mxu0 %v1400
    %v1488 = vpop.f32.mrf.mxu0
    %1489 = vmatmul.f32.gmra.mxu0 %v1403
    %v1490 = vpop.f32.mrf.mxu0
    %v1491 = vadd.f32 0.0, %v1490
    %1492 = vdwg.mxu0
    %v1493 = vadd.f32 %v1395, %v1423
    %v1494 = vadd.f32 %v1396, %v1445
    %v1495 = vadd.f32 %v1397, %v1469
    %v1496 = vadd.f32 %v1398, %v1491
    %v1497 = vxor.u32 %v1493, 2147483648
    %v1498 = vxor.u32 %v1494, 2147483648
    %v1499 = vxor.u32 %v1495, 2147483648
    %v1500 = vxor.u32 %v1496, 2147483648
    %v1501 = vmul.f32 %v1497, 1.442695
    %v1502 = vpow.pop %v1501
    %v1503 = vmul.f32 %v1498, 1.442695
    %v1504 = vpow.pop %v1503
    %v1505 = vmul.f32 %v1499, 1.442695
    %v1506 = vpow.pop %v1505
    %v1507 = vmul.f32 %v1500, 1.442695
    %v1508 = vpow.pop %v1507
    %v1509 = vadd.f32 %v1502, 1.0
    %v1510 = vadd.f32 %v1504, 1.0
    %v1511 = vadd.f32 %v1506, 1.0
    %v1512 = vadd.f32 %v1508, 1.0
    %v1513 = vrcp.pop %v1509
    %v1514 = vmul.f32 %v1509, %v1513
    %v1515 = vsub.f32 1.0, %v1514
    %v1516 = vmul.f32 %v1513, %v1515
    %v1517 = vadd.f32 %v1513, %v1516
    %vm1518 = vweird.f32 %v1509
    %vm1519 = vweird.f32 %v1513
    %vm1520 = vmor %vm1518, %vm1519
    %v1521 = vsel %vm1520, %v1513, %v1517
    %v1522 = vand.u32 2147483647, %v1509
    %vm1523 = vcmp.eq.f32.partialorder %v1522, 8.507059e+37
    %v1524 = vand.u32 %v1509, 2147483648
    %v1525 = vor.u32 1.1754944e-38, %v1524
    %v1526 = vsel %vm1523, %v1525, %v1521
    %v1527 = vmul.f32 1.0, %v1526
    %v1528 = vrcp.pop %v1510
    %v1529 = vmul.f32 %v1510, %v1528
    %v1530 = vsub.f32 1.0, %v1529
    %v1531 = vmul.f32 %v1528, %v1530
    %v1532 = vadd.f32 %v1528, %v1531
    %vm1533 = vweird.f32 %v1510
    %vm1534 = vweird.f32 %v1528
    %vm1535 = vmor %vm1533, %vm1534
    %v1536 = vsel %vm1535, %v1528, %v1532
    %v1537 = vand.u32 2147483647, %v1510
    %vm1538 = vcmp.eq.f32.partialorder %v1537, 8.507059e+37
    %v1539 = vand.u32 %v1510, 2147483648
    %v1540 = vor.u32 1.1754944e-38, %v1539
    %v1541 = vsel %vm1538, %v1540, %v1536
    %v1542 = vmul.f32 1.0, %v1541
    %v1543 = vrcp.pop %v1511
    %v1544 = vmul.f32 %v1511, %v1543
    %v1545 = vsub.f32 1.0, %v1544
    %v1546 = vmul.f32 %v1543, %v1545
    %v1547 = vadd.f32 %v1543, %v1546
    %vm1548 = vweird.f32 %v1511
    %vm1549 = vweird.f32 %v1543
    %vm1550 = vmor %vm1548, %vm1549
    %v1551 = vsel %vm1550, %v1543, %v1547
    %v1552 = vand.u32 2147483647, %v1511
    %vm1553 = vcmp.eq.f32.partialorder %v1552, 8.507059e+37
    %v1554 = vand.u32 %v1511, 2147483648
    %v1555 = vor.u32 1.1754944e-38, %v1554
    %v1556 = vsel %vm1553, %v1555, %v1551
    %v1557 = vmul.f32 1.0, %v1556
    %v1558 = vrcp.pop %v1512
    %v1559 = vmul.f32 %v1512, %v1558
    %v1560 = vsub.f32 1.0, %v1559
    %v1561 = vmul.f32 %v1558, %v1560
    %v1562 = vadd.f32 %v1558, %v1561
    %vm1563 = vweird.f32 %v1512
    %vm1564 = vweird.f32 %v1558
    %vm1565 = vmor %vm1563, %vm1564
    %v1566 = vsel %vm1565, %v1558, %v1562
    %v1567 = vand.u32 2147483647, %v1512
    %vm1568 = vcmp.eq.f32.partialorder %v1567, 8.507059e+37
    %v1569 = vand.u32 %v1512, 2147483648
    %v1570 = vor.u32 1.1754944e-38, %v1569
    %v1571 = vsel %vm1568, %v1570, %v1566
    %v1572 = vmul.f32 1.0, %v1571
    %v1573 = vmul.f32 %v1527, %v1381
    %v1574 = vmul.f32 %v1557, %v1382
    %v1575 = vmul.f32 %v1542, 2.0
    %v1576 = vmul.f32 %v1572, 2.0
    %v1577 = vsub.f32 %v1575, 1.0
    %v1578 = vsub.f32 %v1576, 1.0
    %1581 = vrot.lane.b32.xlu0 %v1577, 64
    %v1582 = vpop.permute.xlu0 %1581
    %1583 = vrot.lane.b32.xlu0 %v1578, 64
    %v1584 = vpop.permute.xlu0 %1583
    %v1587 = vmul.f32 %v1527, %v1582
    %v1588 = vmul.f32 %v1557, %v1584
    %1591 = vrot.lane.b32.xlu0 %v1587, 64
    %v1592 = vpop.permute.xlu0 %1591
    %1593 = vrot.lane.b32.xlu0 %v1588, 64
    %v1594 = vpop.permute.xlu0 %1593
    %v1597 = vadd.f32 %v1573, %v1592
    %v1598 = vadd.f32 %v1574, %v1594
    %v1599 = vtanh.pop %v1597
    %v1600 = vtanh.pop %v1598
    %1603 = vrot.lane.b32.xlu0 %v1599, 64
    %v1604 = vpop.permute.xlu0 %1603
    %1605 = vrot.lane.b32.xlu0 %v1600, 64
    %v1606 = vpop.permute.xlu0 %1605
    %v1609 = vmul.f32 %v1542, %v1604
    %v1610 = vmul.f32 %v1572, %v1606
    %v1611 = vld [vmem:[#allocation2 + $0xc0] sm:$0xff]
    %v1612 = vld [vmem:[#allocation2 + $0xc8] sm:$0xff]
    %v1613 = vld [vmem:[#allocation2 + $0x30] sm:$0xff]
    %v1614 = vld [vmem:[#allocation2 + $0x38] sm:$0xff]
    %v1616 = vsel %vm534, %v1609, 0
    %v1619 = vsel %vm534, %v1610, 0
    %1621 = vmatpush.msra.mxu0 0.0
    %1622 = vmatpush.msra.mxu0 0.0
    %1623 = vmatpush.msra.mxu0 0.0
    %1624 = vmatpush.msra.mxu0 0.0
    %1625 = vmatpush.msra.mxu0 0.0
    %1626 = vmatpush.msra.mxu0 0.0
    %1627 = vmatpush.msra.mxu0 0.0
    %1628 = vmatpush.msra.mxu0 0.0
    %1629 = vmatpush.msra.mxu0 %v530
    %1630 = vmatpush.msra.mxu0 %v526
    %1631 = vmatpush.msra.mxu0 %v522
    %1632 = vmatpush.msra.mxu0 %v518
    %1633 = vmatpush.msra.mxu0 %v514
    %1634 = vmatpush.msra.mxu0 %v510
    %1635 = vmatpush.msra.mxu0 %v506
    %1636 = vmatpush.msra.mxu0 %v502
    %1637 = vmatmul.f32.gmra.mxu0 %v1616
    %v1638 = vpop.f32.mrf.mxu0
    %v1639 = vadd.f32 0.0, %v1638
    %1640 = vmatmul.f32.gmra.mxu0 %v1619
    %v1641 = vpop.f32.mrf.mxu0
    %1642 = vdwg.mxu0
    %1643 = vmatpush.msra.mxu0 0.0
    %1644 = vmatpush.msra.mxu0 0.0
    %1645 = vmatpush.msra.mxu0 0.0
    %1646 = vmatpush.msra.mxu0 0.0
    %1647 = vmatpush.msra.mxu0 0.0
    %1648 = vmatpush.msra.mxu0 0.0
    %1649 = vmatpush.msra.mxu0 0.0
    %1650 = vmatpush.msra.mxu0 0.0
    %1651 = vmatpush.msra.mxu0 %v531
    %1652 = vmatpush.msra.mxu0 %v527
    %1653 = vmatpush.msra.mxu0 %v523
    %1654 = vmatpush.msra.mxu0 %v519
    %1655 = vmatpush.msra.mxu0 %v515
    %1656 = vmatpush.msra.mxu0 %v511
    %1657 = vmatpush.msra.mxu0 %v507
    %1658 = vmatpush.msra.mxu0 %v503
    %1659 = vmatmul.f32.gmra.mxu0 %v1616
    %v1660 = vpop.f32.mrf.mxu0
    %v1661 = vadd.f32 0.0, %v1660
    %1662 = vmatmul.f32.gmra.mxu0 %v1619
    %v1663 = vpop.f32.mrf.mxu0
    %1664 = vdwg.mxu0
    %1665 = vmatpush.msra.mxu0 0.0
    %1666 = vmatpush.msra.mxu0 0.0
    %1667 = vmatpush.msra.mxu0 0.0
    %1668 = vmatpush.msra.mxu0 0.0
    %1669 = vmatpush.msra.mxu0 0.0
    %1670 = vmatpush.msra.mxu0 0.0
    %1671 = vmatpush.msra.mxu0 0.0
    %1672 = vmatpush.msra.mxu0 0.0
    %1673 = vmatpush.msra.mxu0 %v532
    %1674 = vmatpush.msra.mxu0 %v528
    %1675 = vmatpush.msra.mxu0 %v524
    %1676 = vmatpush.msra.mxu0 %v520
    %1677 = vmatpush.msra.mxu0 %v516
    %1678 = vmatpush.msra.mxu0 %v512
    %1679 = vmatpush.msra.mxu0 %v508
    %1680 = vmatpush.msra.mxu0 %v504
    %1681 = vmatmul.f32.gmra.mxu0 %v1616
    %v1682 = vpop.f32.mrf.mxu0
    %1683 = vmatmul.f32.gmra.mxu0 %v1619
    %v1684 = vpop.f32.mrf.mxu0
    %v1685 = vadd.f32 0.0, %v1684
    %1686 = vdwg.mxu0
    %1687 = vmatpush.msra.mxu0 0.0
    %1688 = vmatpush.msra.mxu0 0.0
    %1689 = vmatpush.msra.mxu0 0.0
    %1690 = vmatpush.msra.mxu0 0.0
    %1691 = vmatpush.msra.mxu0 0.0
    %1692 = vmatpush.msra.mxu0 0.0
    %1693 = vmatpush.msra.mxu0 0.0
    %1694 = vmatpush.msra.mxu0 0.0
    %1695 = vmatpush.msra.mxu0 %v533
    %1696 = vmatpush.msra.mxu0 %v529
    %1697 = vmatpush.msra.mxu0 %v525
    %1698 = vmatpush.msra.mxu0 %v521
    %1699 = vmatpush.msra.mxu0 %v517
    %1700 = vmatpush.msra.mxu0 %v513
    %1701 = vmatpush.msra.mxu0 %v509
    %1702 = vmatpush.msra.mxu0 %v505
    %1703 = vmatmul.f32.gmra.mxu0 %v1616
    %v1704 = vpop.f32.mrf.mxu0
    %1705 = vmatmul.f32.gmra.mxu0 %v1619
    %v1706 = vpop.f32.mrf.mxu0
    %v1707 = vadd.f32 0.0, %v1706
    %1708 = vdwg.mxu0
    %v1709 = vadd.f32 %v1611, %v1639
    %v1710 = vadd.f32 %v1612, %v1661
    %v1711 = vadd.f32 %v1613, %v1685
    %v1712 = vadd.f32 %v1614, %v1707
    %v1713 = vxor.u32 %v1709, 2147483648
    %v1714 = vxor.u32 %v1710, 2147483648
    %v1715 = vxor.u32 %v1711, 2147483648
    %v1716 = vxor.u32 %v1712, 2147483648
    %v1717 = vmul.f32 %v1713, 1.442695
    %v1718 = vpow.pop %v1717
    %v1719 = vmul.f32 %v1714, 1.442695
    %v1720 = vpow.pop %v1719
    %v1721 = vmul.f32 %v1715, 1.442695
    %v1722 = vpow.pop %v1721
    %v1723 = vmul.f32 %v1716, 1.442695
    %v1724 = vpow.pop %v1723
    %v1725 = vadd.f32 %v1718, 1.0
    %v1726 = vadd.f32 %v1720, 1.0
    %v1727 = vadd.f32 %v1722, 1.0
    %v1728 = vadd.f32 %v1724, 1.0
    %v1729 = vrcp.pop %v1725
    %v1730 = vmul.f32 %v1725, %v1729
    %v1731 = vsub.f32 1.0, %v1730
    %v1732 = vmul.f32 %v1729, %v1731
    %v1733 = vadd.f32 %v1729, %v1732
    %vm1734 = vweird.f32 %v1725
    %vm1735 = vweird.f32 %v1729
    %vm1736 = vmor %vm1734, %vm1735
    %v1737 = vsel %vm1736, %v1729, %v1733
    %v1738 = vand.u32 2147483647, %v1725
    %vm1739 = vcmp.eq.f32.partialorder %v1738, 8.507059e+37
    %v1740 = vand.u32 %v1725, 2147483648
    %v1741 = vor.u32 1.1754944e-38, %v1740
    %v1742 = vsel %vm1739, %v1741, %v1737
    %v1743 = vmul.f32 1.0, %v1742
    %v1744 = vrcp.pop %v1726
    %v1745 = vmul.f32 %v1726, %v1744
    %v1746 = vsub.f32 1.0, %v1745
    %v1747 = vmul.f32 %v1744, %v1746
    %v1748 = vadd.f32 %v1744, %v1747
    %vm1749 = vweird.f32 %v1726
    %vm1750 = vweird.f32 %v1744
    %vm1751 = vmor %vm1749, %vm1750
    %v1752 = vsel %vm1751, %v1744, %v1748
    %v1753 = vand.u32 2147483647, %v1726
    %vm1754 = vcmp.eq.f32.partialorder %v1753, 8.507059e+37
    %v1755 = vand.u32 %v1726, 2147483648
    %v1756 = vor.u32 1.1754944e-38, %v1755
    %v1757 = vsel %vm1754, %v1756, %v1752
    %v1758 = vmul.f32 1.0, %v1757
    %v1759 = vrcp.pop %v1727
    %v1760 = vmul.f32 %v1727, %v1759
    %v1761 = vsub.f32 1.0, %v1760
    %v1762 = vmul.f32 %v1759, %v1761
    %v1763 = vadd.f32 %v1759, %v1762
    %vm1764 = vweird.f32 %v1727
    %vm1765 = vweird.f32 %v1759
    %vm1766 = vmor %vm1764, %vm1765
    %v1767 = vsel %vm1766, %v1759, %v1763
    %v1768 = vand.u32 2147483647, %v1727
    %vm1769 = vcmp.eq.f32.partialorder %v1768, 8.507059e+37
    %v1770 = vand.u32 %v1727, 2147483648
    %v1771 = vor.u32 1.1754944e-38, %v1770
    %v1772 = vsel %vm1769, %v1771, %v1767
    %v1773 = vmul.f32 1.0, %v1772
    %v1774 = vrcp.pop %v1728
    %v1775 = vmul.f32 %v1728, %v1774
    %v1776 = vsub.f32 1.0, %v1775
    %v1777 = vmul.f32 %v1774, %v1776
    %v1778 = vadd.f32 %v1774, %v1777
    %vm1779 = vweird.f32 %v1728
    %vm1780 = vweird.f32 %v1774
    %vm1781 = vmor %vm1779, %vm1780
    %v1782 = vsel %vm1781, %v1774, %v1778
    %v1783 = vand.u32 2147483647, %v1728
    %vm1784 = vcmp.eq.f32.partialorder %v1783, 8.507059e+37
    %v1785 = vand.u32 %v1728, 2147483648
    %v1786 = vor.u32 1.1754944e-38, %v1785
    %v1787 = vsel %vm1784, %v1786, %v1782
    %v1788 = vmul.f32 1.0, %v1787
    %v1789 = vmul.f32 %v1743, %v1597
    %v1790 = vmul.f32 %v1773, %v1598
    %v1791 = vmul.f32 %v1758, 2.0
    %v1792 = vmul.f32 %v1788, 2.0
    %v1793 = vsub.f32 %v1791, 1.0
    %v1794 = vsub.f32 %v1792, 1.0
    %1797 = vrot.lane.b32.xlu0 %v1793, 64
    %v1798 = vpop.permute.xlu0 %1797
    %1799 = vrot.lane.b32.xlu0 %v1794, 64
    %v1800 = vpop.permute.xlu0 %1799
    %v1803 = vmul.f32 %v1743, %v1798
    %v1804 = vmul.f32 %v1773, %v1800
    %1807 = vrot.lane.b32.xlu0 %v1803, 64
    %v1808 = vpop.permute.xlu0 %1807
    %1809 = vrot.lane.b32.xlu0 %v1804, 64
    %v1810 = vpop.permute.xlu0 %1809
    %v1813 = vadd.f32 %v1789, %v1808
    %v1814 = vadd.f32 %v1790, %v1810
    %v1815 = vtanh.pop %v1813
    %v1816 = vtanh.pop %v1814
    %1819 = vrot.lane.b32.xlu0 %v1815, 64
    %v1820 = vpop.permute.xlu0 %1819
    %1821 = vrot.lane.b32.xlu0 %v1816, 64
    %v1822 = vpop.permute.xlu0 %1821
    %v1825 = vmul.f32 %v1758, %v1820
    %v1826 = vmul.f32 %v1788, %v1822
    %v1827 = vld [vmem:[#allocation2 + $0xe0] sm:$0xff]
    %v1828 = vld [vmem:[#allocation2 + $0xe8] sm:$0xff]
    %v1829 = vld [vmem:[#allocation2 + $0x10] sm:$0xff]
    %v1830 = vld [vmem:[#allocation2 + $0x18] sm:$0xff]
    %v1832 = vsel %vm534, %v1825, 0
    %v1835 = vsel %vm534, %v1826, 0
    %1837 = vmatpush.msra.mxu0 0.0
    %1838 = vmatpush.msra.mxu0 0.0
    %1839 = vmatpush.msra.mxu0 0.0
    %1840 = vmatpush.msra.mxu0 0.0
    %1841 = vmatpush.msra.mxu0 0.0
    %1842 = vmatpush.msra.mxu0 0.0
    %1843 = vmatpush.msra.mxu0 0.0
    %1844 = vmatpush.msra.mxu0 0.0
    %1845 = vmatpush.msra.mxu0 %v530
    %1846 = vmatpush.msra.mxu0 %v526
    %1847 = vmatpush.msra.mxu0 %v522
    %1848 = vmatpush.msra.mxu0 %v518
    %1849 = vmatpush.msra.mxu0 %v514
    %1850 = vmatpush.msra.mxu0 %v510
    %1851 = vmatpush.msra.mxu0 %v506
    %1852 = vmatpush.msra.mxu0 %v502
    %1853 = vmatmul.f32.gmra.mxu0 %v1832
    %v1854 = vpop.f32.mrf.mxu0
    %v1855 = vadd.f32 0.0, %v1854
    %1856 = vmatmul.f32.gmra.mxu0 %v1835
    %v1857 = vpop.f32.mrf.mxu0
    %1858 = vdwg.mxu0
    %1859 = vmatpush.msra.mxu0 0.0
    %1860 = vmatpush.msra.mxu0 0.0
    %1861 = vmatpush.msra.mxu0 0.0
    %1862 = vmatpush.msra.mxu0 0.0
    %1863 = vmatpush.msra.mxu0 0.0
    %1864 = vmatpush.msra.mxu0 0.0
    %1865 = vmatpush.msra.mxu0 0.0
    %1866 = vmatpush.msra.mxu0 0.0
    %1867 = vmatpush.msra.mxu0 %v531
    %1868 = vmatpush.msra.mxu0 %v527
    %1869 = vmatpush.msra.mxu0 %v523
    %1870 = vmatpush.msra.mxu0 %v519
    %1871 = vmatpush.msra.mxu0 %v515
    %1872 = vmatpush.msra.mxu0 %v511
    %1873 = vmatpush.msra.mxu0 %v507
    %1874 = vmatpush.msra.mxu0 %v503
    %1875 = vmatmul.f32.gmra.mxu0 %v1832
    %v1876 = vpop.f32.mrf.mxu0
    %v1877 = vadd.f32 0.0, %v1876
    %1878 = vmatmul.f32.gmra.mxu0 %v1835
    %v1879 = vpop.f32.mrf.mxu0
    %1880 = vdwg.mxu0
    %1881 = vmatpush.msra.mxu0 0.0
    %1882 = vmatpush.msra.mxu0 0.0
    %1883 = vmatpush.msra.mxu0 0.0
    %1884 = vmatpush.msra.mxu0 0.0
    %1885 = vmatpush.msra.mxu0 0.0
    %1886 = vmatpush.msra.mxu0 0.0
    %1887 = vmatpush.msra.mxu0 0.0
    %1888 = vmatpush.msra.mxu0 0.0
    %1889 = vmatpush.msra.mxu0 %v532
    %1890 = vmatpush.msra.mxu0 %v528
    %1891 = vmatpush.msra.mxu0 %v524
    %1892 = vmatpush.msra.mxu0 %v520
    %1893 = vmatpush.msra.mxu0 %v516
    %1894 = vmatpush.msra.mxu0 %v512
    %1895 = vmatpush.msra.mxu0 %v508
    %1896 = vmatpush.msra.mxu0 %v504
    %1897 = vmatmul.f32.gmra.mxu0 %v1832
    %v1898 = vpop.f32.mrf.mxu0
    %1899 = vmatmul.f32.gmra.mxu0 %v1835
    %v1900 = vpop.f32.mrf.mxu0
    %v1901 = vadd.f32 0.0, %v1900
    %1902 = vdwg.mxu0
    %1903 = vmatpush.msra.mxu0 0.0
    %1904 = vmatpush.msra.mxu0 0.0
    %1905 = vmatpush.msra.mxu0 0.0
    %1906 = vmatpush.msra.mxu0 0.0
    %1907 = vmatpush.msra.mxu0 0.0
    %1908 = vmatpush.msra.mxu0 0.0
    %1909 = vmatpush.msra.mxu0 0.0
    %1910 = vmatpush.msra.mxu0 0.0
    %1911 = vmatpush.msra.mxu0 %v533
    %1912 = vmatpush.msra.mxu0 %v529
    %1913 = vmatpush.msra.mxu0 %v525
    %1914 = vmatpush.msra.mxu0 %v521
    %1915 = vmatpush.msra.mxu0 %v517
    %1916 = vmatpush.msra.mxu0 %v513
    %1917 = vmatpush.msra.mxu0 %v509
    %1918 = vmatpush.msra.mxu0 %v505
    %1919 = vmatmul.f32.gmra.mxu0 %v1832
    %v1920 = vpop.f32.mrf.mxu0
    %1921 = vmatmul.f32.gmra.mxu0 %v1835
    %v1922 = vpop.f32.mrf.mxu0
    %v1923 = vadd.f32 0.0, %v1922
    %1924 = vdwg.mxu0
    %v1925 = vadd.f32 %v1827, %v1855
    %v1926 = vadd.f32 %v1828, %v1877
    %v1927 = vadd.f32 %v1829, %v1901
    %v1928 = vadd.f32 %v1830, %v1923
    %v1929 = vxor.u32 %v1925, 2147483648
    %v1930 = vxor.u32 %v1926, 2147483648
    %v1931 = vxor.u32 %v1927, 2147483648
    %v1932 = vxor.u32 %v1928, 2147483648
    %v1933 = vmul.f32 %v1929, 1.442695
    %v1934 = vpow.pop %v1933
    %v1935 = vmul.f32 %v1930, 1.442695
    %v1936 = vpow.pop %v1935
    %v1937 = vmul.f32 %v1931, 1.442695
    %v1938 = vpow.pop %v1937
    %v1939 = vmul.f32 %v1932, 1.442695
    %v1940 = vpow.pop %v1939
    %v1941 = vadd.f32 %v1934, 1.0
    %v1942 = vadd.f32 %v1936, 1.0
    %v1943 = vadd.f32 %v1938, 1.0
    %v1944 = vadd.f32 %v1940, 1.0
    %v1945 = vrcp.pop %v1941
    %v1946 = vmul.f32 %v1941, %v1945
    %v1947 = vsub.f32 1.0, %v1946
    %v1948 = vmul.f32 %v1945, %v1947
    %v1949 = vadd.f32 %v1945, %v1948
    %vm1950 = vweird.f32 %v1941
    %vm1951 = vweird.f32 %v1945
    %vm1952 = vmor %vm1950, %vm1951
    %v1953 = vsel %vm1952, %v1945, %v1949
    %v1954 = vand.u32 2147483647, %v1941
    %vm1955 = vcmp.eq.f32.partialorder %v1954, 8.507059e+37
    %v1956 = vand.u32 %v1941, 2147483648
    %v1957 = vor.u32 1.1754944e-38, %v1956
    %v1958 = vsel %vm1955, %v1957, %v1953
    %v1959 = vmul.f32 1.0, %v1958
    %v1960 = vrcp.pop %v1942
    %v1961 = vmul.f32 %v1942, %v1960
    %v1962 = vsub.f32 1.0, %v1961
    %v1963 = vmul.f32 %v1960, %v1962
    %v1964 = vadd.f32 %v1960, %v1963
    %vm1965 = vweird.f32 %v1942
    %vm1966 = vweird.f32 %v1960
    %vm1967 = vmor %vm1965, %vm1966
    %v1968 = vsel %vm1967, %v1960, %v1964
    %v1969 = vand.u32 2147483647, %v1942
    %vm1970 = vcmp.eq.f32.partialorder %v1969, 8.507059e+37
    %v1971 = vand.u32 %v1942, 2147483648
    %v1972 = vor.u32 1.1754944e-38, %v1971
    %v1973 = vsel %vm1970, %v1972, %v1968
    %v1974 = vmul.f32 1.0, %v1973
    %v1975 = vrcp.pop %v1943
    %v1976 = vmul.f32 %v1943, %v1975
    %v1977 = vsub.f32 1.0, %v1976
    %v1978 = vmul.f32 %v1975, %v1977
    %v1979 = vadd.f32 %v1975, %v1978
    %vm1980 = vweird.f32 %v1943
    %vm1981 = vweird.f32 %v1975
    %vm1982 = vmor %vm1980, %vm1981
    %v1983 = vsel %vm1982, %v1975, %v1979
    %v1984 = vand.u32 2147483647, %v1943
    %vm1985 = vcmp.eq.f32.partialorder %v1984, 8.507059e+37
    %v1986 = vand.u32 %v1943, 2147483648
    %v1987 = vor.u32 1.1754944e-38, %v1986
    %v1988 = vsel %vm1985, %v1987, %v1983
    %v1989 = vmul.f32 1.0, %v1988
    %v1990 = vrcp.pop %v1944
    %v1991 = vmul.f32 %v1944, %v1990
    %v1992 = vsub.f32 1.0, %v1991
    %v1993 = vmul.f32 %v1990, %v1992
    %v1994 = vadd.f32 %v1990, %v1993
    %vm1995 = vweird.f32 %v1944
    %vm1996 = vweird.f32 %v1990
    %vm1997 = vmor %vm1995, %vm1996
    %v1998 = vsel %vm1997, %v1990, %v1994
    %v1999 = vand.u32 2147483647, %v1944
    %vm2000 = vcmp.eq.f32.partialorder %v1999, 8.507059e+37
    %v2001 = vand.u32 %v1944, 2147483648
    %v2002 = vor.u32 1.1754944e-38, %v2001
    %v2003 = vsel %vm2000, %v2002, %v1998
    %v2004 = vmul.f32 1.0, %v2003
    %v2005 = vmul.f32 %v1959, %v1813
    %v2006 = vmul.f32 %v1989, %v1814
    %v2007 = vmul.f32 %v1974, 2.0
    %v2008 = vmul.f32 %v2004, 2.0
    %v2009 = vsub.f32 %v2007, 1.0
    %v2010 = vsub.f32 %v2008, 1.0
    %2013 = vrot.lane.b32.xlu0 %v2009, 64
    %v2014 = vpop.permute.xlu0 %2013
    %2015 = vrot.lane.b32.xlu0 %v2010, 64
    %v2016 = vpop.permute.xlu0 %2015
    %v2019 = vmul.f32 %v1959, %v2014
    %v2020 = vmul.f32 %v1989, %v2016
    %2023 = vrot.lane.b32.xlu0 %v2019, 64
    %v2024 = vpop.permute.xlu0 %2023
    %2025 = vrot.lane.b32.xlu0 %v2020, 64
    %v2026 = vpop.permute.xlu0 %2025
    %v2029 = vadd.f32 %v2005, %v2024
    %v2030 = vadd.f32 %v2006, %v2026
    %v2031 = vtanh.pop %v2029
    %v2032 = vtanh.pop %v2030
    %2035 = vrot.lane.b32.xlu0 %v2031, 64
    %v2036 = vpop.permute.xlu0 %2035
    %2037 = vrot.lane.b32.xlu0 %v2032, 64
    %v2038 = vpop.permute.xlu0 %2037
    %v2041 = vmul.f32 %v1974, %v2036
    %v2042 = vmul.f32 %v2004, %v2038
    %2044 = vrot.lane.b32.xlu0 %v2042, 64
    %v2045 = vpop.permute.xlu0 %2044
    %2046 = vrot.lane.b32.xlu0 %v1826, 64
    %v2047 = vpop.permute.xlu0 %2046
    %2048 = vrot.lane.b32.xlu0 %v1610, 64
    %v2049 = vpop.permute.xlu0 %2048
    %2050 = vrot.lane.b32.xlu0 %v1394, 64
    %v2051 = vpop.permute.xlu0 %2050
    %2052 = vrot.lane.b32.xlu0 %v1178, 64
    %v2053 = vpop.permute.xlu0 %2052
    %2054 = vrot.lane.b32.xlu0 %v962, 64
    %v2055 = vpop.permute.xlu0 %2054
    %2056 = vrot.lane.b32.xlu0 %v746, 64
    %v2057 = vpop.permute.xlu0 %2056
    %2058 = vrot.lane.b32.xlu0 %v497, 64
    %v2059 = vpop.permute.xlu0 %2058
    %v2068 = vsel %vm534, %v496, %v2045
    %v2069 = vsel %vm534, %v745, %v2047
    %v2070 = vsel %vm534, %v961, %v2049
    %v2071 = vsel %vm534, %v1177, %v2051
    %v2072 = vsel %vm534, %v1393, %v2053
    %v2073 = vsel %vm534, %v1609, %v2055
    %v2074 = vsel %vm534, %v1825, %v2057
    %v2075 = vsel %vm534, %v2041, %v2059
    %v2076 = vld [vmem:[#allocation3 + $0x1a0] sm:$0xff]
    %v2077 = vld [vmem:[#allocation3 + $0x1a8] sm:$0xff]
    %v2078 = vld [vmem:[#allocation3 + $0x1b0] sm:$0xff]
    %v2079 = vld [vmem:[#allocation3 + $0x1b8] sm:$0xff]
    %v2080 = vld [vmem:[#allocation3 + $0x1c0] sm:$0xff]
    %v2081 = vld [vmem:[#allocation3 + $0x1c8] sm:$0xff]
    %v2082 = vld [vmem:[#allocation3 + $0x1d0] sm:$0xff]
    %v2083 = vld [vmem:[#allocation3 + $0x1d8] sm:$0xff]
    %v2084 = vld [vmem:[#allocation3 + $0x1e0] sm:$0xff]
    %v2085 = vld [vmem:[#allocation3 + $0x1e8] sm:$0xff]
    %v2086 = vld [vmem:[#allocation3 + $0x1f0] sm:$0xff]
    %v2087 = vld [vmem:[#allocation3 + $0x1f8] sm:$0xff]
    %v2088 = vld [vmem:[#allocation3 + $0x200] sm:$0xff]
    %v2089 = vld [vmem:[#allocation3 + $0x208] sm:$0xff]
    %v2090 = vld [vmem:[#allocation3 + $0x210] sm:$0xff]
    %v2091 = vld [vmem:[#allocation3 + $0x218] sm:$0xff]
    %v2092 = vld [vmem:[#allocation3 + $0x220] sm:$0xff]
    %v2093 = vld [vmem:[#allocation3 + $0x228] sm:$0xff]
    %v2094 = vld [vmem:[#allocation3 + $0x230] sm:$0xff]
    %v2095 = vld [vmem:[#allocation3 + $0x238] sm:$0xff]
    %v2096 = vld [vmem:[#allocation3 + $0x240] sm:$0xff]
    %v2097 = vld [vmem:[#allocation3 + $0x248] sm:$0xff]
    %v2098 = vld [vmem:[#allocation3 + $0x250] sm:$0xff]
    %v2099 = vld [vmem:[#allocation3 + $0x258] sm:$0xff]
    %v2100 = vld [vmem:[#allocation3 + $0x260] sm:$0xff]
    %v2101 = vld [vmem:[#allocation3 + $0x268] sm:$0xff]
    %v2102 = vld [vmem:[#allocation3 + $0x270] sm:$0xff]
    %v2103 = vld [vmem:[#allocation3 + $0x278] sm:$0xff]
    %v2104 = vld [vmem:[#allocation3 + $0x280] sm:$0xff]
    %v2105 = vld [vmem:[#allocation3 + $0x288] sm:$0xff]
    %v2106 = vld [vmem:[#allocation3 + $0x290] sm:$0xff]
    %v2107 = vld [vmem:[#allocation3 + $0x298] sm:$0xff]
    %v2108 = vld [vmem:[#allocation3 + $0x2a0] sm:$0xff]
    %v2109 = vld [vmem:[#allocation3 + $0x2a8] sm:$0xff]
    %v2110 = vld [vmem:[#allocation3 + $0x2b0] sm:$0xff]
    %v2111 = vld [vmem:[#allocation3 + $0x2b8] sm:$0xff]
    %v2112 = vld [vmem:[#allocation3 + $0x2c0] sm:$0xff]
    %v2113 = vld [vmem:[#allocation3 + $0x2c8] sm:$0xff]
    %v2114 = vld [vmem:[#allocation3 + $0x2d0] sm:$0xff]
    %v2115 = vld [vmem:[#allocation3 + $0x2d8] sm:$0xff]
    %v2116 = vld [vmem:[#allocation3 + $0x2e0] sm:$0xff]
    %v2117 = vld [vmem:[#allocation3 + $0x2e8] sm:$0xff]
    %v2118 = vld [vmem:[#allocation3 + $0x2f0] sm:$0xff]
    %v2119 = vld [vmem:[#allocation3 + $0x2f8] sm:$0xff]
    %v2120 = vld [vmem:[#allocation3 + $0x300] sm:$0xff]
    %v2121 = vld [vmem:[#allocation3 + $0x308] sm:$0xff]
    %v2122 = vld [vmem:[#allocation3 + $0x310] sm:$0xff]
    %v2123 = vld [vmem:[#allocation3 + $0x318] sm:$0xff]
    %v2124 = vld [vmem:[#allocation3 + $0x320] sm:$0xff]
    %v2125 = vld [vmem:[#allocation3 + $0x328] sm:$0xff]
    %v2126 = vld [vmem:[#allocation3 + $0x330] sm:$0xff]
    %v2127 = vld [vmem:[#allocation3 + $0x338] sm:$0xff]
    %v2128 = vld [vmem:[#allocation3 + $0x340] sm:$0xff]
    %v2129 = vld [vmem:[#allocation3 + $0x348] sm:$0xff]
    %v2130 = vld [vmem:[#allocation3 + $0x350] sm:$0xff]
    %v2131 = vld [vmem:[#allocation3 + $0x358] sm:$0xff]
    %v2132 = vld [vmem:[#allocation3 + $0x360] sm:$0xff]
    %v2133 = vld [vmem:[#allocation3 + $0x368] sm:$0xff]
    %v2134 = vld [vmem:[#allocation3 + $0x370] sm:$0xff]
    %v2135 = vld [vmem:[#allocation3 + $0x378] sm:$0xff]
    %v2136 = vld [vmem:[#allocation3 + $0x380] sm:$0xff]
    %v2137 = vld [vmem:[#allocation3 + $0x388] sm:$0xff]
    %v2138 = vld [vmem:[#allocation3 + $0x390] sm:$0xff]
    %v2139 = vld [vmem:[#allocation3 + $0x398] sm:$0xff]
    %s2140 = scalar_lea.vmem [#allocation3], 1184
    %v2141 = vld [vmem:[%s2140] ss:$8 sm:$0xf]
    %v2143 = vperm.slane %v2141, 0
    %v2144 = vperm.slane %v2141, 1
    %v2145 = vperm.slane %v2141, 2
    %v2146 = vperm.slane %v2141, 3
    %2151 = vmatpush.msra.mxu0 %v2136
    %2152 = vmatpush.msra.mxu0 %v2132
    %2153 = vmatpush.msra.mxu0 %v2128
    %2154 = vmatpush.msra.mxu0 %v2124
    %2155 = vmatpush.msra.mxu0 %v2120
    %2156 = vmatpush.msra.mxu0 %v2116
    %2157 = vmatpush.msra.mxu0 %v2112
    %2158 = vmatpush.msra.mxu0 %v2108
    %2159 = vmatpush.msra.mxu0 %v2104
    %2160 = vmatpush.msra.mxu0 %v2100
    %2161 = vmatpush.msra.mxu0 %v2096
    %2162 = vmatpush.msra.mxu0 %v2092
    %2163 = vmatpush.msra.mxu0 %v2088
    %2164 = vmatpush.msra.mxu0 %v2084
    %2165 = vmatpush.msra.mxu0 %v2080
    %2166 = vmatpush.msra.mxu0 %v2076
    %2167 = vmatmul.f32.gmra.mxu0 %v2068
    %v2168 = vpop.f32.mrf.mxu0
    %v2169 = vadd.f32 %v2143, %v2168
    %2170 = vmatmul.f32.gmra.mxu0 %v2069
    %v2171 = vpop.f32.mrf.mxu0
    %v2172 = vadd.f32 %v2143, %v2171
    %2173 = vmatmul.f32.gmra.mxu0 %v2070
    %v2174 = vpop.f32.mrf.mxu0
    %v2175 = vadd.f32 %v2143, %v2174
    %2176 = vmatmul.f32.gmra.mxu0 %v2071
    %v2177 = vpop.f32.mrf.mxu0
    %v2178 = vadd.f32 %v2143, %v2177
    %2179 = vmatmul.f32.gmra.mxu0 %v2072
    %v2180 = vpop.f32.mrf.mxu0
    %v2181 = vadd.f32 %v2143, %v2180
    %2182 = vmatmul.f32.gmra.mxu0 %v2073
    %v2183 = vpop.f32.mrf.mxu0
    %v2184 = vadd.f32 %v2143, %v2183
    %2185 = vmatmul.f32.gmra.mxu0 %v2074
    %v2186 = vpop.f32.mrf.mxu0
    %v2187 = vadd.f32 %v2143, %v2186
    %2188 = vmatmul.f32.gmra.mxu0 %v2075
    %v2189 = vpop.f32.mrf.mxu0
    %v2190 = vadd.f32 %v2143, %v2189
    %2191 = vdwg.mxu0
    %2192 = vmatpush.msra.mxu0 %v2137
    %2193 = vmatpush.msra.mxu0 %v2133
    %2194 = vmatpush.msra.mxu0 %v2129
    %2195 = vmatpush.msra.mxu0 %v2125
    %2196 = vmatpush.msra.mxu0 %v2121
    %2197 = vmatpush.msra.mxu0 %v2117
    %2198 = vmatpush.msra.mxu0 %v2113
    %2199 = vmatpush.msra.mxu0 %v2109
    %2200 = vmatpush.msra.mxu0 %v2105
    %2201 = vmatpush.msra.mxu0 %v2101
    %2202 = vmatpush.msra.mxu0 %v2097
    %2203 = vmatpush.msra.mxu0 %v2093
    %2204 = vmatpush.msra.mxu0 %v2089
    %2205 = vmatpush.msra.mxu0 %v2085
    %2206 = vmatpush.msra.mxu0 %v2081
    %2207 = vmatpush.msra.mxu0 %v2077
    %2208 = vmatmul.f32.gmra.mxu0 %v2068
    %v2209 = vpop.f32.mrf.mxu0
    %v2210 = vadd.f32 %v2144, %v2209
    %2211 = vmatmul.f32.gmra.mxu0 %v2069
    %v2212 = vpop.f32.mrf.mxu0
    %v2213 = vadd.f32 %v2144, %v2212
    %2214 = vmatmul.f32.gmra.mxu0 %v2070
    %v2215 = vpop.f32.mrf.mxu0
    %v2216 = vadd.f32 %v2144, %v2215
    %2217 = vmatmul.f32.gmra.mxu0 %v2071
    %v2218 = vpop.f32.mrf.mxu0
    %v2219 = vadd.f32 %v2144, %v2218
    %2220 = vmatmul.f32.gmra.mxu0 %v2072
    %v2221 = vpop.f32.mrf.mxu0
    %v2222 = vadd.f32 %v2144, %v2221
    %2223 = vmatmul.f32.gmra.mxu0 %v2073
    %v2224 = vpop.f32.mrf.mxu0
    %v2225 = vadd.f32 %v2144, %v2224
    %2226 = vmatmul.f32.gmra.mxu0 %v2074
    %v2227 = vpop.f32.mrf.mxu0
    %v2228 = vadd.f32 %v2144, %v2227
    %2229 = vmatmul.f32.gmra.mxu0 %v2075
    %v2230 = vpop.f32.mrf.mxu0
    %v2231 = vadd.f32 %v2144, %v2230
    %2232 = vdwg.mxu0
    %2233 = vmatpush.msra.mxu0 %v2138
    %2234 = vmatpush.msra.mxu0 %v2134
    %2235 = vmatpush.msra.mxu0 %v2130
    %2236 = vmatpush.msra.mxu0 %v2126
    %2237 = vmatpush.msra.mxu0 %v2122
    %2238 = vmatpush.msra.mxu0 %v2118
    %2239 = vmatpush.msra.mxu0 %v2114
    %2240 = vmatpush.msra.mxu0 %v2110
    %2241 = vmatpush.msra.mxu0 %v2106
    %2242 = vmatpush.msra.mxu0 %v2102
    %2243 = vmatpush.msra.mxu0 %v2098
    %2244 = vmatpush.msra.mxu0 %v2094
    %2245 = vmatpush.msra.mxu0 %v2090
    %2246 = vmatpush.msra.mxu0 %v2086
    %2247 = vmatpush.msra.mxu0 %v2082
    %2248 = vmatpush.msra.mxu0 %v2078
    %2249 = vmatmul.f32.gmra.mxu0 %v2068
    %v2250 = vpop.f32.mrf.mxu0
    %v2251 = vadd.f32 %v2145, %v2250
    %2252 = vmatmul.f32.gmra.mxu0 %v2069
    %v2253 = vpop.f32.mrf.mxu0
    %v2254 = vadd.f32 %v2145, %v2253
    %2255 = vmatmul.f32.gmra.mxu0 %v2070
    %v2256 = vpop.f32.mrf.mxu0
    %v2257 = vadd.f32 %v2145, %v2256
    %2258 = vmatmul.f32.gmra.mxu0 %v2071
    %v2259 = vpop.f32.mrf.mxu0
    %v2260 = vadd.f32 %v2145, %v2259
    %2261 = vmatmul.f32.gmra.mxu0 %v2072
    %v2262 = vpop.f32.mrf.mxu0
    %v2263 = vadd.f32 %v2145, %v2262
    %2264 = vmatmul.f32.gmra.mxu0 %v2073
    %v2265 = vpop.f32.mrf.mxu0
    %v2266 = vadd.f32 %v2145, %v2265
    %2267 = vmatmul.f32.gmra.mxu0 %v2074
    %v2268 = vpop.f32.mrf.mxu0
    %v2269 = vadd.f32 %v2145, %v2268
    %2270 = vmatmul.f32.gmra.mxu0 %v2075
    %v2271 = vpop.f32.mrf.mxu0
    %v2272 = vadd.f32 %v2145, %v2271
    %2273 = vdwg.mxu0
    %2274 = vmatpush.msra.mxu0 %v2139
    %2275 = vmatpush.msra.mxu0 %v2135
    %2276 = vmatpush.msra.mxu0 %v2131
    %2277 = vmatpush.msra.mxu0 %v2127
    %2278 = vmatpush.msra.mxu0 %v2123
    %2279 = vmatpush.msra.mxu0 %v2119
    %2280 = vmatpush.msra.mxu0 %v2115
    %2281 = vmatpush.msra.mxu0 %v2111
    %2282 = vmatpush.msra.mxu0 %v2107
    %2283 = vmatpush.msra.mxu0 %v2103
    %2284 = vmatpush.msra.mxu0 %v2099
    %2285 = vmatpush.msra.mxu0 %v2095
    %2286 = vmatpush.msra.mxu0 %v2091
    %2287 = vmatpush.msra.mxu0 %v2087
    %2288 = vmatpush.msra.mxu0 %v2083
    %2289 = vmatpush.msra.mxu0 %v2079
    %2290 = vmatmul.f32.gmra.mxu0 %v2068
    %v2291 = vpop.f32.mrf.mxu0
    %v2292 = vadd.f32 %v2146, %v2291
    %2293 = vmatmul.f32.gmra.mxu0 %v2069
    %v2294 = vpop.f32.mrf.mxu0
    %v2295 = vadd.f32 %v2146, %v2294
    %2296 = vmatmul.f32.gmra.mxu0 %v2070
    %v2297 = vpop.f32.mrf.mxu0
    %v2298 = vadd.f32 %v2146, %v2297
    %2299 = vmatmul.f32.gmra.mxu0 %v2071
    %v2300 = vpop.f32.mrf.mxu0
    %v2301 = vadd.f32 %v2146, %v2300
    %2302 = vmatmul.f32.gmra.mxu0 %v2072
    %v2303 = vpop.f32.mrf.mxu0
    %v2304 = vadd.f32 %v2146, %v2303
    %2305 = vmatmul.f32.gmra.mxu0 %v2073
    %v2306 = vpop.f32.mrf.mxu0
    %v2307 = vadd.f32 %v2146, %v2306
    %2308 = vmatmul.f32.gmra.mxu0 %v2074
    %v2309 = vpop.f32.mrf.mxu0
    %v2310 = vadd.f32 %v2146, %v2309
    %2311 = vmatmul.f32.gmra.mxu0 %v2075
    %v2312 = vpop.f32.mrf.mxu0
    %v2313 = vadd.f32 %v2146, %v2312
    %2314 = vdwg.mxu0
    %2315 = vst [vmem:[#allocation2] sm:$0xff] %v2169
    %2316 = vst [vmem:[#allocation2 + $0x8] sm:$0xff] %v2210
    %2317 = vst [vmem:[#allocation2 + $0x10] sm:$0xff] %v2251
    %2318 = vst [vmem:[#allocation2 + $0x18] sm:$0xff] %v2292
    %2319 = vst [vmem:[#allocation2 + $0x20] sm:$0xff] %v2172
    %2320 = vst [vmem:[#allocation2 + $0x28] sm:$0xff] %v2213
    %2321 = vst [vmem:[#allocation2 + $0x30] sm:$0xff] %v2254
    %2322 = vst [vmem:[#allocation2 + $0x38] sm:$0xff] %v2295
    %2323 = vst [vmem:[#allocation2 + $0x40] sm:$0xff] %v2175
    %2324 = vst [vmem:[#allocation2 + $0x48] sm:$0xff] %v2216
    %2325 = vst [vmem:[#allocation2 + $0x50] sm:$0xff] %v2257
    %2326 = vst [vmem:[#allocation2 + $0x58] sm:$0xff] %v2298
    %2327 = vst [vmem:[#allocation2 + $0x60] sm:$0xff] %v2178
    %2328 = vst [vmem:[#allocation2 + $0x68] sm:$0xff] %v2219
    %2329 = vst [vmem:[#allocation2 + $0x70] sm:$0xff] %v2260
    %2330 = vst [vmem:[#allocation2 + $0x78] sm:$0xff] %v2301
    %2331 = vst [vmem:[#allocation2 + $0x80] sm:$0xff] %v2181
    %2332 = vst [vmem:[#allocation2 + $0x88] sm:$0xff] %v2222
    %2333 = vst [vmem:[#allocation2 + $0x90] sm:$0xff] %v2263
    %2334 = vst [vmem:[#allocation2 + $0x98] sm:$0xff] %v2304
    %2335 = vst [vmem:[#allocation2 + $0xa0] sm:$0xff] %v2184
    %2336 = vst [vmem:[#allocation2 + $0xa8] sm:$0xff] %v2225
    %2337 = vst [vmem:[#allocation2 + $0xb0] sm:$0xff] %v2266
    %2338 = vst [vmem:[#allocation2 + $0xb8] sm:$0xff] %v2307
    %2339 = vst [vmem:[#allocation2 + $0xc0] sm:$0xff] %v2187
    %2340 = vst [vmem:[#allocation2 + $0xc8] sm:$0xff] %v2228
    %2341 = vst [vmem:[#allocation2 + $0xd0] sm:$0xff] %v2269
    %2342 = vst [vmem:[#allocation2 + $0xd8] sm:$0xff] %v2310
    %2343 = vst [vmem:[#allocation2 + $0xe0] sm:$0xff] %v2190
    %2344 = vst [vmem:[#allocation2 + $0xe8] sm:$0xff] %v2231
    %2345 = vst [vmem:[#allocation2 + $0xf0] sm:$0xff] %v2272
    %2346 = vst [vmem:[#allocation2 + $0xf8] sm:$0xff] %v2313
    %v2347 = vld [vmem:[#allocation2] sm:$0xff]
    %v2348 = vld [vmem:[#allocation2 + $0x8] sm:$0xff]
    %v2349 = vld [vmem:[#allocation2 + $0xf0] sm:$0xff]
    %v2350 = vld [vmem:[#allocation2 + $0xf8] sm:$0xff]
    %v2351 = vxor.u32 %v2347, 2147483648
    %v2352 = vxor.u32 %v2348, 2147483648
    %v2353 = vxor.u32 %v2349, 2147483648
    %v2354 = vxor.u32 %v2350, 2147483648
    %v2355 = vmul.f32 %v2351, 1.442695
    %v2356 = vpow.pop %v2355
    %v2357 = vmul.f32 %v2352, 1.442695
    %v2358 = vpow.pop %v2357
    %v2359 = vmul.f32 %v2353, 1.442695
    %v2360 = vpow.pop %v2359
    %v2361 = vmul.f32 %v2354, 1.442695
    %v2362 = vpow.pop %v2361
    %v2363 = vadd.f32 %v2356, 1.0
    %v2364 = vadd.f32 %v2358, 1.0
    %v2365 = vadd.f32 %v2360, 1.0
    %v2366 = vadd.f32 %v2362, 1.0
    %v2367 = vrcp.pop %v2363
    %v2368 = vmul.f32 %v2363, %v2367
    %v2369 = vsub.f32 1.0, %v2368
    %v2370 = vmul.f32 %v2367, %v2369
    %v2371 = vadd.f32 %v2367, %v2370
    %vm2372 = vweird.f32 %v2363
    %vm2373 = vweird.f32 %v2367
    %vm2374 = vmor %vm2372, %vm2373
    %v2375 = vsel %vm2374, %v2367, %v2371
    %v2376 = vand.u32 2147483647, %v2363
    %vm2377 = vcmp.eq.f32.partialorder %v2376, 8.507059e+37
    %v2378 = vand.u32 %v2363, 2147483648
    %v2379 = vor.u32 1.1754944e-38, %v2378
    %v2380 = vsel %vm2377, %v2379, %v2375
    %v2381 = vmul.f32 1.0, %v2380
    %v2382 = vrcp.pop %v2364
    %v2383 = vmul.f32 %v2364, %v2382
    %v2384 = vsub.f32 1.0, %v2383
    %v2385 = vmul.f32 %v2382, %v2384
    %v2386 = vadd.f32 %v2382, %v2385
    %vm2387 = vweird.f32 %v2364
    %vm2388 = vweird.f32 %v2382
    %vm2389 = vmor %vm2387, %vm2388
    %v2390 = vsel %vm2389, %v2382, %v2386
    %v2391 = vand.u32 2147483647, %v2364
    %vm2392 = vcmp.eq.f32.partialorder %v2391, 8.507059e+37
    %v2393 = vand.u32 %v2364, 2147483648
    %v2394 = vor.u32 1.1754944e-38, %v2393
    %v2395 = vsel %vm2392, %v2394, %v2390
    %v2396 = vmul.f32 1.0, %v2395
    %v2397 = vrcp.pop %v2365
    %v2398 = vmul.f32 %v2365, %v2397
    %v2399 = vsub.f32 1.0, %v2398
    %v2400 = vmul.f32 %v2397, %v2399
    %v2401 = vadd.f32 %v2397, %v2400
    %vm2402 = vweird.f32 %v2365
    %vm2403 = vweird.f32 %v2397
    %vm2404 = vmor %vm2402, %vm2403
    %v2405 = vsel %vm2404, %v2397, %v2401
    %v2406 = vand.u32 2147483647, %v2365
    %vm2407 = vcmp.eq.f32.partialorder %v2406, 8.507059e+37
    %v2408 = vand.u32 %v2365, 2147483648
    %v2409 = vor.u32 1.1754944e-38, %v2408
    %v2410 = vsel %vm2407, %v2409, %v2405
    %v2411 = vmul.f32 1.0, %v2410
    %v2412 = vrcp.pop %v2366
    %v2413 = vmul.f32 %v2366, %v2412
    %v2414 = vsub.f32 1.0, %v2413
    %v2415 = vmul.f32 %v2412, %v2414
    %v2416 = vadd.f32 %v2412, %v2415
    %vm2417 = vweird.f32 %v2366
    %vm2418 = vweird.f32 %v2412
    %vm2419 = vmor %vm2417, %vm2418
    %v2420 = vsel %vm2419, %v2412, %v2416
    %v2421 = vand.u32 2147483647, %v2366
    %vm2422 = vcmp.eq.f32.partialorder %v2421, 8.507059e+37
    %v2423 = vand.u32 %v2366, 2147483648
    %v2424 = vor.u32 1.1754944e-38, %v2423
    %v2425 = vsel %vm2422, %v2424, %v2420
    %v2426 = vmul.f32 1.0, %v2425
    %v2427 = vmul.f32 %v2381, 0.0
    %v2428 = vmul.f32 %v2411, 0.0
    %v2429 = vmul.f32 %v2396, 2.0
    %v2430 = vmul.f32 %v2426, 2.0
    %v2431 = vsub.f32 %v2429, 1.0
    %v2432 = vsub.f32 %v2430, 1.0
    %2435 = vrot.lane.b32.xlu0 %v2431, 64
    %v2436 = vpop.permute.xlu0 %2435
    %2437 = vrot.lane.b32.xlu0 %v2432, 64
    %v2438 = vpop.permute.xlu0 %2437
    %v2441 = vmul.f32 %v2381, %v2436
    %v2442 = vmul.f32 %v2411, %v2438
    %2445 = vrot.lane.b32.xlu0 %v2441, 64
    %v2446 = vpop.permute.xlu0 %2445
    %2447 = vrot.lane.b32.xlu0 %v2442, 64
    %v2448 = vpop.permute.xlu0 %2447
    %v2451 = vadd.f32 %v2427, %v2446
    %v2452 = vadd.f32 %v2428, %v2448
    %v2453 = vtanh.pop %v2451
    %v2454 = vtanh.pop %v2452
    %2457 = vrot.lane.b32.xlu0 %v2453, 64
    %v2458 = vpop.permute.xlu0 %2457
    %2459 = vrot.lane.b32.xlu0 %v2454, 64
    %v2460 = vpop.permute.xlu0 %2459
    %v2463 = vmul.f32 %v2396, %v2458
    %v2464 = vmul.f32 %v2426, %v2460
    %v2465 = vld [vmem:[#allocation2 + $0x20] sm:$0xff]
    %v2466 = vld [vmem:[#allocation2 + $0x28] sm:$0xff]
    %v2467 = vld [vmem:[#allocation2 + $0xd0] sm:$0xff]
    %v2468 = vld [vmem:[#allocation2 + $0xd8] sm:$0xff]
    %v2469 = vld [vmem:[#allocation3 + $0x3a0] sm:$0xff]
    %v2470 = vld [vmem:[#allocation3 + $0x3a8] sm:$0xff]
    %v2471 = vld [vmem:[#allocation3 + $0x3b0] sm:$0xff]
    %v2472 = vld [vmem:[#allocation3 + $0x3b8] sm:$0xff]
    %v2473 = vld [vmem:[#allocation3 + $0x3c0] sm:$0xff]
    %v2474 = vld [vmem:[#allocation3 + $0x3c8] sm:$0xff]
    %v2475 = vld [vmem:[#allocation3 + $0x3d0] sm:$0xff]
    %v2476 = vld [vmem:[#allocation3 + $0x3d8] sm:$0xff]
    %v2477 = vld [vmem:[#allocation3 + $0x3e0] sm:$0xff]
    %v2478 = vld [vmem:[#allocation3 + $0x3e8] sm:$0xff]
    %v2479 = vld [vmem:[#allocation3 + $0x3f0] sm:$0xff]
    %v2480 = vld [vmem:[#allocation3 + $0x3f8] sm:$0xff]
    %v2481 = vld [vmem:[#allocation3 + $0x400] sm:$0xff]
    %v2482 = vld [vmem:[#allocation3 + $0x408] sm:$0xff]
    %v2483 = vld [vmem:[#allocation3 + $0x410] sm:$0xff]
    %v2484 = vld [vmem:[#allocation3 + $0x418] sm:$0xff]
    %v2485 = vld [vmem:[#allocation3 + $0x420] sm:$0xff]
    %v2486 = vld [vmem:[#allocation3 + $0x428] sm:$0xff]
    %v2487 = vld [vmem:[#allocation3 + $0x430] sm:$0xff]
    %v2488 = vld [vmem:[#allocation3 + $0x438] sm:$0xff]
    %v2489 = vld [vmem:[#allocation3 + $0x440] sm:$0xff]
    %v2490 = vld [vmem:[#allocation3 + $0x448] sm:$0xff]
    %v2491 = vld [vmem:[#allocation3 + $0x450] sm:$0xff]
    %v2492 = vld [vmem:[#allocation3 + $0x458] sm:$0xff]
    %v2493 = vld [vmem:[#allocation3 + $0x460] sm:$0xff]
    %v2494 = vld [vmem:[#allocation3 + $0x468] sm:$0xff]
    %v2495 = vld [vmem:[#allocation3 + $0x470] sm:$0xff]
    %v2496 = vld [vmem:[#allocation3 + $0x478] sm:$0xff]
    %v2497 = vld [vmem:[#allocation3 + $0x480] sm:$0xff]
    %v2498 = vld [vmem:[#allocation3 + $0x488] sm:$0xff]
    %v2499 = vld [vmem:[#allocation3 + $0x490] sm:$0xff]
    %v2500 = vld [vmem:[#allocation3 + $0x498] sm:$0xff]
    %v2502 = vsel %vm534, %v2463, 0
    %v2505 = vsel %vm534, %v2464, 0
    %2507 = vmatpush.msra.mxu0 0.0
    %2508 = vmatpush.msra.mxu0 0.0
    %2509 = vmatpush.msra.mxu0 0.0
    %2510 = vmatpush.msra.mxu0 0.0
    %2511 = vmatpush.msra.mxu0 0.0
    %2512 = vmatpush.msra.mxu0 0.0
    %2513 = vmatpush.msra.mxu0 0.0
    %2514 = vmatpush.msra.mxu0 0.0
    %2515 = vmatpush.msra.mxu0 %v2497
    %2516 = vmatpush.msra.mxu0 %v2493
    %2517 = vmatpush.msra.mxu0 %v2489
    %2518 = vmatpush.msra.mxu0 %v2485
    %2519 = vmatpush.msra.mxu0 %v2481
    %2520 = vmatpush.msra.mxu0 %v2477
    %2521 = vmatpush.msra.mxu0 %v2473
    %2522 = vmatpush.msra.mxu0 %v2469
    %2523 = vmatmul.f32.gmra.mxu0 %v2502
    %v2524 = vpop.f32.mrf.mxu0
    %v2525 = vadd.f32 0.0, %v2524
    %2526 = vmatmul.f32.gmra.mxu0 %v2505
    %v2527 = vpop.f32.mrf.mxu0
    %2528 = vdwg.mxu0
    %2529 = vmatpush.msra.mxu0 0.0
    %2530 = vmatpush.msra.mxu0 0.0
    %2531 = vmatpush.msra.mxu0 0.0
    %2532 = vmatpush.msra.mxu0 0.0
    %2533 = vmatpush.msra.mxu0 0.0
    %2534 = vmatpush.msra.mxu0 0.0
    %2535 = vmatpush.msra.mxu0 0.0
    %2536 = vmatpush.msra.mxu0 0.0
    %2537 = vmatpush.msra.mxu0 %v2498
    %2538 = vmatpush.msra.mxu0 %v2494
    %2539 = vmatpush.msra.mxu0 %v2490
    %2540 = vmatpush.msra.mxu0 %v2486
    %2541 = vmatpush.msra.mxu0 %v2482
    %2542 = vmatpush.msra.mxu0 %v2478
    %2543 = vmatpush.msra.mxu0 %v2474
    %2544 = vmatpush.msra.mxu0 %v2470
    %2545 = vmatmul.f32.gmra.mxu0 %v2502
    %v2546 = vpop.f32.mrf.mxu0
    %v2547 = vadd.f32 0.0, %v2546
    %2548 = vmatmul.f32.gmra.mxu0 %v2505
    %v2549 = vpop.f32.mrf.mxu0
    %2550 = vdwg.mxu0
    %2551 = vmatpush.msra.mxu0 0.0
    %2552 = vmatpush.msra.mxu0 0.0
    %2553 = vmatpush.msra.mxu0 0.0
    %2554 = vmatpush.msra.mxu0 0.0
    %2555 = vmatpush.msra.mxu0 0.0
    %2556 = vmatpush.msra.mxu0 0.0
    %2557 = vmatpush.msra.mxu0 0.0
    %2558 = vmatpush.msra.mxu0 0.0
    %2559 = vmatpush.msra.mxu0 %v2499
    %2560 = vmatpush.msra.mxu0 %v2495
    %2561 = vmatpush.msra.mxu0 %v2491
    %2562 = vmatpush.msra.mxu0 %v2487
    %2563 = vmatpush.msra.mxu0 %v2483
    %2564 = vmatpush.msra.mxu0 %v2479
    %2565 = vmatpush.msra.mxu0 %v2475
    %2566 = vmatpush.msra.mxu0 %v2471
    %2567 = vmatmul.f32.gmra.mxu0 %v2502
    %v2568 = vpop.f32.mrf.mxu0
    %2569 = vmatmul.f32.gmra.mxu0 %v2505
    %v2570 = vpop.f32.mrf.mxu0
    %v2571 = vadd.f32 0.0, %v2570
    %2572 = vdwg.mxu0
    %2573 = vmatpush.msra.mxu0 0.0
    %2574 = vmatpush.msra.mxu0 0.0
    %2575 = vmatpush.msra.mxu0 0.0
    %2576 = vmatpush.msra.mxu0 0.0
    %2577 = vmatpush.msra.mxu0 0.0
    %2578 = vmatpush.msra.mxu0 0.0
    %2579 = vmatpush.msra.mxu0 0.0
    %2580 = vmatpush.msra.mxu0 0.0
    %2581 = vmatpush.msra.mxu0 %v2500
    %2582 = vmatpush.msra.mxu0 %v2496
    %2583 = vmatpush.msra.mxu0 %v2492
    %2584 = vmatpush.msra.mxu0 %v2488
    %2585 = vmatpush.msra.mxu0 %v2484
    %2586 = vmatpush.msra.mxu0 %v2480
    %2587 = vmatpush.msra.mxu0 %v2476
    %2588 = vmatpush.msra.mxu0 %v2472
    %2589 = vmatmul.f32.gmra.mxu0 %v2502
    %v2590 = vpop.f32.mrf.mxu0
    %2591 = vmatmul.f32.gmra.mxu0 %v2505
    %v2592 = vpop.f32.mrf.mxu0
    %v2593 = vadd.f32 0.0, %v2592
    %2594 = vdwg.mxu0
    %v2595 = vadd.f32 %v2465, %v2525
    %v2596 = vadd.f32 %v2466, %v2547
    %v2597 = vadd.f32 %v2467, %v2571
    %v2598 = vadd.f32 %v2468, %v2593
    %v2599 = vxor.u32 %v2595, 2147483648
    %v2600 = vxor.u32 %v2596, 2147483648
    %v2601 = vxor.u32 %v2597, 2147483648
    %v2602 = vxor.u32 %v2598, 2147483648
    %v2603 = vmul.f32 %v2599, 1.442695
    %v2604 = vpow.pop %v2603
    %v2605 = vmul.f32 %v2600, 1.442695
    %v2606 = vpow.pop %v2605
    %v2607 = vmul.f32 %v2601, 1.442695
    %v2608 = vpow.pop %v2607
    %v2609 = vmul.f32 %v2602, 1.442695
    %v2610 = vpow.pop %v2609
    %v2611 = vadd.f32 %v2604, 1.0
    %v2612 = vadd.f32 %v2606, 1.0
    %v2613 = vadd.f32 %v2608, 1.0
    %v2614 = vadd.f32 %v2610, 1.0
    %v2615 = vrcp.pop %v2611
    %v2616 = vmul.f32 %v2611, %v2615
    %v2617 = vsub.f32 1.0, %v2616
    %v2618 = vmul.f32 %v2615, %v2617
    %v2619 = vadd.f32 %v2615, %v2618
    %vm2620 = vweird.f32 %v2611
    %vm2621 = vweird.f32 %v2615
    %vm2622 = vmor %vm2620, %vm2621
    %v2623 = vsel %vm2622, %v2615, %v2619
    %v2624 = vand.u32 2147483647, %v2611
    %vm2625 = vcmp.eq.f32.partialorder %v2624, 8.507059e+37
    %v2626 = vand.u32 %v2611, 2147483648
    %v2627 = vor.u32 1.1754944e-38, %v2626
    %v2628 = vsel %vm2625, %v2627, %v2623
    %v2629 = vmul.f32 1.0, %v2628
    %v2630 = vrcp.pop %v2612
    %v2631 = vmul.f32 %v2612, %v2630
    %v2632 = vsub.f32 1.0, %v2631
    %v2633 = vmul.f32 %v2630, %v2632
    %v2634 = vadd.f32 %v2630, %v2633
    %vm2635 = vweird.f32 %v2612
    %vm2636 = vweird.f32 %v2630
    %vm2637 = vmor %vm2635, %vm2636
    %v2638 = vsel %vm2637, %v2630, %v2634
    %v2639 = vand.u32 2147483647, %v2612
    %vm2640 = vcmp.eq.f32.partialorder %v2639, 8.507059e+37
    %v2641 = vand.u32 %v2612, 2147483648
    %v2642 = vor.u32 1.1754944e-38, %v2641
    %v2643 = vsel %vm2640, %v2642, %v2638
    %v2644 = vmul.f32 1.0, %v2643
    %v2645 = vrcp.pop %v2613
    %v2646 = vmul.f32 %v2613, %v2645
    %v2647 = vsub.f32 1.0, %v2646
    %v2648 = vmul.f32 %v2645, %v2647
    %v2649 = vadd.f32 %v2645, %v2648
    %vm2650 = vweird.f32 %v2613
    %vm2651 = vweird.f32 %v2645
    %vm2652 = vmor %vm2650, %vm2651
    %v2653 = vsel %vm2652, %v2645, %v2649
    %v2654 = vand.u32 2147483647, %v2613
    %vm2655 = vcmp.eq.f32.partialorder %v2654, 8.507059e+37
    %v2656 = vand.u32 %v2613, 2147483648
    %v2657 = vor.u32 1.1754944e-38, %v2656
    %v2658 = vsel %vm2655, %v2657, %v2653
    %v2659 = vmul.f32 1.0, %v2658
    %v2660 = vrcp.pop %v2614
    %v2661 = vmul.f32 %v2614, %v2660
    %v2662 = vsub.f32 1.0, %v2661
    %v2663 = vmul.f32 %v2660, %v2662
    %v2664 = vadd.f32 %v2660, %v2663
    %vm2665 = vweird.f32 %v2614
    %vm2666 = vweird.f32 %v2660
    %vm2667 = vmor %vm2665, %vm2666
    %v2668 = vsel %vm2667, %v2660, %v2664
    %v2669 = vand.u32 2147483647, %v2614
    %vm2670 = vcmp.eq.f32.partialorder %v2669, 8.507059e+37
    %v2671 = vand.u32 %v2614, 2147483648
    %v2672 = vor.u32 1.1754944e-38, %v2671
    %v2673 = vsel %vm2670, %v2672, %v2668
    %v2674 = vmul.f32 1.0, %v2673
    %v2675 = vmul.f32 %v2629, %v2451
    %v2676 = vmul.f32 %v2659, %v2452
    %v2677 = vmul.f32 %v2644, 2.0
    %v2678 = vmul.f32 %v2674, 2.0
    %v2679 = vsub.f32 %v2677, 1.0
    %v2680 = vsub.f32 %v2678, 1.0
    %2683 = vrot.lane.b32.xlu0 %v2679, 64
    %v2684 = vpop.permute.xlu0 %2683
    %2685 = vrot.lane.b32.xlu0 %v2680, 64
    %v2686 = vpop.permute.xlu0 %2685
    %v2689 = vmul.f32 %v2629, %v2684
    %v2690 = vmul.f32 %v2659, %v2686
    %2693 = vrot.lane.b32.xlu0 %v2689, 64
    %v2694 = vpop.permute.xlu0 %2693
    %2695 = vrot.lane.b32.xlu0 %v2690, 64
    %v2696 = vpop.permute.xlu0 %2695
    %v2699 = vadd.f32 %v2675, %v2694
    %v2700 = vadd.f32 %v2676, %v2696
    %v2701 = vtanh.pop %v2699
    %v2702 = vtanh.pop %v2700
    %2705 = vrot.lane.b32.xlu0 %v2701, 64
    %v2706 = vpop.permute.xlu0 %2705
    %2707 = vrot.lane.b32.xlu0 %v2702, 64
    %v2708 = vpop.permute.xlu0 %2707
    %v2711 = vmul.f32 %v2644, %v2706
    %v2712 = vmul.f32 %v2674, %v2708
    %v2713 = vld [vmem:[#allocation2 + $0x40] sm:$0xff]
    %v2714 = vld [vmem:[#allocation2 + $0x48] sm:$0xff]
    %v2715 = vld [vmem:[#allocation2 + $0xb0] sm:$0xff]
    %v2716 = vld [vmem:[#allocation2 + $0xb8] sm:$0xff]
    %v2718 = vsel %vm534, %v2711, 0
    %v2721 = vsel %vm534, %v2712, 0
    %2723 = vmatpush.msra.mxu0 0.0
    %2724 = vmatpush.msra.mxu0 0.0
    %2725 = vmatpush.msra.mxu0 0.0
    %2726 = vmatpush.msra.mxu0 0.0
    %2727 = vmatpush.msra.mxu0 0.0
    %2728 = vmatpush.msra.mxu0 0.0
    %2729 = vmatpush.msra.mxu0 0.0
    %2730 = vmatpush.msra.mxu0 0.0
    %2731 = vmatpush.msra.mxu0 %v2497
    %2732 = vmatpush.msra.mxu0 %v2493
    %2733 = vmatpush.msra.mxu0 %v2489
    %2734 = vmatpush.msra.mxu0 %v2485
    %2735 = vmatpush.msra.mxu0 %v2481
    %2736 = vmatpush.msra.mxu0 %v2477
    %2737 = vmatpush.msra.mxu0 %v2473
    %2738 = vmatpush.msra.mxu0 %v2469
    %2739 = vmatmul.f32.gmra.mxu0 %v2718
    %v2740 = vpop.f32.mrf.mxu0
    %v2741 = vadd.f32 0.0, %v2740
    %2742 = vmatmul.f32.gmra.mxu0 %v2721
    %v2743 = vpop.f32.mrf.mxu0
    %2744 = vdwg.mxu0
    %2745 = vmatpush.msra.mxu0 0.0
    %2746 = vmatpush.msra.mxu0 0.0
    %2747 = vmatpush.msra.mxu0 0.0
    %2748 = vmatpush.msra.mxu0 0.0
    %2749 = vmatpush.msra.mxu0 0.0
    %2750 = vmatpush.msra.mxu0 0.0
    %2751 = vmatpush.msra.mxu0 0.0
    %2752 = vmatpush.msra.mxu0 0.0
    %2753 = vmatpush.msra.mxu0 %v2498
    %2754 = vmatpush.msra.mxu0 %v2494
    %2755 = vmatpush.msra.mxu0 %v2490
    %2756 = vmatpush.msra.mxu0 %v2486
    %2757 = vmatpush.msra.mxu0 %v2482
    %2758 = vmatpush.msra.mxu0 %v2478
    %2759 = vmatpush.msra.mxu0 %v2474
    %2760 = vmatpush.msra.mxu0 %v2470
    %2761 = vmatmul.f32.gmra.mxu0 %v2718
    %v2762 = vpop.f32.mrf.mxu0
    %v2763 = vadd.f32 0.0, %v2762
    %2764 = vmatmul.f32.gmra.mxu0 %v2721
    %v2765 = vpop.f32.mrf.mxu0
    %2766 = vdwg.mxu0
    %2767 = vmatpush.msra.mxu0 0.0
    %2768 = vmatpush.msra.mxu0 0.0
    %2769 = vmatpush.msra.mxu0 0.0
    %2770 = vmatpush.msra.mxu0 0.0
    %2771 = vmatpush.msra.mxu0 0.0
    %2772 = vmatpush.msra.mxu0 0.0
    %2773 = vmatpush.msra.mxu0 0.0
    %2774 = vmatpush.msra.mxu0 0.0
    %2775 = vmatpush.msra.mxu0 %v2499
    %2776 = vmatpush.msra.mxu0 %v2495
    %2777 = vmatpush.msra.mxu0 %v2491
    %2778 = vmatpush.msra.mxu0 %v2487
    %2779 = vmatpush.msra.mxu0 %v2483
    %2780 = vmatpush.msra.mxu0 %v2479
    %2781 = vmatpush.msra.mxu0 %v2475
    %2782 = vmatpush.msra.mxu0 %v2471
    %2783 = vmatmul.f32.gmra.mxu0 %v2718
    %v2784 = vpop.f32.mrf.mxu0
    %2785 = vmatmul.f32.gmra.mxu0 %v2721
    %v2786 = vpop.f32.mrf.mxu0
    %v2787 = vadd.f32 0.0, %v2786
    %2788 = vdwg.mxu0
    %2789 = vmatpush.msra.mxu0 0.0
    %2790 = vmatpush.msra.mxu0 0.0
    %2791 = vmatpush.msra.mxu0 0.0
    %2792 = vmatpush.msra.mxu0 0.0
    %2793 = vmatpush.msra.mxu0 0.0
    %2794 = vmatpush.msra.mxu0 0.0
    %2795 = vmatpush.msra.mxu0 0.0
    %2796 = vmatpush.msra.mxu0 0.0
    %2797 = vmatpush.msra.mxu0 %v2500
    %2798 = vmatpush.msra.mxu0 %v2496
    %2799 = vmatpush.msra.mxu0 %v2492
    %2800 = vmatpush.msra.mxu0 %v2488
    %2801 = vmatpush.msra.mxu0 %v2484
    %2802 = vmatpush.msra.mxu0 %v2480
    %2803 = vmatpush.msra.mxu0 %v2476
    %2804 = vmatpush.msra.mxu0 %v2472
    %2805 = vmatmul.f32.gmra.mxu0 %v2718
    %v2806 = vpop.f32.mrf.mxu0
    %2807 = vmatmul.f32.gmra.mxu0 %v2721
    %v2808 = vpop.f32.mrf.mxu0
    %v2809 = vadd.f32 0.0, %v2808
    %2810 = vdwg.mxu0
    %v2811 = vadd.f32 %v2713, %v2741
    %v2812 = vadd.f32 %v2714, %v2763
    %v2813 = vadd.f32 %v2715, %v2787
    %v2814 = vadd.f32 %v2716, %v2809
    %v2815 = vxor.u32 %v2811, 2147483648
    %v2816 = vxor.u32 %v2812, 2147483648
    %v2817 = vxor.u32 %v2813, 2147483648
    %v2818 = vxor.u32 %v2814, 2147483648
    %v2819 = vmul.f32 %v2815, 1.442695
    %v2820 = vpow.pop %v2819
    %v2821 = vmul.f32 %v2816, 1.442695
    %v2822 = vpow.pop %v2821
    %v2823 = vmul.f32 %v2817, 1.442695
    %v2824 = vpow.pop %v2823
    %v2825 = vmul.f32 %v2818, 1.442695
    %v2826 = vpow.pop %v2825
    %v2827 = vadd.f32 %v2820, 1.0
    %v2828 = vadd.f32 %v2822, 1.0
    %v2829 = vadd.f32 %v2824, 1.0
    %v2830 = vadd.f32 %v2826, 1.0
    %v2831 = vrcp.pop %v2827
    %v2832 = vmul.f32 %v2827, %v2831
    %v2833 = vsub.f32 1.0, %v2832
    %v2834 = vmul.f32 %v2831, %v2833
    %v2835 = vadd.f32 %v2831, %v2834
    %vm2836 = vweird.f32 %v2827
    %vm2837 = vweird.f32 %v2831
    %vm2838 = vmor %vm2836, %vm2837
    %v2839 = vsel %vm2838, %v2831, %v2835
    %v2840 = vand.u32 2147483647, %v2827
    %vm2841 = vcmp.eq.f32.partialorder %v2840, 8.507059e+37
    %v2842 = vand.u32 %v2827, 2147483648
    %v2843 = vor.u32 1.1754944e-38, %v2842
    %v2844 = vsel %vm2841, %v2843, %v2839
    %v2845 = vmul.f32 1.0, %v2844
    %v2846 = vrcp.pop %v2828
    %v2847 = vmul.f32 %v2828, %v2846
    %v2848 = vsub.f32 1.0, %v2847
    %v2849 = vmul.f32 %v2846, %v2848
    %v2850 = vadd.f32 %v2846, %v2849
    %vm2851 = vweird.f32 %v2828
    %vm2852 = vweird.f32 %v2846
    %vm2853 = vmor %vm2851, %vm2852
    %v2854 = vsel %vm2853, %v2846, %v2850
    %v2855 = vand.u32 2147483647, %v2828
    %vm2856 = vcmp.eq.f32.partialorder %v2855, 8.507059e+37
    %v2857 = vand.u32 %v2828, 2147483648
    %v2858 = vor.u32 1.1754944e-38, %v2857
    %v2859 = vsel %vm2856, %v2858, %v2854
    %v2860 = vmul.f32 1.0, %v2859
    %v2861 = vrcp.pop %v2829
    %v2862 = vmul.f32 %v2829, %v2861
    %v2863 = vsub.f32 1.0, %v2862
    %v2864 = vmul.f32 %v2861, %v2863
    %v2865 = vadd.f32 %v2861, %v2864
    %vm2866 = vweird.f32 %v2829
    %vm2867 = vweird.f32 %v2861
    %vm2868 = vmor %vm2866, %vm2867
    %v2869 = vsel %vm2868, %v2861, %v2865
    %v2870 = vand.u32 2147483647, %v2829
    %vm2871 = vcmp.eq.f32.partialorder %v2870, 8.507059e+37
    %v2872 = vand.u32 %v2829, 2147483648
    %v2873 = vor.u32 1.1754944e-38, %v2872
    %v2874 = vsel %vm2871, %v2873, %v2869
    %v2875 = vmul.f32 1.0, %v2874
    %v2876 = vrcp.pop %v2830
    %v2877 = vmul.f32 %v2830, %v2876
    %v2878 = vsub.f32 1.0, %v2877
    %v2879 = vmul.f32 %v2876, %v2878
    %v2880 = vadd.f32 %v2876, %v2879
    %vm2881 = vweird.f32 %v2830
    %vm2882 = vweird.f32 %v2876
    %vm2883 = vmor %vm2881, %vm2882
    %v2884 = vsel %vm2883, %v2876, %v2880
    %v2885 = vand.u32 2147483647, %v2830
    %vm2886 = vcmp.eq.f32.partialorder %v2885, 8.507059e+37
    %v2887 = vand.u32 %v2830, 2147483648
    %v2888 = vor.u32 1.1754944e-38, %v2887
    %v2889 = vsel %vm2886, %v2888, %v2884
    %v2890 = vmul.f32 1.0, %v2889
    %v2891 = vmul.f32 %v2845, %v2699
    %v2892 = vmul.f32 %v2875, %v2700
    %v2893 = vmul.f32 %v2860, 2.0
    %v2894 = vmul.f32 %v2890, 2.0
    %v2895 = vsub.f32 %v2893, 1.0
    %v2896 = vsub.f32 %v2894, 1.0
    %2899 = vrot.lane.b32.xlu0 %v2895, 64
    %v2900 = vpop.permute.xlu0 %2899
    %2901 = vrot.lane.b32.xlu0 %v2896, 64
    %v2902 = vpop.permute.xlu0 %2901
    %v2905 = vmul.f32 %v2845, %v2900
    %v2906 = vmul.f32 %v2875, %v2902
    %2909 = vrot.lane.b32.xlu0 %v2905, 64
    %v2910 = vpop.permute.xlu0 %2909
    %2911 = vrot.lane.b32.xlu0 %v2906, 64
    %v2912 = vpop.permute.xlu0 %2911
    %v2915 = vadd.f32 %v2891, %v2910
    %v2916 = vadd.f32 %v2892, %v2912
    %v2917 = vtanh.pop %v2915
    %v2918 = vtanh.pop %v2916
    %2921 = vrot.lane.b32.xlu0 %v2917, 64
    %v2922 = vpop.permute.xlu0 %2921
    %2923 = vrot.lane.b32.xlu0 %v2918, 64
    %v2924 = vpop.permute.xlu0 %2923
    %v2927 = vmul.f32 %v2860, %v2922
    %v2928 = vmul.f32 %v2890, %v2924
    %v2929 = vld [vmem:[#allocation2 + $0x60] sm:$0xff]
    %v2930 = vld [vmem:[#allocation2 + $0x68] sm:$0xff]
    %v2931 = vld [vmem:[#allocation2 + $0x90] sm:$0xff]
    %v2932 = vld [vmem:[#allocation2 + $0x98] sm:$0xff]
    %v2934 = vsel %vm534, %v2927, 0
    %v2937 = vsel %vm534, %v2928, 0
    %2939 = vmatpush.msra.mxu0 0.0
    %2940 = vmatpush.msra.mxu0 0.0
    %2941 = vmatpush.msra.mxu0 0.0
    %2942 = vmatpush.msra.mxu0 0.0
    %2943 = vmatpush.msra.mxu0 0.0
    %2944 = vmatpush.msra.mxu0 0.0
    %2945 = vmatpush.msra.mxu0 0.0
    %2946 = vmatpush.msra.mxu0 0.0
    %2947 = vmatpush.msra.mxu0 %v2497
    %2948 = vmatpush.msra.mxu0 %v2493
    %2949 = vmatpush.msra.mxu0 %v2489
    %2950 = vmatpush.msra.mxu0 %v2485
    %2951 = vmatpush.msra.mxu0 %v2481
    %2952 = vmatpush.msra.mxu0 %v2477
    %2953 = vmatpush.msra.mxu0 %v2473
    %2954 = vmatpush.msra.mxu0 %v2469
    %2955 = vmatmul.f32.gmra.mxu0 %v2934
    %v2956 = vpop.f32.mrf.mxu0
    %v2957 = vadd.f32 0.0, %v2956
    %2958 = vmatmul.f32.gmra.mxu0 %v2937
    %v2959 = vpop.f32.mrf.mxu0
    %2960 = vdwg.mxu0
    %2961 = vmatpush.msra.mxu0 0.0
    %2962 = vmatpush.msra.mxu0 0.0
    %2963 = vmatpush.msra.mxu0 0.0
    %2964 = vmatpush.msra.mxu0 0.0
    %2965 = vmatpush.msra.mxu0 0.0
    %2966 = vmatpush.msra.mxu0 0.0
    %2967 = vmatpush.msra.mxu0 0.0
    %2968 = vmatpush.msra.mxu0 0.0
    %2969 = vmatpush.msra.mxu0 %v2498
    %2970 = vmatpush.msra.mxu0 %v2494
    %2971 = vmatpush.msra.mxu0 %v2490
    %2972 = vmatpush.msra.mxu0 %v2486
    %2973 = vmatpush.msra.mxu0 %v2482
    %2974 = vmatpush.msra.mxu0 %v2478
    %2975 = vmatpush.msra.mxu0 %v2474
    %2976 = vmatpush.msra.mxu0 %v2470
    %2977 = vmatmul.f32.gmra.mxu0 %v2934
    %v2978 = vpop.f32.mrf.mxu0
    %v2979 = vadd.f32 0.0, %v2978
    %2980 = vmatmul.f32.gmra.mxu0 %v2937
    %v2981 = vpop.f32.mrf.mxu0
    %2982 = vdwg.mxu0
    %2983 = vmatpush.msra.mxu0 0.0
    %2984 = vmatpush.msra.mxu0 0.0
    %2985 = vmatpush.msra.mxu0 0.0
    %2986 = vmatpush.msra.mxu0 0.0
    %2987 = vmatpush.msra.mxu0 0.0
    %2988 = vmatpush.msra.mxu0 0.0
    %2989 = vmatpush.msra.mxu0 0.0
    %2990 = vmatpush.msra.mxu0 0.0
    %2991 = vmatpush.msra.mxu0 %v2499
    %2992 = vmatpush.msra.mxu0 %v2495
    %2993 = vmatpush.msra.mxu0 %v2491
    %2994 = vmatpush.msra.mxu0 %v2487
    %2995 = vmatpush.msra.mxu0 %v2483
    %2996 = vmatpush.msra.mxu0 %v2479
    %2997 = vmatpush.msra.mxu0 %v2475
    %2998 = vmatpush.msra.mxu0 %v2471
    %2999 = vmatmul.f32.gmra.mxu0 %v2934
    %v3000 = vpop.f32.mrf.mxu0
    %3001 = vmatmul.f32.gmra.mxu0 %v2937
    %v3002 = vpop.f32.mrf.mxu0
    %v3003 = vadd.f32 0.0, %v3002
    %3004 = vdwg.mxu0
    %3005 = vmatpush.msra.mxu0 0.0
    %3006 = vmatpush.msra.mxu0 0.0
    %3007 = vmatpush.msra.mxu0 0.0
    %3008 = vmatpush.msra.mxu0 0.0
    %3009 = vmatpush.msra.mxu0 0.0
    %3010 = vmatpush.msra.mxu0 0.0
    %3011 = vmatpush.msra.mxu0 0.0
    %3012 = vmatpush.msra.mxu0 0.0
    %3013 = vmatpush.msra.mxu0 %v2500
    %3014 = vmatpush.msra.mxu0 %v2496
    %3015 = vmatpush.msra.mxu0 %v2492
    %3016 = vmatpush.msra.mxu0 %v2488
    %3017 = vmatpush.msra.mxu0 %v2484
    %3018 = vmatpush.msra.mxu0 %v2480
    %3019 = vmatpush.msra.mxu0 %v2476
    %3020 = vmatpush.msra.mxu0 %v2472
    %3021 = vmatmul.f32.gmra.mxu0 %v2934
    %v3022 = vpop.f32.mrf.mxu0
    %3023 = vmatmul.f32.gmra.mxu0 %v2937
    %v3024 = vpop.f32.mrf.mxu0
    %v3025 = vadd.f32 0.0, %v3024
    %3026 = vdwg.mxu0
    %v3027 = vadd.f32 %v2929, %v2957
    %v3028 = vadd.f32 %v2930, %v2979
    %v3029 = vadd.f32 %v2931, %v3003
    %v3030 = vadd.f32 %v2932, %v3025
    %v3031 = vxor.u32 %v3027, 2147483648
    %v3032 = vxor.u32 %v3028, 2147483648
    %v3033 = vxor.u32 %v3029, 2147483648
    %v3034 = vxor.u32 %v3030, 2147483648
    %v3035 = vmul.f32 %v3031, 1.442695
    %v3036 = vpow.pop %v3035
    %v3037 = vmul.f32 %v3032, 1.442695
    %v3038 = vpow.pop %v3037
    %v3039 = vmul.f32 %v3033, 1.442695
    %v3040 = vpow.pop %v3039
    %v3041 = vmul.f32 %v3034, 1.442695
    %v3042 = vpow.pop %v3041
    %v3043 = vadd.f32 %v3036, 1.0
    %v3044 = vadd.f32 %v3038, 1.0
    %v3045 = vadd.f32 %v3040, 1.0
    %v3046 = vadd.f32 %v3042, 1.0
    %v3047 = vrcp.pop %v3043
    %v3048 = vmul.f32 %v3043, %v3047
    %v3049 = vsub.f32 1.0, %v3048
    %v3050 = vmul.f32 %v3047, %v3049
    %v3051 = vadd.f32 %v3047, %v3050
    %vm3052 = vweird.f32 %v3043
    %vm3053 = vweird.f32 %v3047
    %vm3054 = vmor %vm3052, %vm3053
    %v3055 = vsel %vm3054, %v3047, %v3051
    %v3056 = vand.u32 2147483647, %v3043
    %vm3057 = vcmp.eq.f32.partialorder %v3056, 8.507059e+37
    %v3058 = vand.u32 %v3043, 2147483648
    %v3059 = vor.u32 1.1754944e-38, %v3058
    %v3060 = vsel %vm3057, %v3059, %v3055
    %v3061 = vmul.f32 1.0, %v3060
    %v3062 = vrcp.pop %v3044
    %v3063 = vmul.f32 %v3044, %v3062
    %v3064 = vsub.f32 1.0, %v3063
    %v3065 = vmul.f32 %v3062, %v3064
    %v3066 = vadd.f32 %v3062, %v3065
    %vm3067 = vweird.f32 %v3044
    %vm3068 = vweird.f32 %v3062
    %vm3069 = vmor %vm3067, %vm3068
    %v3070 = vsel %vm3069, %v3062, %v3066
    %v3071 = vand.u32 2147483647, %v3044
    %vm3072 = vcmp.eq.f32.partialorder %v3071, 8.507059e+37
    %v3073 = vand.u32 %v3044, 2147483648
    %v3074 = vor.u32 1.1754944e-38, %v3073
    %v3075 = vsel %vm3072, %v3074, %v3070
    %v3076 = vmul.f32 1.0, %v3075
    %v3077 = vrcp.pop %v3045
    %v3078 = vmul.f32 %v3045, %v3077
    %v3079 = vsub.f32 1.0, %v3078
    %v3080 = vmul.f32 %v3077, %v3079
    %v3081 = vadd.f32 %v3077, %v3080
    %vm3082 = vweird.f32 %v3045
    %vm3083 = vweird.f32 %v3077
    %vm3084 = vmor %vm3082, %vm3083
    %v3085 = vsel %vm3084, %v3077, %v3081
    %v3086 = vand.u32 2147483647, %v3045
    %vm3087 = vcmp.eq.f32.partialorder %v3086, 8.507059e+37
    %v3088 = vand.u32 %v3045, 2147483648
    %v3089 = vor.u32 1.1754944e-38, %v3088
    %v3090 = vsel %vm3087, %v3089, %v3085
    %v3091 = vmul.f32 1.0, %v3090
    %v3092 = vrcp.pop %v3046
    %v3093 = vmul.f32 %v3046, %v3092
    %v3094 = vsub.f32 1.0, %v3093
    %v3095 = vmul.f32 %v3092, %v3094
    %v3096 = vadd.f32 %v3092, %v3095
    %vm3097 = vweird.f32 %v3046
    %vm3098 = vweird.f32 %v3092
    %vm3099 = vmor %vm3097, %vm3098
    %v3100 = vsel %vm3099, %v3092, %v3096
    %v3101 = vand.u32 2147483647, %v3046
    %vm3102 = vcmp.eq.f32.partialorder %v3101, 8.507059e+37
    %v3103 = vand.u32 %v3046, 2147483648
    %v3104 = vor.u32 1.1754944e-38, %v3103
    %v3105 = vsel %vm3102, %v3104, %v3100
    %v3106 = vmul.f32 1.0, %v3105
    %v3107 = vmul.f32 %v3061, %v2915
    %v3108 = vmul.f32 %v3091, %v2916
    %v3109 = vmul.f32 %v3076, 2.0
    %v3110 = vmul.f32 %v3106, 2.0
    %v3111 = vsub.f32 %v3109, 1.0
    %v3112 = vsub.f32 %v3110, 1.0
    %3115 = vrot.lane.b32.xlu0 %v3111, 64
    %v3116 = vpop.permute.xlu0 %3115
    %3117 = vrot.lane.b32.xlu0 %v3112, 64
    %v3118 = vpop.permute.xlu0 %3117
    %v3121 = vmul.f32 %v3061, %v3116
    %v3122 = vmul.f32 %v3091, %v3118
    %3125 = vrot.lane.b32.xlu0 %v3121, 64
    %v3126 = vpop.permute.xlu0 %3125
    %3127 = vrot.lane.b32.xlu0 %v3122, 64
    %v3128 = vpop.permute.xlu0 %3127
    %v3131 = vadd.f32 %v3107, %v3126
    %v3132 = vadd.f32 %v3108, %v3128
    %v3133 = vtanh.pop %v3131
    %v3134 = vtanh.pop %v3132
    %3137 = vrot.lane.b32.xlu0 %v3133, 64
    %v3138 = vpop.permute.xlu0 %3137
    %3139 = vrot.lane.b32.xlu0 %v3134, 64
    %v3140 = vpop.permute.xlu0 %3139
    %v3143 = vmul.f32 %v3076, %v3138
    %v3144 = vmul.f32 %v3106, %v3140
    %v3145 = vld [vmem:[#allocation2 + $0x80] sm:$0xff]
    %v3146 = vld [vmem:[#allocation2 + $0x88] sm:$0xff]
    %v3147 = vld [vmem:[#allocation2 + $0x70] sm:$0xff]
    %v3148 = vld [vmem:[#allocation2 + $0x78] sm:$0xff]
    %v3150 = vsel %vm534, %v3143, 0
    %v3153 = vsel %vm534, %v3144, 0
    %3155 = vmatpush.msra.mxu0 0.0
    %3156 = vmatpush.msra.mxu0 0.0
    %3157 = vmatpush.msra.mxu0 0.0
    %3158 = vmatpush.msra.mxu0 0.0
    %3159 = vmatpush.msra.mxu0 0.0
    %3160 = vmatpush.msra.mxu0 0.0
    %3161 = vmatpush.msra.mxu0 0.0
    %3162 = vmatpush.msra.mxu0 0.0
    %3163 = vmatpush.msra.mxu0 %v2497
    %3164 = vmatpush.msra.mxu0 %v2493
    %3165 = vmatpush.msra.mxu0 %v2489
    %3166 = vmatpush.msra.mxu0 %v2485
    %3167 = vmatpush.msra.mxu0 %v2481
    %3168 = vmatpush.msra.mxu0 %v2477
    %3169 = vmatpush.msra.mxu0 %v2473
    %3170 = vmatpush.msra.mxu0 %v2469
    %3171 = vmatmul.f32.gmra.mxu0 %v3150
    %v3172 = vpop.f32.mrf.mxu0
    %v3173 = vadd.f32 0.0, %v3172
    %3174 = vmatmul.f32.gmra.mxu0 %v3153
    %v3175 = vpop.f32.mrf.mxu0
    %3176 = vdwg.mxu0
    %3177 = vmatpush.msra.mxu0 0.0
    %3178 = vmatpush.msra.mxu0 0.0
    %3179 = vmatpush.msra.mxu0 0.0
    %3180 = vmatpush.msra.mxu0 0.0
    %3181 = vmatpush.msra.mxu0 0.0
    %3182 = vmatpush.msra.mxu0 0.0
    %3183 = vmatpush.msra.mxu0 0.0
    %3184 = vmatpush.msra.mxu0 0.0
    %3185 = vmatpush.msra.mxu0 %v2498
    %3186 = vmatpush.msra.mxu0 %v2494
    %3187 = vmatpush.msra.mxu0 %v2490
    %3188 = vmatpush.msra.mxu0 %v2486
    %3189 = vmatpush.msra.mxu0 %v2482
    %3190 = vmatpush.msra.mxu0 %v2478
    %3191 = vmatpush.msra.mxu0 %v2474
    %3192 = vmatpush.msra.mxu0 %v2470
    %3193 = vmatmul.f32.gmra.mxu0 %v3150
    %v3194 = vpop.f32.mrf.mxu0
    %v3195 = vadd.f32 0.0, %v3194
    %3196 = vmatmul.f32.gmra.mxu0 %v3153
    %v3197 = vpop.f32.mrf.mxu0
    %3198 = vdwg.mxu0
    %3199 = vmatpush.msra.mxu0 0.0
    %3200 = vmatpush.msra.mxu0 0.0
    %3201 = vmatpush.msra.mxu0 0.0
    %3202 = vmatpush.msra.mxu0 0.0
    %3203 = vmatpush.msra.mxu0 0.0
    %3204 = vmatpush.msra.mxu0 0.0
    %3205 = vmatpush.msra.mxu0 0.0
    %3206 = vmatpush.msra.mxu0 0.0
    %3207 = vmatpush.msra.mxu0 %v2499
    %3208 = vmatpush.msra.mxu0 %v2495
    %3209 = vmatpush.msra.mxu0 %v2491
    %3210 = vmatpush.msra.mxu0 %v2487
    %3211 = vmatpush.msra.mxu0 %v2483
    %3212 = vmatpush.msra.mxu0 %v2479
    %3213 = vmatpush.msra.mxu0 %v2475
    %3214 = vmatpush.msra.mxu0 %v2471
    %3215 = vmatmul.f32.gmra.mxu0 %v3150
    %v3216 = vpop.f32.mrf.mxu0
    %3217 = vmatmul.f32.gmra.mxu0 %v3153
    %v3218 = vpop.f32.mrf.mxu0
    %v3219 = vadd.f32 0.0, %v3218
    %3220 = vdwg.mxu0
    %3221 = vmatpush.msra.mxu0 0.0
    %3222 = vmatpush.msra.mxu0 0.0
    %3223 = vmatpush.msra.mxu0 0.0
    %3224 = vmatpush.msra.mxu0 0.0
    %3225 = vmatpush.msra.mxu0 0.0
    %3226 = vmatpush.msra.mxu0 0.0
    %3227 = vmatpush.msra.mxu0 0.0
    %3228 = vmatpush.msra.mxu0 0.0
    %3229 = vmatpush.msra.mxu0 %v2500
    %3230 = vmatpush.msra.mxu0 %v2496
    %3231 = vmatpush.msra.mxu0 %v2492
    %3232 = vmatpush.msra.mxu0 %v2488
    %3233 = vmatpush.msra.mxu0 %v2484
    %3234 = vmatpush.msra.mxu0 %v2480
    %3235 = vmatpush.msra.mxu0 %v2476
    %3236 = vmatpush.msra.mxu0 %v2472
    %3237 = vmatmul.f32.gmra.mxu0 %v3150
    %v3238 = vpop.f32.mrf.mxu0
    %3239 = vmatmul.f32.gmra.mxu0 %v3153
    %v3240 = vpop.f32.mrf.mxu0
    %v3241 = vadd.f32 0.0, %v3240
    %3242 = vdwg.mxu0
    %v3243 = vadd.f32 %v3145, %v3173
    %v3244 = vadd.f32 %v3146, %v3195
    %v3245 = vadd.f32 %v3147, %v3219
    %v3246 = vadd.f32 %v3148, %v3241
    %v3247 = vxor.u32 %v3243, 2147483648
    %v3248 = vxor.u32 %v3244, 2147483648
    %v3249 = vxor.u32 %v3245, 2147483648
    %v3250 = vxor.u32 %v3246, 2147483648
    %v3251 = vmul.f32 %v3247, 1.442695
    %v3252 = vpow.pop %v3251
    %v3253 = vmul.f32 %v3248, 1.442695
    %v3254 = vpow.pop %v3253
    %v3255 = vmul.f32 %v3249, 1.442695
    %v3256 = vpow.pop %v3255
    %v3257 = vmul.f32 %v3250, 1.442695
    %v3258 = vpow.pop %v3257
    %v3259 = vadd.f32 %v3252, 1.0
    %v3260 = vadd.f32 %v3254, 1.0
    %v3261 = vadd.f32 %v3256, 1.0
    %v3262 = vadd.f32 %v3258, 1.0
    %v3263 = vrcp.pop %v3259
    %v3264 = vmul.f32 %v3259, %v3263
    %v3265 = vsub.f32 1.0, %v3264
    %v3266 = vmul.f32 %v3263, %v3265
    %v3267 = vadd.f32 %v3263, %v3266
    %vm3268 = vweird.f32 %v3259
    %vm3269 = vweird.f32 %v3263
    %vm3270 = vmor %vm3268, %vm3269
    %v3271 = vsel %vm3270, %v3263, %v3267
    %v3272 = vand.u32 2147483647, %v3259
    %vm3273 = vcmp.eq.f32.partialorder %v3272, 8.507059e+37
    %v3274 = vand.u32 %v3259, 2147483648
    %v3275 = vor.u32 1.1754944e-38, %v3274
    %v3276 = vsel %vm3273, %v3275, %v3271
    %v3277 = vmul.f32 1.0, %v3276
    %v3278 = vrcp.pop %v3260
    %v3279 = vmul.f32 %v3260, %v3278
    %v3280 = vsub.f32 1.0, %v3279
    %v3281 = vmul.f32 %v3278, %v3280
    %v3282 = vadd.f32 %v3278, %v3281
    %vm3283 = vweird.f32 %v3260
    %vm3284 = vweird.f32 %v3278
    %vm3285 = vmor %vm3283, %vm3284
    %v3286 = vsel %vm3285, %v3278, %v3282
    %v3287 = vand.u32 2147483647, %v3260
    %vm3288 = vcmp.eq.f32.partialorder %v3287, 8.507059e+37
    %v3289 = vand.u32 %v3260, 2147483648
    %v3290 = vor.u32 1.1754944e-38, %v3289
    %v3291 = vsel %vm3288, %v3290, %v3286
    %v3292 = vmul.f32 1.0, %v3291
    %v3293 = vrcp.pop %v3261
    %v3294 = vmul.f32 %v3261, %v3293
    %v3295 = vsub.f32 1.0, %v3294
    %v3296 = vmul.f32 %v3293, %v3295
    %v3297 = vadd.f32 %v3293, %v3296
    %vm3298 = vweird.f32 %v3261
    %vm3299 = vweird.f32 %v3293
    %vm3300 = vmor %vm3298, %vm3299
    %v3301 = vsel %vm3300, %v3293, %v3297
    %v3302 = vand.u32 2147483647, %v3261
    %vm3303 = vcmp.eq.f32.partialorder %v3302, 8.507059e+37
    %v3304 = vand.u32 %v3261, 2147483648
    %v3305 = vor.u32 1.1754944e-38, %v3304
    %v3306 = vsel %vm3303, %v3305, %v3301
    %v3307 = vmul.f32 1.0, %v3306
    %v3308 = vrcp.pop %v3262
    %v3309 = vmul.f32 %v3262, %v3308
    %v3310 = vsub.f32 1.0, %v3309
    %v3311 = vmul.f32 %v3308, %v3310
    %v3312 = vadd.f32 %v3308, %v3311
    %vm3313 = vweird.f32 %v3262
    %vm3314 = vweird.f32 %v3308
    %vm3315 = vmor %vm3313, %vm3314
    %v3316 = vsel %vm3315, %v3308, %v3312
    %v3317 = vand.u32 2147483647, %v3262
    %vm3318 = vcmp.eq.f32.partialorder %v3317, 8.507059e+37
    %v3319 = vand.u32 %v3262, 2147483648
    %v3320 = vor.u32 1.1754944e-38, %v3319
    %v3321 = vsel %vm3318, %v3320, %v3316
    %v3322 = vmul.f32 1.0, %v3321
    %v3323 = vmul.f32 %v3277, %v3131
    %v3324 = vmul.f32 %v3307, %v3132
    %v3325 = vmul.f32 %v3292, 2.0
    %v3326 = vmul.f32 %v3322, 2.0
    %v3327 = vsub.f32 %v3325, 1.0
    %v3328 = vsub.f32 %v3326, 1.0
    %3331 = vrot.lane.b32.xlu0 %v3327, 64
    %v3332 = vpop.permute.xlu0 %3331
    %3333 = vrot.lane.b32.xlu0 %v3328, 64
    %v3334 = vpop.permute.xlu0 %3333
    %v3337 = vmul.f32 %v3277, %v3332
    %v3338 = vmul.f32 %v3307, %v3334
    %3341 = vrot.lane.b32.xlu0 %v3337, 64
    %v3342 = vpop.permute.xlu0 %3341
    %3343 = vrot.lane.b32.xlu0 %v3338, 64
    %v3344 = vpop.permute.xlu0 %3343
    %v3347 = vadd.f32 %v3323, %v3342
    %v3348 = vadd.f32 %v3324, %v3344
    %v3349 = vtanh.pop %v3347
    %v3350 = vtanh.pop %v3348
    %3353 = vrot.lane.b32.xlu0 %v3349, 64
    %v3354 = vpop.permute.xlu0 %3353
    %3355 = vrot.lane.b32.xlu0 %v3350, 64
    %v3356 = vpop.permute.xlu0 %3355
    %v3359 = vmul.f32 %v3292, %v3354
    %v3360 = vmul.f32 %v3322, %v3356
    %v3361 = vld [vmem:[#allocation2 + $0xa0] sm:$0xff]
    %v3362 = vld [vmem:[#allocation2 + $0xa8] sm:$0xff]
    %v3363 = vld [vmem:[#allocation2 + $0x50] sm:$0xff]
    %v3364 = vld [vmem:[#allocation2 + $0x58] sm:$0xff]
    %v3366 = vsel %vm534, %v3359, 0
    %v3369 = vsel %vm534, %v3360, 0
    %3371 = vmatpush.msra.mxu0 0.0
    %3372 = vmatpush.msra.mxu0 0.0
    %3373 = vmatpush.msra.mxu0 0.0
    %3374 = vmatpush.msra.mxu0 0.0
    %3375 = vmatpush.msra.mxu0 0.0
    %3376 = vmatpush.msra.mxu0 0.0
    %3377 = vmatpush.msra.mxu0 0.0
    %3378 = vmatpush.msra.mxu0 0.0
    %3379 = vmatpush.msra.mxu0 %v2497
    %3380 = vmatpush.msra.mxu0 %v2493
    %3381 = vmatpush.msra.mxu0 %v2489
    %3382 = vmatpush.msra.mxu0 %v2485
    %3383 = vmatpush.msra.mxu0 %v2481
    %3384 = vmatpush.msra.mxu0 %v2477
    %3385 = vmatpush.msra.mxu0 %v2473
    %3386 = vmatpush.msra.mxu0 %v2469
    %3387 = vmatmul.f32.gmra.mxu0 %v3366
    %v3388 = vpop.f32.mrf.mxu0
    %v3389 = vadd.f32 0.0, %v3388
    %3390 = vmatmul.f32.gmra.mxu0 %v3369
    %v3391 = vpop.f32.mrf.mxu0
    %3392 = vdwg.mxu0
    %3393 = vmatpush.msra.mxu0 0.0
    %3394 = vmatpush.msra.mxu0 0.0
    %3395 = vmatpush.msra.mxu0 0.0
    %3396 = vmatpush.msra.mxu0 0.0
    %3397 = vmatpush.msra.mxu0 0.0
    %3398 = vmatpush.msra.mxu0 0.0
    %3399 = vmatpush.msra.mxu0 0.0
    %3400 = vmatpush.msra.mxu0 0.0
    %3401 = vmatpush.msra.mxu0 %v2498
    %3402 = vmatpush.msra.mxu0 %v2494
    %3403 = vmatpush.msra.mxu0 %v2490
    %3404 = vmatpush.msra.mxu0 %v2486
    %3405 = vmatpush.msra.mxu0 %v2482
    %3406 = vmatpush.msra.mxu0 %v2478
    %3407 = vmatpush.msra.mxu0 %v2474
    %3408 = vmatpush.msra.mxu0 %v2470
    %3409 = vmatmul.f32.gmra.mxu0 %v3366
    %v3410 = vpop.f32.mrf.mxu0
    %v3411 = vadd.f32 0.0, %v3410
    %3412 = vmatmul.f32.gmra.mxu0 %v3369
    %v3413 = vpop.f32.mrf.mxu0
    %3414 = vdwg.mxu0
    %3415 = vmatpush.msra.mxu0 0.0
    %3416 = vmatpush.msra.mxu0 0.0
    %3417 = vmatpush.msra.mxu0 0.0
    %3418 = vmatpush.msra.mxu0 0.0
    %3419 = vmatpush.msra.mxu0 0.0
    %3420 = vmatpush.msra.mxu0 0.0
    %3421 = vmatpush.msra.mxu0 0.0
    %3422 = vmatpush.msra.mxu0 0.0
    %3423 = vmatpush.msra.mxu0 %v2499
    %3424 = vmatpush.msra.mxu0 %v2495
    %3425 = vmatpush.msra.mxu0 %v2491
    %3426 = vmatpush.msra.mxu0 %v2487
    %3427 = vmatpush.msra.mxu0 %v2483
    %3428 = vmatpush.msra.mxu0 %v2479
    %3429 = vmatpush.msra.mxu0 %v2475
    %3430 = vmatpush.msra.mxu0 %v2471
    %3431 = vmatmul.f32.gmra.mxu0 %v3366
    %v3432 = vpop.f32.mrf.mxu0
    %3433 = vmatmul.f32.gmra.mxu0 %v3369
    %v3434 = vpop.f32.mrf.mxu0
    %v3435 = vadd.f32 0.0, %v3434
    %3436 = vdwg.mxu0
    %3437 = vmatpush.msra.mxu0 0.0
    %3438 = vmatpush.msra.mxu0 0.0
    %3439 = vmatpush.msra.mxu0 0.0
    %3440 = vmatpush.msra.mxu0 0.0
    %3441 = vmatpush.msra.mxu0 0.0
    %3442 = vmatpush.msra.mxu0 0.0
    %3443 = vmatpush.msra.mxu0 0.0
    %3444 = vmatpush.msra.mxu0 0.0
    %3445 = vmatpush.msra.mxu0 %v2500
    %3446 = vmatpush.msra.mxu0 %v2496
    %3447 = vmatpush.msra.mxu0 %v2492
    %3448 = vmatpush.msra.mxu0 %v2488
    %3449 = vmatpush.msra.mxu0 %v2484
    %3450 = vmatpush.msra.mxu0 %v2480
    %3451 = vmatpush.msra.mxu0 %v2476
    %3452 = vmatpush.msra.mxu0 %v2472
    %3453 = vmatmul.f32.gmra.mxu0 %v3366
    %v3454 = vpop.f32.mrf.mxu0
    %3455 = vmatmul.f32.gmra.mxu0 %v3369
    %v3456 = vpop.f32.mrf.mxu0
    %v3457 = vadd.f32 0.0, %v3456
    %3458 = vdwg.mxu0
    %v3459 = vadd.f32 %v3361, %v3389
    %v3460 = vadd.f32 %v3362, %v3411
    %v3461 = vadd.f32 %v3363, %v3435
    %v3462 = vadd.f32 %v3364, %v3457
    %v3463 = vxor.u32 %v3459, 2147483648
    %v3464 = vxor.u32 %v3460, 2147483648
    %v3465 = vxor.u32 %v3461, 2147483648
    %v3466 = vxor.u32 %v3462, 2147483648
    %v3467 = vmul.f32 %v3463, 1.442695
    %v3468 = vpow.pop %v3467
    %v3469 = vmul.f32 %v3464, 1.442695
    %v3470 = vpow.pop %v3469
    %v3471 = vmul.f32 %v3465, 1.442695
    %v3472 = vpow.pop %v3471
    %v3473 = vmul.f32 %v3466, 1.442695
    %v3474 = vpow.pop %v3473
    %v3475 = vadd.f32 %v3468, 1.0
    %v3476 = vadd.f32 %v3470, 1.0
    %v3477 = vadd.f32 %v3472, 1.0
    %v3478 = vadd.f32 %v3474, 1.0
    %v3479 = vrcp.pop %v3475
    %v3480 = vmul.f32 %v3475, %v3479
    %v3481 = vsub.f32 1.0, %v3480
    %v3482 = vmul.f32 %v3479, %v3481
    %v3483 = vadd.f32 %v3479, %v3482
    %vm3484 = vweird.f32 %v3475
    %vm3485 = vweird.f32 %v3479
    %vm3486 = vmor %vm3484, %vm3485
    %v3487 = vsel %vm3486, %v3479, %v3483
    %v3488 = vand.u32 2147483647, %v3475
    %vm3489 = vcmp.eq.f32.partialorder %v3488, 8.507059e+37
    %v3490 = vand.u32 %v3475, 2147483648
    %v3491 = vor.u32 1.1754944e-38, %v3490
    %v3492 = vsel %vm3489, %v3491, %v3487
    %v3493 = vmul.f32 1.0, %v3492
    %v3494 = vrcp.pop %v3476
    %v3495 = vmul.f32 %v3476, %v3494
    %v3496 = vsub.f32 1.0, %v3495
    %v3497 = vmul.f32 %v3494, %v3496
    %v3498 = vadd.f32 %v3494, %v3497
    %vm3499 = vweird.f32 %v3476
    %vm3500 = vweird.f32 %v3494
    %vm3501 = vmor %vm3499, %vm3500
    %v3502 = vsel %vm3501, %v3494, %v3498
    %v3503 = vand.u32 2147483647, %v3476
    %vm3504 = vcmp.eq.f32.partialorder %v3503, 8.507059e+37
    %v3505 = vand.u32 %v3476, 2147483648
    %v3506 = vor.u32 1.1754944e-38, %v3505
    %v3507 = vsel %vm3504, %v3506, %v3502
    %v3508 = vmul.f32 1.0, %v3507
    %v3509 = vrcp.pop %v3477
    %v3510 = vmul.f32 %v3477, %v3509
    %v3511 = vsub.f32 1.0, %v3510
    %v3512 = vmul.f32 %v3509, %v3511
    %v3513 = vadd.f32 %v3509, %v3512
    %vm3514 = vweird.f32 %v3477
    %vm3515 = vweird.f32 %v3509
    %vm3516 = vmor %vm3514, %vm3515
    %v3517 = vsel %vm3516, %v3509, %v3513
    %v3518 = vand.u32 2147483647, %v3477
    %vm3519 = vcmp.eq.f32.partialorder %v3518, 8.507059e+37
    %v3520 = vand.u32 %v3477, 2147483648
    %v3521 = vor.u32 1.1754944e-38, %v3520
    %v3522 = vsel %vm3519, %v3521, %v3517
    %v3523 = vmul.f32 1.0, %v3522
    %v3524 = vrcp.pop %v3478
    %v3525 = vmul.f32 %v3478, %v3524
    %v3526 = vsub.f32 1.0, %v3525
    %v3527 = vmul.f32 %v3524, %v3526
    %v3528 = vadd.f32 %v3524, %v3527
    %vm3529 = vweird.f32 %v3478
    %vm3530 = vweird.f32 %v3524
    %vm3531 = vmor %vm3529, %vm3530
    %v3532 = vsel %vm3531, %v3524, %v3528
    %v3533 = vand.u32 2147483647, %v3478
    %vm3534 = vcmp.eq.f32.partialorder %v3533, 8.507059e+37
    %v3535 = vand.u32 %v3478, 2147483648
    %v3536 = vor.u32 1.1754944e-38, %v3535
    %v3537 = vsel %vm3534, %v3536, %v3532
    %v3538 = vmul.f32 1.0, %v3537
    %v3539 = vmul.f32 %v3493, %v3347
    %v3540 = vmul.f32 %v3523, %v3348
    %v3541 = vmul.f32 %v3508, 2.0
    %v3542 = vmul.f32 %v3538, 2.0
    %v3543 = vsub.f32 %v3541, 1.0
    %v3544 = vsub.f32 %v3542, 1.0
    %3547 = vrot.lane.b32.xlu0 %v3543, 64
    %v3548 = vpop.permute.xlu0 %3547
    %3549 = vrot.lane.b32.xlu0 %v3544, 64
    %v3550 = vpop.permute.xlu0 %3549
    %v3553 = vmul.f32 %v3493, %v3548
    %v3554 = vmul.f32 %v3523, %v3550
    %3557 = vrot.lane.b32.xlu0 %v3553, 64
    %v3558 = vpop.permute.xlu0 %3557
    %3559 = vrot.lane.b32.xlu0 %v3554, 64
    %v3560 = vpop.permute.xlu0 %3559
    %v3563 = vadd.f32 %v3539, %v3558
    %v3564 = vadd.f32 %v3540, %v3560
    %v3565 = vtanh.pop %v3563
    %v3566 = vtanh.pop %v3564
    %3569 = vrot.lane.b32.xlu0 %v3565, 64
    %v3570 = vpop.permute.xlu0 %3569
    %3571 = vrot.lane.b32.xlu0 %v3566, 64
    %v3572 = vpop.permute.xlu0 %3571
    %v3575 = vmul.f32 %v3508, %v3570
    %v3576 = vmul.f32 %v3538, %v3572
    %v3577 = vld [vmem:[#allocation2 + $0xc0] sm:$0xff]
    %v3578 = vld [vmem:[#allocation2 + $0xc8] sm:$0xff]
    %v3579 = vld [vmem:[#allocation2 + $0x30] sm:$0xff]
    %v3580 = vld [vmem:[#allocation2 + $0x38] sm:$0xff]
    %v3582 = vsel %vm534, %v3575, 0
    %v3585 = vsel %vm534, %v3576, 0
    %3587 = vmatpush.msra.mxu0 0.0
    %3588 = vmatpush.msra.mxu0 0.0
    %3589 = vmatpush.msra.mxu0 0.0
    %3590 = vmatpush.msra.mxu0 0.0
    %3591 = vmatpush.msra.mxu0 0.0
    %3592 = vmatpush.msra.mxu0 0.0
    %3593 = vmatpush.msra.mxu0 0.0
    %3594 = vmatpush.msra.mxu0 0.0
    %3595 = vmatpush.msra.mxu0 %v2497
    %3596 = vmatpush.msra.mxu0 %v2493
    %3597 = vmatpush.msra.mxu0 %v2489
    %3598 = vmatpush.msra.mxu0 %v2485
    %3599 = vmatpush.msra.mxu0 %v2481
    %3600 = vmatpush.msra.mxu0 %v2477
    %3601 = vmatpush.msra.mxu0 %v2473
    %3602 = vmatpush.msra.mxu0 %v2469
    %3603 = vmatmul.f32.gmra.mxu0 %v3582
    %v3604 = vpop.f32.mrf.mxu0
    %v3605 = vadd.f32 0.0, %v3604
    %3606 = vmatmul.f32.gmra.mxu0 %v3585
    %v3607 = vpop.f32.mrf.mxu0
    %3608 = vdwg.mxu0
    %3609 = vmatpush.msra.mxu0 0.0
    %3610 = vmatpush.msra.mxu0 0.0
    %3611 = vmatpush.msra.mxu0 0.0
    %3612 = vmatpush.msra.mxu0 0.0
    %3613 = vmatpush.msra.mxu0 0.0
    %3614 = vmatpush.msra.mxu0 0.0
    %3615 = vmatpush.msra.mxu0 0.0
    %3616 = vmatpush.msra.mxu0 0.0
    %3617 = vmatpush.msra.mxu0 %v2498
    %3618 = vmatpush.msra.mxu0 %v2494
    %3619 = vmatpush.msra.mxu0 %v2490
    %3620 = vmatpush.msra.mxu0 %v2486
    %3621 = vmatpush.msra.mxu0 %v2482
    %3622 = vmatpush.msra.mxu0 %v2478
    %3623 = vmatpush.msra.mxu0 %v2474
    %3624 = vmatpush.msra.mxu0 %v2470
    %3625 = vmatmul.f32.gmra.mxu0 %v3582
    %v3626 = vpop.f32.mrf.mxu0
    %v3627 = vadd.f32 0.0, %v3626
    %3628 = vmatmul.f32.gmra.mxu0 %v3585
    %v3629 = vpop.f32.mrf.mxu0
    %3630 = vdwg.mxu0
    %3631 = vmatpush.msra.mxu0 0.0
    %3632 = vmatpush.msra.mxu0 0.0
    %3633 = vmatpush.msra.mxu0 0.0
    %3634 = vmatpush.msra.mxu0 0.0
    %3635 = vmatpush.msra.mxu0 0.0
    %3636 = vmatpush.msra.mxu0 0.0
    %3637 = vmatpush.msra.mxu0 0.0
    %3638 = vmatpush.msra.mxu0 0.0
    %3639 = vmatpush.msra.mxu0 %v2499
    %3640 = vmatpush.msra.mxu0 %v2495
    %3641 = vmatpush.msra.mxu0 %v2491
    %3642 = vmatpush.msra.mxu0 %v2487
    %3643 = vmatpush.msra.mxu0 %v2483
    %3644 = vmatpush.msra.mxu0 %v2479
    %3645 = vmatpush.msra.mxu0 %v2475
    %3646 = vmatpush.msra.mxu0 %v2471
    %3647 = vmatmul.f32.gmra.mxu0 %v3582
    %v3648 = vpop.f32.mrf.mxu0
    %3649 = vmatmul.f32.gmra.mxu0 %v3585
    %v3650 = vpop.f32.mrf.mxu0
    %v3651 = vadd.f32 0.0, %v3650
    %3652 = vdwg.mxu0
    %3653 = vmatpush.msra.mxu0 0.0
    %3654 = vmatpush.msra.mxu0 0.0
    %3655 = vmatpush.msra.mxu0 0.0
    %3656 = vmatpush.msra.mxu0 0.0
    %3657 = vmatpush.msra.mxu0 0.0
    %3658 = vmatpush.msra.mxu0 0.0
    %3659 = vmatpush.msra.mxu0 0.0
    %3660 = vmatpush.msra.mxu0 0.0
    %3661 = vmatpush.msra.mxu0 %v2500
    %3662 = vmatpush.msra.mxu0 %v2496
    %3663 = vmatpush.msra.mxu0 %v2492
    %3664 = vmatpush.msra.mxu0 %v2488
    %3665 = vmatpush.msra.mxu0 %v2484
    %3666 = vmatpush.msra.mxu0 %v2480
    %3667 = vmatpush.msra.mxu0 %v2476
    %3668 = vmatpush.msra.mxu0 %v2472
    %3669 = vmatmul.f32.gmra.mxu0 %v3582
    %v3670 = vpop.f32.mrf.mxu0
    %3671 = vmatmul.f32.gmra.mxu0 %v3585
    %v3672 = vpop.f32.mrf.mxu0
    %v3673 = vadd.f32 0.0, %v3672
    %3674 = vdwg.mxu0
    %v3675 = vadd.f32 %v3577, %v3605
    %v3676 = vadd.f32 %v3578, %v3627
    %v3677 = vadd.f32 %v3579, %v3651
    %v3678 = vadd.f32 %v3580, %v3673
    %v3679 = vxor.u32 %v3675, 2147483648
    %v3680 = vxor.u32 %v3676, 2147483648
    %v3681 = vxor.u32 %v3677, 2147483648
    %v3682 = vxor.u32 %v3678, 2147483648
    %v3683 = vmul.f32 %v3679, 1.442695
    %v3684 = vpow.pop %v3683
    %v3685 = vmul.f32 %v3680, 1.442695
    %v3686 = vpow.pop %v3685
    %v3687 = vmul.f32 %v3681, 1.442695
    %v3688 = vpow.pop %v3687
    %v3689 = vmul.f32 %v3682, 1.442695
    %v3690 = vpow.pop %v3689
    %v3691 = vadd.f32 %v3684, 1.0
    %v3692 = vadd.f32 %v3686, 1.0
    %v3693 = vadd.f32 %v3688, 1.0
    %v3694 = vadd.f32 %v3690, 1.0
    %v3695 = vrcp.pop %v3691
    %v3696 = vmul.f32 %v3691, %v3695
    %v3697 = vsub.f32 1.0, %v3696
    %v3698 = vmul.f32 %v3695, %v3697
    %v3699 = vadd.f32 %v3695, %v3698
    %vm3700 = vweird.f32 %v3691
    %vm3701 = vweird.f32 %v3695
    %vm3702 = vmor %vm3700, %vm3701
    %v3703 = vsel %vm3702, %v3695, %v3699
    %v3704 = vand.u32 2147483647, %v3691
    %vm3705 = vcmp.eq.f32.partialorder %v3704, 8.507059e+37
    %v3706 = vand.u32 %v3691, 2147483648
    %v3707 = vor.u32 1.1754944e-38, %v3706
    %v3708 = vsel %vm3705, %v3707, %v3703
    %v3709 = vmul.f32 1.0, %v3708
    %v3710 = vrcp.pop %v3692
    %v3711 = vmul.f32 %v3692, %v3710
    %v3712 = vsub.f32 1.0, %v3711
    %v3713 = vmul.f32 %v3710, %v3712
    %v3714 = vadd.f32 %v3710, %v3713
    %vm3715 = vweird.f32 %v3692
    %vm3716 = vweird.f32 %v3710
    %vm3717 = vmor %vm3715, %vm3716
    %v3718 = vsel %vm3717, %v3710, %v3714
    %v3719 = vand.u32 2147483647, %v3692
    %vm3720 = vcmp.eq.f32.partialorder %v3719, 8.507059e+37
    %v3721 = vand.u32 %v3692, 2147483648
    %v3722 = vor.u32 1.1754944e-38, %v3721
    %v3723 = vsel %vm3720, %v3722, %v3718
    %v3724 = vmul.f32 1.0, %v3723
    %v3725 = vrcp.pop %v3693
    %v3726 = vmul.f32 %v3693, %v3725
    %v3727 = vsub.f32 1.0, %v3726
    %v3728 = vmul.f32 %v3725, %v3727
    %v3729 = vadd.f32 %v3725, %v3728
    %vm3730 = vweird.f32 %v3693
    %vm3731 = vweird.f32 %v3725
    %vm3732 = vmor %vm3730, %vm3731
    %v3733 = vsel %vm3732, %v3725, %v3729
    %v3734 = vand.u32 2147483647, %v3693
    %vm3735 = vcmp.eq.f32.partialorder %v3734, 8.507059e+37
    %v3736 = vand.u32 %v3693, 2147483648
    %v3737 = vor.u32 1.1754944e-38, %v3736
    %v3738 = vsel %vm3735, %v3737, %v3733
    %v3739 = vmul.f32 1.0, %v3738
    %v3740 = vrcp.pop %v3694
    %v3741 = vmul.f32 %v3694, %v3740
    %v3742 = vsub.f32 1.0, %v3741
    %v3743 = vmul.f32 %v3740, %v3742
    %v3744 = vadd.f32 %v3740, %v3743
    %vm3745 = vweird.f32 %v3694
    %vm3746 = vweird.f32 %v3740
    %vm3747 = vmor %vm3745, %vm3746
    %v3748 = vsel %vm3747, %v3740, %v3744
    %v3749 = vand.u32 2147483647, %v3694
    %vm3750 = vcmp.eq.f32.partialorder %v3749, 8.507059e+37
    %v3751 = vand.u32 %v3694, 2147483648
    %v3752 = vor.u32 1.1754944e-38, %v3751
    %v3753 = vsel %vm3750, %v3752, %v3748
    %v3754 = vmul.f32 1.0, %v3753
    %v3755 = vmul.f32 %v3709, %v3563
    %v3756 = vmul.f32 %v3739, %v3564
    %v3757 = vmul.f32 %v3724, 2.0
    %v3758 = vmul.f32 %v3754, 2.0
    %v3759 = vsub.f32 %v3757, 1.0
    %v3760 = vsub.f32 %v3758, 1.0
    %3763 = vrot.lane.b32.xlu0 %v3759, 64
    %v3764 = vpop.permute.xlu0 %3763
    %3765 = vrot.lane.b32.xlu0 %v3760, 64
    %v3766 = vpop.permute.xlu0 %3765
    %v3769 = vmul.f32 %v3709, %v3764
    %v3770 = vmul.f32 %v3739, %v3766
    %3773 = vrot.lane.b32.xlu0 %v3769, 64
    %v3774 = vpop.permute.xlu0 %3773
    %3775 = vrot.lane.b32.xlu0 %v3770, 64
    %v3776 = vpop.permute.xlu0 %3775
    %v3779 = vadd.f32 %v3755, %v3774
    %v3780 = vadd.f32 %v3756, %v3776
    %v3781 = vtanh.pop %v3779
    %v3782 = vtanh.pop %v3780
    %3785 = vrot.lane.b32.xlu0 %v3781, 64
    %v3786 = vpop.permute.xlu0 %3785
    %3787 = vrot.lane.b32.xlu0 %v3782, 64
    %v3788 = vpop.permute.xlu0 %3787
    %v3791 = vmul.f32 %v3724, %v3786
    %v3792 = vmul.f32 %v3754, %v3788
    %v3793 = vld [vmem:[#allocation2 + $0xe0] sm:$0xff]
    %v3794 = vld [vmem:[#allocation2 + $0xe8] sm:$0xff]
    %v3795 = vld [vmem:[#allocation2 + $0x10] sm:$0xff]
    %v3796 = vld [vmem:[#allocation2 + $0x18] sm:$0xff]
    %v3798 = vsel %vm534, %v3791, 0
    %v3801 = vsel %vm534, %v3792, 0
    %3803 = vmatpush.msra.mxu0 0.0
    %3804 = vmatpush.msra.mxu0 0.0
    %3805 = vmatpush.msra.mxu0 0.0
    %3806 = vmatpush.msra.mxu0 0.0
    %3807 = vmatpush.msra.mxu0 0.0
    %3808 = vmatpush.msra.mxu0 0.0
    %3809 = vmatpush.msra.mxu0 0.0
    %3810 = vmatpush.msra.mxu0 0.0
    %3811 = vmatpush.msra.mxu0 %v2497
    %3812 = vmatpush.msra.mxu0 %v2493
    %3813 = vmatpush.msra.mxu0 %v2489
    %3814 = vmatpush.msra.mxu0 %v2485
    %3815 = vmatpush.msra.mxu0 %v2481
    %3816 = vmatpush.msra.mxu0 %v2477
    %3817 = vmatpush.msra.mxu0 %v2473
    %3818 = vmatpush.msra.mxu0 %v2469
    %3819 = vmatmul.f32.gmra.mxu0 %v3798
    %v3820 = vpop.f32.mrf.mxu0
    %v3821 = vadd.f32 0.0, %v3820
    %3822 = vmatmul.f32.gmra.mxu0 %v3801
    %v3823 = vpop.f32.mrf.mxu0
    %3824 = vdwg.mxu0
    %3825 = vmatpush.msra.mxu0 0.0
    %3826 = vmatpush.msra.mxu0 0.0
    %3827 = vmatpush.msra.mxu0 0.0
    %3828 = vmatpush.msra.mxu0 0.0
    %3829 = vmatpush.msra.mxu0 0.0
    %3830 = vmatpush.msra.mxu0 0.0
    %3831 = vmatpush.msra.mxu0 0.0
    %3832 = vmatpush.msra.mxu0 0.0
    %3833 = vmatpush.msra.mxu0 %v2498
    %3834 = vmatpush.msra.mxu0 %v2494
    %3835 = vmatpush.msra.mxu0 %v2490
    %3836 = vmatpush.msra.mxu0 %v2486
    %3837 = vmatpush.msra.mxu0 %v2482
    %3838 = vmatpush.msra.mxu0 %v2478
    %3839 = vmatpush.msra.mxu0 %v2474
    %3840 = vmatpush.msra.mxu0 %v2470
    %3841 = vmatmul.f32.gmra.mxu0 %v3798
    %v3842 = vpop.f32.mrf.mxu0
    %v3843 = vadd.f32 0.0, %v3842
    %3844 = vmatmul.f32.gmra.mxu0 %v3801
    %v3845 = vpop.f32.mrf.mxu0
    %3846 = vdwg.mxu0
    %3847 = vmatpush.msra.mxu0 0.0
    %3848 = vmatpush.msra.mxu0 0.0
    %3849 = vmatpush.msra.mxu0 0.0
    %3850 = vmatpush.msra.mxu0 0.0
    %3851 = vmatpush.msra.mxu0 0.0
    %3852 = vmatpush.msra.mxu0 0.0
    %3853 = vmatpush.msra.mxu0 0.0
    %3854 = vmatpush.msra.mxu0 0.0
    %3855 = vmatpush.msra.mxu0 %v2499
    %3856 = vmatpush.msra.mxu0 %v2495
    %3857 = vmatpush.msra.mxu0 %v2491
    %3858 = vmatpush.msra.mxu0 %v2487
    %3859 = vmatpush.msra.mxu0 %v2483
    %3860 = vmatpush.msra.mxu0 %v2479
    %3861 = vmatpush.msra.mxu0 %v2475
    %3862 = vmatpush.msra.mxu0 %v2471
    %3863 = vmatmul.f32.gmra.mxu0 %v3798
    %v3864 = vpop.f32.mrf.mxu0
    %3865 = vmatmul.f32.gmra.mxu0 %v3801
    %v3866 = vpop.f32.mrf.mxu0
    %v3867 = vadd.f32 0.0, %v3866
    %3868 = vdwg.mxu0
    %3869 = vmatpush.msra.mxu0 0.0
    %3870 = vmatpush.msra.mxu0 0.0
    %3871 = vmatpush.msra.mxu0 0.0
    %3872 = vmatpush.msra.mxu0 0.0
    %3873 = vmatpush.msra.mxu0 0.0
    %3874 = vmatpush.msra.mxu0 0.0
    %3875 = vmatpush.msra.mxu0 0.0
    %3876 = vmatpush.msra.mxu0 0.0
    %3877 = vmatpush.msra.mxu0 %v2500
    %3878 = vmatpush.msra.mxu0 %v2496
    %3879 = vmatpush.msra.mxu0 %v2492
    %3880 = vmatpush.msra.mxu0 %v2488
    %3881 = vmatpush.msra.mxu0 %v2484
    %3882 = vmatpush.msra.mxu0 %v2480
    %3883 = vmatpush.msra.mxu0 %v2476
    %3884 = vmatpush.msra.mxu0 %v2472
    %3885 = vmatmul.f32.gmra.mxu0 %v3798
    %v3886 = vpop.f32.mrf.mxu0
    %3887 = vmatmul.f32.gmra.mxu0 %v3801
    %v3888 = vpop.f32.mrf.mxu0
    %v3889 = vadd.f32 0.0, %v3888
    %3890 = vdwg.mxu0
    %v3891 = vadd.f32 %v3793, %v3821
    %v3892 = vadd.f32 %v3794, %v3843
    %v3893 = vadd.f32 %v3795, %v3867
    %v3894 = vadd.f32 %v3796, %v3889
    %v3895 = vxor.u32 %v3891, 2147483648
    %v3896 = vxor.u32 %v3892, 2147483648
    %v3897 = vxor.u32 %v3893, 2147483648
    %v3898 = vxor.u32 %v3894, 2147483648
    %v3899 = vmul.f32 %v3895, 1.442695
    %v3900 = vpow.pop %v3899
    %v3901 = vmul.f32 %v3896, 1.442695
    %v3902 = vpow.pop %v3901
    %v3903 = vmul.f32 %v3897, 1.442695
    %v3904 = vpow.pop %v3903
    %v3905 = vmul.f32 %v3898, 1.442695
    %v3906 = vpow.pop %v3905
    %v3907 = vadd.f32 %v3900, 1.0
    %v3908 = vadd.f32 %v3902, 1.0
    %v3909 = vadd.f32 %v3904, 1.0
    %v3910 = vadd.f32 %v3906, 1.0
    %v3911 = vrcp.pop %v3907
    %v3912 = vmul.f32 %v3907, %v3911
    %v3913 = vsub.f32 1.0, %v3912
    %v3914 = vmul.f32 %v3911, %v3913
    %v3915 = vadd.f32 %v3911, %v3914
    %vm3916 = vweird.f32 %v3907
    %vm3917 = vweird.f32 %v3911
    %vm3918 = vmor %vm3916, %vm3917
    %v3919 = vsel %vm3918, %v3911, %v3915
    %v3920 = vand.u32 2147483647, %v3907
    %vm3921 = vcmp.eq.f32.partialorder %v3920, 8.507059e+37
    %v3922 = vand.u32 %v3907, 2147483648
    %v3923 = vor.u32 1.1754944e-38, %v3922
    %v3924 = vsel %vm3921, %v3923, %v3919
    %v3925 = vmul.f32 1.0, %v3924
    %v3926 = vrcp.pop %v3908
    %v3927 = vmul.f32 %v3908, %v3926
    %v3928 = vsub.f32 1.0, %v3927
    %v3929 = vmul.f32 %v3926, %v3928
    %v3930 = vadd.f32 %v3926, %v3929
    %vm3931 = vweird.f32 %v3908
    %vm3932 = vweird.f32 %v3926
    %vm3933 = vmor %vm3931, %vm3932
    %v3934 = vsel %vm3933, %v3926, %v3930
    %v3935 = vand.u32 2147483647, %v3908
    %vm3936 = vcmp.eq.f32.partialorder %v3935, 8.507059e+37
    %v3937 = vand.u32 %v3908, 2147483648
    %v3938 = vor.u32 1.1754944e-38, %v3937
    %v3939 = vsel %vm3936, %v3938, %v3934
    %v3940 = vmul.f32 1.0, %v3939
    %v3941 = vrcp.pop %v3909
    %v3942 = vmul.f32 %v3909, %v3941
    %v3943 = vsub.f32 1.0, %v3942
    %v3944 = vmul.f32 %v3941, %v3943
    %v3945 = vadd.f32 %v3941, %v3944
    %vm3946 = vweird.f32 %v3909
    %vm3947 = vweird.f32 %v3941
    %vm3948 = vmor %vm3946, %vm3947
    %v3949 = vsel %vm3948, %v3941, %v3945
    %v3950 = vand.u32 2147483647, %v3909
    %vm3951 = vcmp.eq.f32.partialorder %v3950, 8.507059e+37
    %v3952 = vand.u32 %v3909, 2147483648
    %v3953 = vor.u32 1.1754944e-38, %v3952
    %v3954 = vsel %vm3951, %v3953, %v3949
    %v3955 = vmul.f32 1.0, %v3954
    %v3956 = vrcp.pop %v3910
    %v3957 = vmul.f32 %v3910, %v3956
    %v3958 = vsub.f32 1.0, %v3957
    %v3959 = vmul.f32 %v3956, %v3958
    %v3960 = vadd.f32 %v3956, %v3959
    %vm3961 = vweird.f32 %v3910
    %vm3962 = vweird.f32 %v3956
    %vm3963 = vmor %vm3961, %vm3962
    %v3964 = vsel %vm3963, %v3956, %v3960
    %v3965 = vand.u32 2147483647, %v3910
    %vm3966 = vcmp.eq.f32.partialorder %v3965, 8.507059e+37
    %v3967 = vand.u32 %v3910, 2147483648
    %v3968 = vor.u32 1.1754944e-38, %v3967
    %v3969 = vsel %vm3966, %v3968, %v3964
    %v3970 = vmul.f32 1.0, %v3969
    %v3971 = vmul.f32 %v3925, %v3779
    %v3972 = vmul.f32 %v3955, %v3780
    %v3973 = vmul.f32 %v3940, 2.0
    %v3974 = vmul.f32 %v3970, 2.0
    %v3975 = vsub.f32 %v3973, 1.0
    %v3976 = vsub.f32 %v3974, 1.0
    %3979 = vrot.lane.b32.xlu0 %v3975, 64
    %v3980 = vpop.permute.xlu0 %3979
    %3981 = vrot.lane.b32.xlu0 %v3976, 64
    %v3982 = vpop.permute.xlu0 %3981
    %v3985 = vmul.f32 %v3925, %v3980
    %v3986 = vmul.f32 %v3955, %v3982
    %3989 = vrot.lane.b32.xlu0 %v3985, 64
    %v3990 = vpop.permute.xlu0 %3989
    %3991 = vrot.lane.b32.xlu0 %v3986, 64
    %v3992 = vpop.permute.xlu0 %3991
    %v3995 = vadd.f32 %v3971, %v3990
    %v3996 = vadd.f32 %v3972, %v3992
    %v3997 = vtanh.pop %v3995
    %v3998 = vtanh.pop %v3996
    %4001 = vrot.lane.b32.xlu0 %v3997, 64
    %v4002 = vpop.permute.xlu0 %4001
    %4003 = vrot.lane.b32.xlu0 %v3998, 64
    %v4004 = vpop.permute.xlu0 %4003
    %v4007 = vmul.f32 %v3940, %v4002
    %v4008 = vmul.f32 %v3970, %v4004
    %4010 = vrot.lane.b32.xlu0 %v4008, 64
    %v4011 = vpop.permute.xlu0 %4010
    %4012 = vrot.lane.b32.xlu0 %v3792, 64
    %v4013 = vpop.permute.xlu0 %4012
    %4014 = vrot.lane.b32.xlu0 %v3576, 64
    %v4015 = vpop.permute.xlu0 %4014
    %4016 = vrot.lane.b32.xlu0 %v3360, 64
    %v4017 = vpop.permute.xlu0 %4016
    %4018 = vrot.lane.b32.xlu0 %v3144, 64
    %v4019 = vpop.permute.xlu0 %4018
    %4020 = vrot.lane.b32.xlu0 %v2928, 64
    %v4021 = vpop.permute.xlu0 %4020
    %4022 = vrot.lane.b32.xlu0 %v2712, 64
    %v4023 = vpop.permute.xlu0 %4022
    %4024 = vrot.lane.b32.xlu0 %v2464, 64
    %v4025 = vpop.permute.xlu0 %4024
    %v4034 = vsel %vm534, %v2463, %v4011
    %v4035 = vsel %vm534, %v2711, %v4013
    %v4036 = vsel %vm534, %v2927, %v4015
    %v4037 = vsel %vm534, %v3143, %v4017
    %v4038 = vsel %vm534, %v3359, %v4019
    %v4039 = vsel %vm534, %v3575, %v4021
    %v4040 = vsel %vm534, %v3791, %v4023
    %v4041 = vsel %vm534, %v4007, %v4025
    %v4042 = vld [vmem:[#allocation5 + $0x18] sm:$0xff]
    %v4043 = vld [vmem:[#allocation5 + $0x20] sm:$0xff]
    %v4044 = vld [vmem:[#allocation5 + $0x28] sm:$0xff]
    %v4045 = vld [vmem:[#allocation5 + $0x30] sm:$0xff]
    %v4046 = vld [vmem:[#allocation5 + $0x38] sm:$0xff]
    %v4047 = vld [vmem:[#allocation5 + $0x40] sm:$0xff]
    %v4048 = vld [vmem:[#allocation5 + $0x48] sm:$0xff]
    %v4049 = vld [vmem:[#allocation5 + $0x50] sm:$0xff]
    %v4050 = vld [vmem:[#allocation5 + $0x58] sm:$0xff]
    %v4051 = vld [vmem:[#allocation5 + $0x60] sm:$0xff]
    %v4052 = vld [vmem:[#allocation5 + $0x68] sm:$0xff]
    %v4053 = vld [vmem:[#allocation5 + $0x70] sm:$0xff]
    %v4054 = vld [vmem:[#allocation5 + $0x78] sm:$0xff]
    %v4055 = vld [vmem:[#allocation5 + $0x80] sm:$0xff]
    %v4056 = vld [vmem:[#allocation5 + $0x88] sm:$0xff]
    %v4057 = vld [vmem:[#allocation5 + $0x90] sm:$0xff]
    %v4058 = vld [vmem:[#allocation5 + $0x98] sm:$0x1]
    %v4059 = vperm.slane %v4058, 0
    %4060 = vmatpush.msra.mxu0 %v4057
    %4061 = vmatpush.msra.mxu0 %v4056
    %4062 = vmatpush.msra.mxu0 %v4055
    %4063 = vmatpush.msra.mxu0 %v4054
    %4064 = vmatpush.msra.mxu0 %v4053
    %4065 = vmatpush.msra.mxu0 %v4052
    %4066 = vmatpush.msra.mxu0 %v4051
    %4067 = vmatpush.msra.mxu0 %v4050
    %4068 = vmatpush.msra.mxu0 %v4049
    %4069 = vmatpush.msra.mxu0 %v4048
    %4070 = vmatpush.msra.mxu0 %v4047
    %4071 = vmatpush.msra.mxu0 %v4046
    %4072 = vmatpush.msra.mxu0 %v4045
    %4073 = vmatpush.msra.mxu0 %v4044
    %4074 = vmatpush.msra.mxu0 %v4043
    %4075 = vmatpush.msra.mxu0 %v4042
    %4076 = vmatmul.f32.gmra.mxu0 %v4034
    %v4077 = vpop.f32.mrf.mxu0
    %v4078 = vadd.f32 %v4059, %v4077
    %4079 = vmatmul.f32.gmra.mxu0 %v4035
    %v4080 = vpop.f32.mrf.mxu0
    %v4081 = vadd.f32 %v4059, %v4080
    %4082 = vmatmul.f32.gmra.mxu0 %v4036
    %v4083 = vpop.f32.mrf.mxu0
    %v4084 = vadd.f32 %v4059, %v4083
    %4085 = vmatmul.f32.gmra.mxu0 %v4037
    %v4086 = vpop.f32.mrf.mxu0
    %v4087 = vadd.f32 %v4059, %v4086
    %4088 = vmatmul.f32.gmra.mxu0 %v4038
    %v4089 = vpop.f32.mrf.mxu0
    %v4090 = vadd.f32 %v4059, %v4089
    %4091 = vmatmul.f32.gmra.mxu0 %v4039
    %v4092 = vpop.f32.mrf.mxu0
    %v4093 = vadd.f32 %v4059, %v4092
    %4094 = vmatmul.f32.gmra.mxu0 %v4040
    %v4095 = vpop.f32.mrf.mxu0
    %v4096 = vadd.f32 %v4059, %v4095
    %4097 = vmatmul.f32.gmra.mxu0 %v4041
    %v4098 = vpop.f32.mrf.mxu0
    %v4099 = vadd.f32 %v4059, %v4098
    %4100 = vdwg.mxu0
    %v4101 = vmax.f32 %v4078, 0.0
    %v4102 = vmax.f32 %v4081, 0.0
    %v4103 = vmax.f32 %v4084, 0.0
    %v4104 = vmax.f32 %v4087, 0.0
    %v4105 = vmax.f32 %v4090, 0.0
    %v4106 = vmax.f32 %v4093, 0.0
    %v4107 = vmax.f32 %v4096, 0.0
    %v4108 = vmax.f32 %v4099, 0.0
    %v4109 = vld [vmem:[#allocation5 + $0xa0] sm:$0x1]
    %v4110 = vperm.slane %v4109, 0
    %v4111 = vmul.f32 %v4101, %v4110
    %4112 = vadd.xlane.f32.xlu0 %v4111
    %v4113 = vpop.xlane.xlu0 %4112
    %v4114 = vmul.f32 %v4102, %v4110
    %4115 = vadd.xlane.f32.xlu0 %v4114
    %v4116 = vpop.xlane.xlu0 %4115
    %v4117 = vmul.f32 %v4103, %v4110
    %4118 = vadd.xlane.f32.xlu0 %v4117
    %v4119 = vpop.xlane.xlu0 %4118
    %v4120 = vmul.f32 %v4104, %v4110
    %4121 = vadd.xlane.f32.xlu0 %v4120
    %v4122 = vpop.xlane.xlu0 %4121
    %v4123 = vmul.f32 %v4105, %v4110
    %4124 = vadd.xlane.f32.xlu0 %v4123
    %v4125 = vpop.xlane.xlu0 %4124
    %v4126 = vmul.f32 %v4106, %v4110
    %4127 = vadd.xlane.f32.xlu0 %v4126
    %v4128 = vpop.xlane.xlu0 %4127
    %v4129 = vmul.f32 %v4107, %v4110
    %4130 = vadd.xlane.f32.xlu0 %v4129
    %v4131 = vpop.xlane.xlu0 %4130
    %v4132 = vmul.f32 %v4108, %v4110
    %4133 = vadd.xlane.f32.xlu0 %v4132
    %v4134 = vpop.xlane.xlu0 %4133
    %vm4135 = vcmask 7168
    %v4136 = vsel %vm4135, %v4113, %v4116
    %vm4137 = vcmask 15360
    %v4138 = vsel %vm4137, %v4136, %v4119
    %vm4139 = vcmask 23552
    %v4140 = vsel %vm4139, %v4138, %v4122
    %vm4141 = vcmask 31744
    %v4142 = vsel %vm4141, %v4140, %v4125
    %vm4143 = vcmask 39936
    %v4144 = vsel %vm4143, %v4142, %v4128
    %vm4145 = vcmask 48128
    %v4146 = vsel %vm4145, %v4144, %v4131
    %vm4147 = vcmask 56320
    %v4148 = vsel %vm4147, %v4146, %v4134
    %vm4149 = vcmask 64512
    %v4150 = vsel %vm4149, %v4148, -inf
    %4151 = vmax.xlane.f32.xlu0 %v4150
    %v4152 = vpop.xlane.xlu0 %4151
    %v4153 = vsub.f32 %v4148, %v4152
    %v4154 = vmul.f32 %v4153, 1.442695
    %v4155 = vpow.pop %v4154
    %v4156 = vsel %vm4149, %v4155, 0.0
    %4157 = vadd.xlane.f32.xlu0 %v4156
    %v4158 = vpop.xlane.xlu0 %4157
    %v4159 = vrcp.pop %v4158
    %v4160 = vmul.f32 %v4155, %v4159
    %4162 = vset.pattern.permute.xlu0 0
    %4163 = vperm.xlu0 %4162, %v4160
    %v4164 = vpop.permute.xlu0 %4163
    %v4166 = vmul.f32 %v4164, %v4034
    %v4167 = vadd.f32 %v4166, 0.0
    %v4168 = vadd.f32 %v4034, 0.0
    %4169 = vset.pattern.permute.xlu0 1
    %4170 = vperm.xlu0 %4169, %v4160
    %v4171 = vpop.permute.xlu0 %4170
    %v4173 = vmul.f32 %v4171, %v4035
    %v4174 = vadd.f32 %v4167, %v4173
    %v4175 = vadd.f32 %v4168, %v4035
    %4176 = vset.pattern.permute.xlu0 2
    %4177 = vperm.xlu0 %4176, %v4160
    %v4178 = vpop.permute.xlu0 %4177
    %v4180 = vmul.f32 %v4178, %v4036
    %v4181 = vadd.f32 %v4174, %v4180
    %v4182 = vadd.f32 %v4175, %v4036
    %4183 = vset.pattern.permute.xlu0 3
    %4184 = vperm.xlu0 %4183, %v4160
    %v4185 = vpop.permute.xlu0 %4184
    %v4187 = vmul.f32 %v4185, %v4037
    %v4188 = vadd.f32 %v4181, %v4187
    %v4189 = vadd.f32 %v4182, %v4037
    %4190 = vset.pattern.permute.xlu0 4
    %4191 = vperm.xlu0 %4190, %v4160
    %v4192 = vpop.permute.xlu0 %4191
    %v4194 = vmul.f32 %v4192, %v4038
    %v4195 = vadd.f32 %v4188, %v4194
    %v4196 = vadd.f32 %v4189, %v4038
    %4197 = vset.pattern.permute.xlu0 5
    %4198 = vperm.xlu0 %4197, %v4160
    %v4199 = vpop.permute.xlu0 %4198
    %v4201 = vmul.f32 %v4199, %v4039
    %v4202 = vadd.f32 %v4195, %v4201
    %v4203 = vadd.f32 %v4196, %v4039
    %4204 = vset.pattern.permute.xlu0 6
    %4205 = vperm.xlu0 %4204, %v4160
    %v4206 = vpop.permute.xlu0 %4205
    %v4208 = vmul.f32 %v4206, %v4040
    %v4209 = vadd.f32 %v4202, %v4208
    %v4210 = vadd.f32 %v4203, %v4040
    %4211 = vset.pattern.permute.xlu0 7
    %4212 = vperm.xlu0 %4211, %v4160
    %v4213 = vpop.permute.xlu0 %4212
    %v4215 = vmul.f32 %v4213, %v4041
    %v4216 = vadd.f32 %v4209, %v4215
    %v4217 = vadd.f32 %v4210, %v4041
    %v4218 = vld [vmem:[#allocation5 + $0xa8] sm:$0xff]
    %v4219 = vld [vmem:[#allocation5 + $0xb0] sm:$0xff]
    %v4220 = vld [vmem:[#allocation5 + $0xb8] sm:$0xff]
    %v4221 = vld [vmem:[#allocation5 + $0xc0] sm:$0xff]
    %v4222 = vld [vmem:[#allocation5 + $0xc8] sm:$0xff]
    %v4223 = vld [vmem:[#allocation5 + $0xd0] sm:$0xff]
    %v4224 = vld [vmem:[#allocation5 + $0xd8] sm:$0xff]
    %v4225 = vld [vmem:[#allocation5 + $0xe0] sm:$0xff]
    %v4226 = vld [vmem:[#allocation5 + $0xe8] sm:$0xff]
    %v4227 = vld [vmem:[#allocation5 + $0xf0] sm:$0xff]
    %v4228 = vld [vmem:[#allocation5 + $0xf8] sm:$0xff]
    %v4229 = vld [vmem:[#allocation5 + $0x100] sm:$0xff]
    %v4230 = vld [vmem:[#allocation5 + $0x108] sm:$0xff]
    %v4231 = vld [vmem:[#allocation5 + $0x110] sm:$0xff]
    %v4232 = vld [vmem:[#allocation5 + $0x118] sm:$0xff]
    %v4233 = vld [vmem:[#allocation5 + $0x120] sm:$0xff]
    %v4234 = vld [vmem:[#allocation5 + $0x128] sm:$0xff]
    %v4235 = vld [vmem:[#allocation5 + $0x130] sm:$0xff]
    %v4236 = vld [vmem:[#allocation5 + $0x138] sm:$0xff]
    %v4237 = vld [vmem:[#allocation5 + $0x140] sm:$0xff]
    %v4238 = vld [vmem:[#allocation5 + $0x148] sm:$0xff]
    %v4239 = vld [vmem:[#allocation5 + $0x150] sm:$0xff]
    %v4240 = vld [vmem:[#allocation5 + $0x158] sm:$0xff]
    %v4241 = vld [vmem:[#allocation5 + $0x160] sm:$0xff]
    %v4242 = vld [vmem:[#allocation5 + $0x168] sm:$0xff]
    %v4243 = vld [vmem:[#allocation5 + $0x170] sm:$0xff]
    %v4244 = vld [vmem:[#allocation5 + $0x178] sm:$0xff]
    %v4245 = vld [vmem:[#allocation5 + $0x180] sm:$0xff]
    %v4246 = vld [vmem:[#allocation5 + $0x188] sm:$0xff]
    %v4247 = vld [vmem:[#allocation5 + $0x190] sm:$0xff]
    %v4248 = vld [vmem:[#allocation5 + $0x198] sm:$0xff]
    %v4249 = vld [vmem:[#allocation5 + $0x1a0] sm:$0xff]
    %v4250 = vld [vmem:[#allocation5 + $0x1a8] sm:$0x1]
    %4251 = vmatpush.msra.mxu0 %v4249
    %4252 = vmatpush.msra.mxu0 %v4248
    %4253 = vmatpush.msra.mxu0 %v4247
    %4254 = vmatpush.msra.mxu0 %v4246
    %4255 = vmatpush.msra.mxu0 %v4245
    %4256 = vmatpush.msra.mxu0 %v4244
    %4257 = vmatpush.msra.mxu0 %v4243
    %4258 = vmatpush.msra.mxu0 %v4242
    %4259 = vmatpush.msra.mxu0 %v4241
    %4260 = vmatpush.msra.mxu0 %v4240
    %4261 = vmatpush.msra.mxu0 %v4239
    %4262 = vmatpush.msra.mxu0 %v4238
    %4263 = vmatpush.msra.mxu0 %v4237
    %4264 = vmatpush.msra.mxu0 %v4236
    %4265 = vmatpush.msra.mxu0 %v4235
    %4266 = vmatpush.msra.mxu0 %v4234
    %4267 = vmatmul.f32.gmra.mxu0 %v4217
    %v4268 = vpop.f32.mrf.mxu0
    %v4269 = vadd.f32 0.0, %v4268
    %4270 = vdwg.mxu0
    %4271 = vmatpush.msra.mxu0 %v4233
    %4272 = vmatpush.msra.mxu0 %v4232
    %4273 = vmatpush.msra.mxu0 %v4231
    %4274 = vmatpush.msra.mxu0 %v4230
    %4275 = vmatpush.msra.mxu0 %v4229
    %4276 = vmatpush.msra.mxu0 %v4228
    %4277 = vmatpush.msra.mxu0 %v4227
    %4278 = vmatpush.msra.mxu0 %v4226
    %4279 = vmatpush.msra.mxu0 %v4225
    %4280 = vmatpush.msra.mxu0 %v4224
    %4281 = vmatpush.msra.mxu0 %v4223
    %4282 = vmatpush.msra.mxu0 %v4222
    %4283 = vmatpush.msra.mxu0 %v4221
    %4284 = vmatpush.msra.mxu0 %v4220
    %4285 = vmatpush.msra.mxu0 %v4219
    %4286 = vmatpush.msra.mxu0 %v4218
    %4287 = vmatmul.f32.gmra.mxu0 %v4216
    %v4288 = vpop.f32.mrf.mxu0
    %v4289 = vadd.f32 %v4269, %v4288
    %4290 = vdwg.mxu0
    %v4291 = vperm.slane %v4250, 0
    %v4292 = vadd.f32 %v4289, %v4291
    %4293 = vst.msk [vmem:[%s3] sm:$0xff] %vm4141, %v4292
    // Predicated region
    $region22: #{forward.1} parent=1 // pred_check
      _
    $region23: #{forward.1} parent=1 // pred_check_branch
      %4295 = sbr.rel (0) target = $region25
    $region24: #{forward.1} parent=1 // pred_region
      _
    $region25: #{forward.1} parent=1 // pred_fallthru
      _
    // Predicated region
    $region26: #{forward.1} parent=1 // pred_check
      _
    $region27: #{forward.1} parent=1 // pred_check_branch
      %4297 = sbr.rel (0) target = $region29
    $region28: #{forward.1} parent=1 // pred_region
      _
    $region29: #{forward.1} parent=1 // pred_fallthru
      _
    %4298 = vsyncpa [#allocation4], 1
    %4299 = vsyncpa [#allocation6], 1

</llo_original>
